<compile_context>
chip_gen: v6e
topology: v6e:2x2x1
jax: 0.10.0
libtpu: 0.0.40
codegen_flags: <defaults>
</compile_context>

<pallas_src>
from functools import partial

import jax
import jax.numpy as jnp
from jax.experimental import pallas as pl
from jax.experimental.pallas import tpu as pltpu


def _double_conv_kernel(x_ref, w1_ref, b1_ref, w2i_ref, b2i_ref, o_ref,
                        xpad_ref, ypad_ref, p1_ref, p2_ref,
                        *, H, W, Cin, Cmid, Cout):
    # x_ref:   (1, H, W, Cin)            input tile (one batch element)
    # w1_ref:  (9*Cin, Cmid)             conv1 taps stacked in HWIO order
    # b1_ref:  (1, Cmid)
    # w2i_ref: (9*Cmid + Cin, Cout)      [conv2 taps ; 1x1 identity] stacked on K
    # b2i_ref: (1, Cout)                 b2 + bi
    # o_ref:   (1, H*W, Cout)
    # scratches: xpad (H+2,W+2,Cin), ypad (H+2,W+2,Cmid),
    #            p1 (H*W, 9*Cin), p2 (H*W, 9*Cmid + Cin)   -- compute dtype
    cdtype = xpad_ref.dtype

    # Zero-filled scratches: the untouched 1-pixel border IS the SAME padding.
    xpad_ref[...] = jnp.zeros_like(xpad_ref)
    ypad_ref[...] = jnp.zeros_like(ypad_ref)
    xpad_ref[1:H + 1, 1:W + 1, :] = x_ref[0].astype(cdtype)

    # ---- conv1 as a single im2col matmul: (H*W, 9*Cin) @ (9*Cin, Cmid) ----
    for dy in range(3):
        for dx in range(3):
            t = dy * 3 + dx
            p1_ref[:, t * Cin:(t + 1) * Cin] = (
                xpad_ref[dy:dy + H, dx:dx + W, :].reshape(H * W, Cin))
    acc1 = jnp.dot(p1_ref[...], w1_ref[...],
                   preferred_element_type=jnp.float32)
    y = jnp.maximum(acc1 + b1_ref[...], 0.0)             # (H*W, Cmid), f32

    # Intermediate stays resident in VMEM (never written to HBM).
    ypad_ref[1:H + 1, 1:W + 1, :] = y.astype(cdtype).reshape(H, W, Cmid)

    # ---- conv2 + folded 1x1 identity: (H*W, 9*Cmid + Cin) @ (..., Cout) ----
    for dy in range(3):
        for dx in range(3):
            t = dy * 3 + dx
            p2_ref[:, t * Cmid:(t + 1) * Cmid] = (
                ypad_ref[dy:dy + H, dx:dx + W, :].reshape(H * W, Cmid))
    # Identity branch (1x1 conv on x) = extra K columns; reuse padded x center.
    p2_ref[:, 9 * Cmid:9 * Cmid + Cin] = (
        xpad_ref[1:H + 1, 1:W + 1, :].reshape(H * W, Cin))

    acc2 = jnp.dot(p2_ref[...], w2i_ref[...],
                   preferred_element_type=jnp.float32)
    out = jnp.maximum(acc2 + b2i_ref[...], 0.0)           # (H*W, Cout), f32
    o_ref[0] = out.astype(o_ref.dtype)


def double_conv(x_nchw, w1, b1, w2, b2, wi, bi, *, compute_dtype=jnp.bfloat16):
    """DoubleConv forward. x_nchw: (N, Cin, H, W); weights in OIHW; biases (Cout,)."""
    N, Cin, H, W = x_nchw.shape
    Cout = w1.shape[0]
    Cmid = Cout
    out_dtype = x_nchw.dtype

    # NCHW -> NHWC (channels on the lane axis); matmul operands in compute_dtype.
    x = jnp.transpose(x_nchw, (0, 2, 3, 1)).astype(compute_dtype)

    # OIHW -> (ky*kx*I, O) matmul matrices (HWIO order matches the patch layout).
    w1_m = jnp.transpose(w1, (2, 3, 1, 0)).reshape(9 * Cin, Cmid).astype(compute_dtype)
    w2_m = jnp.transpose(w2, (2, 3, 1, 0)).reshape(9 * Cmid, Cout)
    wi_m = jnp.transpose(wi, (2, 3, 1, 0)).reshape(Cin, Cout)
    # Fold the 1x1 identity conv into the second matmul and its bias into b2.
    w2i_m = jnp.concatenate([w2_m, wi_m], axis=0).astype(compute_dtype)
    b1_m = b1.reshape(1, Cmid).astype(jnp.float32)
    b2i_m = (b2 + bi).reshape(1, Cout).astype(jnp.float32)

    kernel = partial(_double_conv_kernel,
                     H=H, W=W, Cin=Cin, Cmid=Cmid, Cout=Cout)

    out = pl.pallas_call(
        kernel,
        out_shape=jax.ShapeDtypeStruct((N, H * W, Cout), out_dtype),
        grid=(N,),
        in_specs=[
            pl.BlockSpec((1, H, W, Cin), lambda b: (b, 0, 0, 0)),
            pl.BlockSpec((9 * Cin, Cmid), lambda b: (0, 0)),
            pl.BlockSpec((1, Cmid), lambda b: (0, 0)),
            pl.BlockSpec((9 * Cmid + Cin, Cout), lambda b: (0, 0)),
            pl.BlockSpec((1, Cout), lambda b: (0, 0)),
        ],
        out_specs=pl.BlockSpec((1, H * W, Cout), lambda b: (b, 0, 0)),
        scratch_shapes=[
            pltpu.VMEM((H + 2, W + 2, Cin), compute_dtype),      # zero-padded x
            pltpu.VMEM((H + 2, W + 2, Cmid), compute_dtype),     # zero-padded relu(conv1)
            pltpu.VMEM((H * W, 9 * Cin), compute_dtype),         # im2col, conv1
            pltpu.VMEM((H * W, 9 * Cmid + Cin), compute_dtype),  # im2col, conv2 + identity
        ],
        compiler_params=pltpu.CompilerParams(
            dimension_semantics=("parallel",)),
    )(x, w1_m, b1_m, w2i_m, b2i_m)

    # (N, H*W, Cout) -> (N, H, W, Cout) is layout-free; then NHWC -> NCHW for the
    # PyTorch-style interface.  (Accepting/returning NHWC would drop both
    # transposes from the hot path.)
    return jnp.transpose(out.reshape(N, H, W, Cout), (0, 3, 1, 2))


def _reference(x, w1, b1, w2, b2, wi, bi):
    dn = ("NCHW", "OIHW", "NCHW")
    c1 = jax.lax.conv_general_dilated(x, w1, (1, 1), "SAME",
                                      dimension_numbers=dn) + b1[None, :, None, None]
    c1 = jnp.maximum(c1, 0.0)
    c2 = jax.lax.conv_general_dilated(c1, w2, (1, 1), "SAME",
                                      dimension_numbers=dn) + b2[None, :, None, None]
    ident = jax.lax.conv_general_dilated(x, wi, (1, 1), "SAME",
                                         dimension_numbers=dn) + bi[None, :, None, None]
    return jnp.maximum(c2 + ident, 0.0)


if __name__ == "__main__":
    key = jax.random.PRNGKey(0)
    N, Cin, Cout, H, W = 2, 4, 8, 16, 16

    k = jax.random.split(key, 7)
    x = jax.random.normal(k[0], (N, Cin, H, W), jnp.float32)
    # Deterministic synthetic parameters (nn.Conv2d shapes: OIHW weights + bias).
    w1 = 0.1 * jax.random.normal(k[1], (Cout, Cin, 3, 3), jnp.float32)
    b1 = 0.1 * jax.random.normal(k[2], (Cout,), jnp.float32)
    w2 = 0.1 * jax.random.normal(k[3], (Cout, Cout, 3, 3), jnp.float32)
    b2 = 0.1 * jax.random.normal(k[4], (Cout,), jnp.float32)
    wi = 0.1 * jax.random.normal(k[5], (Cout, Cin, 1, 1), jnp.float32)
    bi = 0.1 * jax.random.normal(k[6], (Cout,), jnp.float32)

    y_ref = _reference(x, w1, b1, w2, b2, wi, bi)

    # Exact-math check: f32 compute path vs. lax.conv reference (tight tolerance).
    y_f32 = jax.block_until_ready(
        double_conv(x, w1, b1, w2, b2, wi, bi, compute_dtype=jnp.float32))
    assert y_f32.shape == (N, Cout, H, W)
    assert jnp.allclose(y_f32, y_ref, atol=1e-4, rtol=1e-4), "f32 path mismatch"

    # Default perf path: bf16 MXU operands, f32 accumulation (bf16-level tolerance).
    y_bf16 = jax.block_until_ready(double_conv(x, w1, b1, w2, b2, wi, bi))
    assert y_bf16.shape == (N, Cout, H, W)
    assert jnp.allclose(y_bf16, y_ref, atol=5e-2, rtol=5e-2), "bf16 path mismatch"

    print("KERNEL_OK")
</pallas_src>

<mosaic_0001>
module attributes {stable_mosaic.version = 11 : i64} {
  func.func @_double_conv_kernel(%arg0: i32, %arg1: memref<1x16x16x4xf32, #tpu.memory_space<vmem>>, %arg2: memref<36x8xf32, #tpu.memory_space<vmem>>, %arg3: memref<1x8xf32, #tpu.memory_space<vmem>>, %arg4: memref<76x8xf32, #tpu.memory_space<vmem>>, %arg5: memref<1x8xf32, #tpu.memory_space<vmem>>, %arg6: memref<1x256x8xf32, #tpu.memory_space<vmem>>, %arg7: memref<18x18x4xf32, #tpu.memory_space<vmem>>, %arg8: memref<18x18x8xf32, #tpu.memory_space<vmem>>, %arg9: memref<256x36xf32, #tpu.memory_space<vmem>>, %arg10: memref<256x76xf32, #tpu.memory_space<vmem>>) attributes {dimension_semantics = [#tpu.dimension_semantics<parallel>], iteration_bounds = array<i64: 2>, scalar_prefetch = 0 : i64, scratch_operands = 4 : i64, tpu.core_type = #tpu.core_type<tc>, window_params = [{transform_indices = @transform_0, window_bounds = array<i64: 1, 16, 16, 4>}, {pipeline_mode = #tpu.pipeline_mode<synchronous>, transform_indices = @transform_1, window_bounds = array<i64: 36, 8>}, {pipeline_mode = #tpu.pipeline_mode<synchronous>, transform_indices = @transform_2, window_bounds = array<i64: 1, 8>}, {pipeline_mode = #tpu.pipeline_mode<synchronous>, transform_indices = @transform_3, window_bounds = array<i64: 76, 8>}, {pipeline_mode = #tpu.pipeline_mode<synchronous>, transform_indices = @transform_4, window_bounds = array<i64: 1, 8>}, {transform_indices = @transform_5, window_bounds = array<i64: 1, 256, 8>}]} {
    %cst = arith.constant 0.000000e+00 : f32
    %0 = vector.broadcast %cst : f32 to vector<18x18x4xf32>
    %c0 = arith.constant 0 : index
    %c0_0 = arith.constant 0 : index
    %c0_1 = arith.constant 0 : index
    %1 = vector.load %arg7[%c0, %c0_0, %c0_1] : memref<18x18x4xf32, #tpu.memory_space<vmem>>, vector<18x18x4xf32>
    tpu.vector_store %arg7[%c0, %c0_0, %c0_1], %0 {strides = array<i32>} : memref<18x18x4xf32, #tpu.memory_space<vmem>>, vector<18x18x4xf32>,
    %cst_2 = arith.constant 0.000000e+00 : f32
    %2 = vector.broadcast %cst_2 : f32 to vector<18x18x8xf32>
    %c0_3 = arith.constant 0 : index
    %c0_4 = arith.constant 0 : index
    %c0_5 = arith.constant 0 : index
    %3 = vector.load %arg8[%c0_3, %c0_4, %c0_5] : memref<18x18x8xf32, #tpu.memory_space<vmem>>, vector<18x18x8xf32>
    tpu.vector_store %arg8[%c0_3, %c0_4, %c0_5], %2 {strides = array<i32>} : memref<18x18x8xf32, #tpu.memory_space<vmem>>, vector<18x18x8xf32>,
    %c0_6 = arith.constant 0 : index
    %c0_7 = arith.constant 0 : index
    %c0_8 = arith.constant 0 : index
    %c0_9 = arith.constant 0 : index
    %4 = vector.load %arg1[%c0_6, %c0_7, %c0_8, %c0_9] : memref<1x16x16x4xf32, #tpu.memory_space<vmem>>, vector<1x16x16x4xf32>
    %5 = vector.shape_cast %4 : vector<1x16x16x4xf32> to vector<16x16x4xf32>
    %c1 = arith.constant 1 : index
    %c1_10 = arith.constant 1 : index
    %c0_11 = arith.constant 0 : index
    %6 = vector.load %arg7[%c1, %c1_10, %c0_11] : memref<18x18x4xf32, #tpu.memory_space<vmem>>, vector<16x16x4xf32>
    tpu.vector_store %arg7[%c1, %c1_10, %c0_11], %5 {strides = array<i32>} : memref<18x18x4xf32, #tpu.memory_space<vmem>>, vector<16x16x4xf32>,
    %c0_12 = arith.constant 0 : index
    %c0_13 = arith.constant 0 : index
    %c0_14 = arith.constant 0 : index
    %7 = vector.load %arg7[%c0_12, %c0_13, %c0_14] : memref<18x18x4xf32, #tpu.memory_space<vmem>>, vector<16x16x4xf32>
    %8 = vector.shape_cast %7 : vector<16x16x4xf32> to vector<256x4xf32>
    %c0_15 = arith.constant 0 : index
    %c0_16 = arith.constant 0 : index
    %9 = vector.load %arg9[%c0_15, %c0_16] : memref<256x36xf32, #tpu.memory_space<vmem>>, vector<256x4xf32>
    tpu.vector_store %arg9[%c0_15, %c0_16], %8 {strides = array<i32>} : memref<256x36xf32, #tpu.memory_space<vmem>>, vector<256x4xf32>,
    %c0_17 = arith.constant 0 : index
    %c1_18 = arith.constant 1 : index
    %c0_19 = arith.constant 0 : index
    %10 = vector.load %arg7[%c0_17, %c1_18, %c0_19] : memref<18x18x4xf32, #tpu.memory_space<vmem>>, vector<16x16x4xf32>
    %11 = vector.shape_cast %10 : vector<16x16x4xf32> to vector<256x4xf32>
    %c0_20 = arith.constant 0 : index
    %c4 = arith.constant 4 : index
    %12 = vector.load %arg9[%c0_20, %c4] : memref<256x36xf32, #tpu.memory_space<vmem>>, vector<256x4xf32>
    tpu.vector_store %arg9[%c0_20, %c4], %11 {strides = array<i32>} : memref<256x36xf32, #tpu.memory_space<vmem>>, vector<256x4xf32>,
    %c0_21 = arith.constant 0 : index
    %c2 = arith.constant 2 : index
    %c0_22 = arith.constant 0 : index
    %13 = vector.load %arg7[%c0_21, %c2, %c0_22] : memref<18x18x4xf32, #tpu.memory_space<vmem>>, vector<16x16x4xf32>
    %14 = vector.shape_cast %13 : vector<16x16x4xf32> to vector<256x4xf32>
    %c0_23 = arith.constant 0 : index
    %c8 = arith.constant 8 : index
    %15 = vector.load %arg9[%c0_23, %c8] : memref<256x36xf32, #tpu.memory_space<vmem>>, vector<256x4xf32>
    tpu.vector_store %arg9[%c0_23, %c8], %14 {strides = array<i32>} : memref<256x36xf32, #tpu.memory_space<vmem>>, vector<256x4xf32>,
    %c1_24 = arith.constant 1 : index
    %c0_25 = arith.constant 0 : index
    %c0_26 = arith.constant 0 : index
    %16 = vector.load %arg7[%c1_24, %c0_25, %c0_26] : memref<18x18x4xf32, #tpu.memory_space<vmem>>, vector<16x16x4xf32>
    %17 = vector.shape_cast %16 : vector<16x16x4xf32> to vector<256x4xf32>
    %c0_27 = arith.constant 0 : index
    %c12 = arith.constant 12 : index
    %18 = vector.load %arg9[%c0_27, %c12] : memref<256x36xf32, #tpu.memory_space<vmem>>, vector<256x4xf32>
    tpu.vector_store %arg9[%c0_27, %c12], %17 {strides = array<i32>} : memref<256x36xf32, #tpu.memory_space<vmem>>, vector<256x4xf32>,
    %c1_28 = arith.constant 1 : index
    %c1_29 = arith.constant 1 : index
    %c0_30 = arith.constant 0 : index
    %19 = vector.load %arg7[%c1_28, %c1_29, %c0_30] : memref<18x18x4xf32, #tpu.memory_space<vmem>>, vector<16x16x4xf32>
    %20 = vector.shape_cast %19 : vector<16x16x4xf32> to vector<256x4xf32>
    %c0_31 = arith.constant 0 : index
    %c16 = arith.constant 16 : index
    %21 = vector.load %arg9[%c0_31, %c16] : memref<256x36xf32, #tpu.memory_space<vmem>>, vector<256x4xf32>
    tpu.vector_store %arg9[%c0_31, %c16], %20 {strides = array<i32>} : memref<256x36xf32, #tpu.memory_space<vmem>>, vector<256x4xf32>,
    %c1_32 = arith.constant 1 : index
    %c2_33 = arith.constant 2 : index
    %c0_34 = arith.constant 0 : index
    %22 = vector.load %arg7[%c1_32, %c2_33, %c0_34] : memref<18x18x4xf32, #tpu.memory_space<vmem>>, vector<16x16x4xf32>
    %23 = vector.shape_cast %22 : vector<16x16x4xf32> to vector<256x4xf32>
    %c0_35 = arith.constant 0 : index
    %c20 = arith.constant 20 : index
    %24 = vector.load %arg9[%c0_35, %c20] : memref<256x36xf32, #tpu.memory_space<vmem>>, vector<256x4xf32>
    tpu.vector_store %arg9[%c0_35, %c20], %23 {strides = array<i32>} : memref<256x36xf32, #tpu.memory_space<vmem>>, vector<256x4xf32>,
    %c2_36 = arith.constant 2 : index
    %c0_37 = arith.constant 0 : index
    %c0_38 = arith.constant 0 : index
    %25 = vector.load %arg7[%c2_36, %c0_37, %c0_38] : memref<18x18x4xf32, #tpu.memory_space<vmem>>, vector<16x16x4xf32>
    %26 = vector.shape_cast %25 : vector<16x16x4xf32> to vector<256x4xf32>
    %c0_39 = arith.constant 0 : index
    %c24 = arith.constant 24 : index
    %27 = vector.load %arg9[%c0_39, %c24] : memref<256x36xf32, #tpu.memory_space<vmem>>, vector<256x4xf32>
    tpu.vector_store %arg9[%c0_39, %c24], %26 {strides = array<i32>} : memref<256x36xf32, #tpu.memory_space<vmem>>, vector<256x4xf32>,
    %c2_40 = arith.constant 2 : index
    %c1_41 = arith.constant 1 : index
    %c0_42 = arith.constant 0 : index
    %28 = vector.load %arg7[%c2_40, %c1_41, %c0_42] : memref<18x18x4xf32, #tpu.memory_space<vmem>>, vector<16x16x4xf32>
    %29 = vector.shape_cast %28 : vector<16x16x4xf32> to vector<256x4xf32>
    %c0_43 = arith.constant 0 : index
    %c28 = arith.constant 28 : index
    %30 = vector.load %arg9[%c0_43, %c28] : memref<256x36xf32, #tpu.memory_space<vmem>>, vector<256x4xf32>
    tpu.vector_store %arg9[%c0_43, %c28], %29 {strides = array<i32>} : memref<256x36xf32, #tpu.memory_space<vmem>>, vector<256x4xf32>,
    %c2_44 = arith.constant 2 : index
    %c2_45 = arith.constant 2 : index
    %c0_46 = arith.constant 0 : index
    %31 = vector.load %arg7[%c2_44, %c2_45, %c0_46] : memref<18x18x4xf32, #tpu.memory_space<vmem>>, vector<16x16x4xf32>
    %32 = vector.shape_cast %31 : vector<16x16x4xf32> to vector<256x4xf32>
    %c0_47 = arith.constant 0 : index
    %c32 = arith.constant 32 : index
    %33 = vector.load %arg9[%c0_47, %c32] : memref<256x36xf32, #tpu.memory_space<vmem>>, vector<256x4xf32>
    tpu.vector_store %arg9[%c0_47, %c32], %32 {strides = array<i32>} : memref<256x36xf32, #tpu.memory_space<vmem>>, vector<256x4xf32>,
    %c0_48 = arith.constant 0 : index
    %c0_49 = arith.constant 0 : index
    %34 = vector.load %arg9[%c0_48, %c0_49] : memref<256x36xf32, #tpu.memory_space<vmem>>, vector<256x36xf32>
    %c0_50 = arith.constant 0 : index
    %c0_51 = arith.constant 0 : index
    %35 = vector.load %arg2[%c0_50, %c0_51] : memref<36x8xf32, #tpu.memory_space<vmem>>, vector<36x8xf32>
    %cst_52 = arith.constant dense<0.000000e+00> : vector<256x8xf32>
    %36 = tpu.matmul %34, %35, %cst_52 {dimension_numbers = #tpu.dot_dimension_numbers<[1], [0], [0], [1], [0, 0, 1, 1], [], []>} : vector<256x36xf32>, vector<36x8xf32>, vector<256x8xf32> -> vector<256x8xf32>
    %c0_53 = arith.constant 0 : index
    %c0_54 = arith.constant 0 : index
    %37 = vector.load %arg3[%c0_53, %c0_54] : memref<1x8xf32, #tpu.memory_space<vmem>>, vector<1x8xf32>
    %38 = vector.broadcast %37 : vector<1x8xf32> to vector<256x8xf32>
    %39 = arith.addf %36, %38 : vector<256x8xf32>
    %cst_55 = arith.constant 0.000000e+00 : f32
    %40 = vector.broadcast %cst_55 : f32 to vector<256x8xf32>
    %41 = arith.maximumf %39, %40 : vector<256x8xf32>
    %42 = vector.shape_cast %41 : vector<256x8xf32> to vector<16x16x8xf32>
    %c1_56 = arith.constant 1 : index
    %c1_57 = arith.constant 1 : index
    %c0_58 = arith.constant 0 : index
    %43 = vector.load %arg8[%c1_56, %c1_57, %c0_58] : memref<18x18x8xf32, #tpu.memory_space<vmem>>, vector<16x16x8xf32>
    tpu.vector_store %arg8[%c1_56, %c1_57, %c0_58], %42 {strides = array<i32>} : memref<18x18x8xf32, #tpu.memory_space<vmem>>, vector<16x16x8xf32>,
    %c0_59 = arith.constant 0 : index
    %c0_60 = arith.constant 0 : index
    %c0_61 = arith.constant 0 : index
    %44 = vector.load %arg8[%c0_59, %c0_60, %c0_61] : memref<18x18x8xf32, #tpu.memory_space<vmem>>, vector<16x16x8xf32>
    %45 = vector.shape_cast %44 : vector<16x16x8xf32> to vector<256x8xf32>
    %c0_62 = arith.constant 0 : index
    %c0_63 = arith.constant 0 : index
    %46 = vector.load %arg10[%c0_62, %c0_63] : memref<256x76xf32, #tpu.memory_space<vmem>>, vector<256x8xf32>
    tpu.vector_store %arg10[%c0_62, %c0_63], %45 {strides = array<i32>} : memref<256x76xf32, #tpu.memory_space<vmem>>, vector<256x8xf32>,
    %c0_64 = arith.constant 0 : index
    %c1_65 = arith.constant 1 : index
    %c0_66 = arith.constant 0 : index
    %47 = vector.load %arg8[%c0_64, %c1_65, %c0_66] : memref<18x18x8xf32, #tpu.memory_space<vmem>>, vector<16x16x8xf32>
    %48 = vector.shape_cast %47 : vector<16x16x8xf32> to vector<256x8xf32>
    %c0_67 = arith.constant 0 : index
    %c8_68 = arith.constant 8 : index
    %49 = vector.load %arg10[%c0_67, %c8_68] : memref<256x76xf32, #tpu.memory_space<vmem>>, vector<256x8xf32>
    tpu.vector_store %arg10[%c0_67, %c8_68], %48 {strides = array<i32>} : memref<256x76xf32, #tpu.memory_space<vmem>>, vector<256x8xf32>,
    %c0_69 = arith.constant 0 : index
    %c2_70 = arith.constant 2 : index
    %c0_71 = arith.constant 0 : index
    %50 = vector.load %arg8[%c0_69, %c2_70, %c0_71] : memref<18x18x8xf32, #tpu.memory_space<vmem>>, vector<16x16x8xf32>
    %51 = vector.shape_cast %50 : vector<16x16x8xf32> to vector<256x8xf32>
    %c0_72 = arith.constant 0 : index
    %c16_73 = arith.constant 16 : index
    %52 = vector.load %arg10[%c0_72, %c16_73] : memref<256x76xf32, #tpu.memory_space<vmem>>, vector<256x8xf32>
    tpu.vector_store %arg10[%c0_72, %c16_73], %51 {strides = array<i32>} : memref<256x76xf32, #tpu.memory_space<vmem>>, vector<256x8xf32>,
    %c1_74 = arith.constant 1 : index
    %c0_75 = arith.constant 0 : index
    %c0_76 = arith.constant 0 : index
    %53 = vector.load %arg8[%c1_74, %c0_75, %c0_76] : memref<18x18x8xf32, #tpu.memory_space<vmem>>, vector<16x16x8xf32>
    %54 = vector.shape_cast %53 : vector<16x16x8xf32> to vector<256x8xf32>
    %c0_77 = arith.constant 0 : index
    %c24_78 = arith.constant 24 : index
    %55 = vector.load %arg10[%c0_77, %c24_78] : memref<256x76xf32, #tpu.memory_space<vmem>>, vector<256x8xf32>
    tpu.vector_store %arg10[%c0_77, %c24_78], %54 {strides = array<i32>} : memref<256x76xf32, #tpu.memory_space<vmem>>, vector<256x8xf32>,
    %c1_79 = arith.constant 1 : index
    %c1_80 = arith.constant 1 : index
    %c0_81 = arith.constant 0 : index
    %56 = vector.load %arg8[%c1_79, %c1_80, %c0_81] : memref<18x18x8xf32, #tpu.memory_space<vmem>>, vector<16x16x8xf32>
    %57 = vector.shape_cast %56 : vector<16x16x8xf32> to vector<256x8xf32>
    %c0_82 = arith.constant 0 : index
    %c32_83 = arith.constant 32 : index
    %58 = vector.load %arg10[%c0_82, %c32_83] : memref<256x76xf32, #tpu.memory_space<vmem>>, vector<256x8xf32>
    tpu.vector_store %arg10[%c0_82, %c32_83], %57 {strides = array<i32>} : memref<256x76xf32, #tpu.memory_space<vmem>>, vector<256x8xf32>,
    %c1_84 = arith.constant 1 : index
    %c2_85 = arith.constant 2 : index
    %c0_86 = arith.constant 0 : index
    %59 = vector.load %arg8[%c1_84, %c2_85, %c0_86] : memref<18x18x8xf32, #tpu.memory_space<vmem>>, vector<16x16x8xf32>
    %60 = vector.shape_cast %59 : vector<16x16x8xf32> to vector<256x8xf32>
    %c0_87 = arith.constant 0 : index
    %c40 = arith.constant 40 : index
    %61 = vector.load %arg10[%c0_87, %c40] : memref<256x76xf32, #tpu.memory_space<vmem>>, vector<256x8xf32>
    tpu.vector_store %arg10[%c0_87, %c40], %60 {strides = array<i32>} : memref<256x76xf32, #tpu.memory_space<vmem>>, vector<256x8xf32>,
    %c2_88 = arith.constant 2 : index
    %c0_89 = arith.constant 0 : index
    %c0_90 = arith.constant 0 : index
    %62 = vector.load %arg8[%c2_88, %c0_89, %c0_90] : memref<18x18x8xf32, #tpu.memory_space<vmem>>, vector<16x16x8xf32>
    %63 = vector.shape_cast %62 : vector<16x16x8xf32> to vector<256x8xf32>
    %c0_91 = arith.constant 0 : index
    %c48 = arith.constant 48 : index
    %64 = vector.load %arg10[%c0_91, %c48] : memref<256x76xf32, #tpu.memory_space<vmem>>, vector<256x8xf32>
    tpu.vector_store %arg10[%c0_91, %c48], %63 {strides = array<i32>} : memref<256x76xf32, #tpu.memory_space<vmem>>, vector<256x8xf32>,
    %c2_92 = arith.constant 2 : index
    %c1_93 = arith.constant 1 : index
    %c0_94 = arith.constant 0 : index
    %65 = vector.load %arg8[%c2_92, %c1_93, %c0_94] : memref<18x18x8xf32, #tpu.memory_space<vmem>>, vector<16x16x8xf32>
    %66 = vector.shape_cast %65 : vector<16x16x8xf32> to vector<256x8xf32>
    %c0_95 = arith.constant 0 : index
    %c56 = arith.constant 56 : index
    %67 = vector.load %arg10[%c0_95, %c56] : memref<256x76xf32, #tpu.memory_space<vmem>>, vector<256x8xf32>
    tpu.vector_store %arg10[%c0_95, %c56], %66 {strides = array<i32>} : memref<256x76xf32, #tpu.memory_space<vmem>>, vector<256x8xf32>,
    %c2_96 = arith.constant 2 : index
    %c2_97 = arith.constant 2 : index
    %c0_98 = arith.constant 0 : index
    %68 = vector.load %arg8[%c2_96, %c2_97, %c0_98] : memref<18x18x8xf32, #tpu.memory_space<vmem>>, vector<16x16x8xf32>
    %69 = vector.shape_cast %68 : vector<16x16x8xf32> to vector<256x8xf32>
    %c0_99 = arith.constant 0 : index
    %c64 = arith.constant 64 : index
    %70 = vector.load %arg10[%c0_99, %c64] : memref<256x76xf32, #tpu.memory_space<vmem>>, vector<256x8xf32>
    tpu.vector_store %arg10[%c0_99, %c64], %69 {strides = array<i32>} : memref<256x76xf32, #tpu.memory_space<vmem>>, vector<256x8xf32>,
    %c1_100 = arith.constant 1 : index
    %c1_101 = arith.constant 1 : index
    %c0_102 = arith.constant 0 : index
    %71 = vector.load %arg7[%c1_100, %c1_101, %c0_102] : memref<18x18x4xf32, #tpu.memory_space<vmem>>, vector<16x16x4xf32>
    %72 = vector.shape_cast %71 : vector<16x16x4xf32> to vector<256x4xf32>
    %c0_103 = arith.constant 0 : index
    %c72 = arith.constant 72 : index
    %73 = vector.load %arg10[%c0_103, %c72] : memref<256x76xf32, #tpu.memory_space<vmem>>, vector<256x4xf32>
    tpu.vector_store %arg10[%c0_103, %c72], %72 {strides = array<i32>} : memref<256x76xf32, #tpu.memory_space<vmem>>, vector<256x4xf32>,
    %c0_104 = arith.constant 0 : index
    %c0_105 = arith.constant 0 : index
    %74 = vector.load %arg10[%c0_104, %c0_105] : memref<256x76xf32, #tpu.memory_space<vmem>>, vector<256x76xf32>
    %c0_106 = arith.constant 0 : index
    %c0_107 = arith.constant 0 : index
    %75 = vector.load %arg4[%c0_106, %c0_107] : memref<76x8xf32, #tpu.memory_space<vmem>>, vector<76x8xf32>
    %cst_108 = arith.constant dense<0.000000e+00> : vector<256x8xf32>
    %76 = tpu.matmul %74, %75, %cst_108 {dimension_numbers = #tpu.dot_dimension_numbers<[1], [0], [0], [1], [0, 0, 1, 1], [], []>} : vector<256x76xf32>, vector<76x8xf32>, vector<256x8xf32> -> vector<256x8xf32>
    %c0_109 = arith.constant 0 : index
    %c0_110 = arith.constant 0 : index
    %77 = vector.load %arg5[%c0_109, %c0_110] : memref<1x8xf32, #tpu.memory_space<vmem>>, vector<1x8xf32>
    %78 = vector.broadcast %77 : vector<1x8xf32> to vector<256x8xf32>
    %79 = arith.addf %76, %78 : vector<256x8xf32>
    %cst_111 = arith.constant 0.000000e+00 : f32
    %80 = vector.broadcast %cst_111 : f32 to vector<256x8xf32>
    %81 = arith.maximumf %79, %80 : vector<256x8xf32>
    %c0_112 = arith.constant 0 : index
    %c0_113 = arith.constant 0 : index
    %c0_114 = arith.constant 0 : index
    %82 = vector.load %arg6[%c0_112, %c0_113, %c0_114] : memref<1x256x8xf32, #tpu.memory_space<vmem>>, vector<1x256x8xf32>
    %83 = vector.shape_cast %82 : vector<1x256x8xf32> to vector<256x8xf32>
    %84 = vector.shape_cast %81 : vector<256x8xf32> to vector<1x256x8xf32>
    tpu.vector_store %arg6[%c0_112, %c0_113, %c0_114], %84 {strides = array<i32>} : memref<1x256x8xf32, #tpu.memory_space<vmem>>, vector<1x256x8xf32>,
    return
  }
  func.func @transform_0(%arg0: i32) -> (i32, i32, i32, i32) {
    %c0_i32 = arith.constant 0 : i32
    %c0_i32_0 = arith.constant 0 : i32
    %c0_i32_1 = arith.constant 0 : i32
    %c0_i32_2 = arith.constant 0 : i32
    return %arg0, %c0_i32, %c0_i32_0, %c0_i32_1 : i32, i32, i32, i32
  }
  func.func @transform_1(%arg0: i32) -> (i32, i32) {
    %c0_i32 = arith.constant 0 : i32
    %c0_i32_0 = arith.constant 0 : i32
    %c0_i32_1 = arith.constant 0 : i32
    return %c0_i32, %c0_i32_0 : i32, i32
  }
  func.func @transform_2(%arg0: i32) -> (i32, i32) {
    %c0_i32 = arith.constant 0 : i32
    %c0_i32_0 = arith.constant 0 : i32
    %c0_i32_1 = arith.constant 0 : i32
    return %c0_i32, %c0_i32_0 : i32, i32
  }
  func.func @transform_3(%arg0: i32) -> (i32, i32) {
    %c0_i32 = arith.constant 0 : i32
    %c0_i32_0 = arith.constant 0 : i32
    %c0_i32_1 = arith.constant 0 : i32
    return %c0_i32, %c0_i32_0 : i32, i32
  }
  func.func @transform_4(%arg0: i32) -> (i32, i32) {
    %c0_i32 = arith.constant 0 : i32
    %c0_i32_0 = arith.constant 0 : i32
    %c0_i32_1 = arith.constant 0 : i32
    return %c0_i32, %c0_i32_0 : i32, i32
  }
  func.func @transform_5(%arg0: i32) -> (i32, i32, i32) {
    %c0_i32 = arith.constant 0 : i32
    %c0_i32_0 = arith.constant 0 : i32
    %c0_i32_1 = arith.constant 0 : i32
    return %arg0, %c0_i32, %c0_i32_0 : i32, i32, i32
  }
}

</mosaic_0001>

<llo_original>
// kernel: tpu_custom_call.1
$region0: #{tpu_custom_call.1}
  #allocation0 [shape = 'u32[]', space=smem, size = 0x4, offset = 0x4, fixed_abs, tag = 'smem constant byte address 0x4 - core index']
  #allocation1 [shape = 'u32[144,128]{1,0:T(1,128)}', space=vmem, size = 0x12000, scoped, tag = 'internal scratch']
  #allocation2 [shape = 'f32[18,18,4]{2,1,0:T(8,128)}', space=vmem, size = 0x36000, scoped, tag = 'scratch operand']
  #allocation3 [shape = 'f32[18,18,8]{2,1,0:T(8,128)}', space=vmem, size = 0x36000, scoped, tag = 'scratch operand']
  #allocation4 [shape = 'f32[256,36]{1,0:T(8,128)}', space=vmem, size = 0x20000, scoped, tag = 'scratch operand']
  #allocation5 [shape = 'f32[256,76]{1,0:T(8,128)}', space=vmem, size = 0x20000, scoped, tag = 'scratch operand']
  %s0 = inlined_call_operand.vmem [shape: f32[2,16,16,4], index: 0, kind: input, shape index: {}]
  %s1 = inlined_call_operand.vmem [shape: f32[36,8], index: 1, kind: input, shape index: {}]
  %s2 = inlined_call_operand.vmem [shape: f32[1,8], index: 2, kind: input, shape index: {}]
  %s3 = inlined_call_operand.vmem [shape: f32[76,8], index: 3, kind: input, shape index: {}]
  %s4 = inlined_call_operand.vmem [shape: f32[1,8], index: 4, kind: input, shape index: {}]
  %s5 = inlined_call_operand.vmem [shape: f32[2,256,8], index: 5, kind: output, shape index: {}]
  %s6 = sld [smem:[#allocation0]]
  $region53: #{tpu_custom_call.1} parent=0
    _
  %s8 = ssub.s32 1, %s6
  %s9 = scalar_select 0, %s8, %s6
  loop: start=0, step=1, limit=4
  $region2: #{tpu_custom_call.1} parent=0 // loop_pre_header
    _
  $region3: #{tpu_custom_call.1} parent=0 // loop_header
    %s11 = sphi 0, %s15
    %p12 = scmp.ge.s32.totalorder %s11, 4
    %s21 = sphi 0, %s23
    %s24 = sphi 0, %s21
    %s25 = sphi 0, %s24
    %s41 = sphi 0, %s25
    %s45 = sphi 0, %s45
    %s47 = sphi 0, %s45
    %s48 = sphi 0, %s47
    %s62 = sphi 0, %s48
    %s66 = sphi 0, %s66
    %s68 = sphi 0, %s66
    %s69 = sphi 0, %s68
    %s83 = sphi 0, %s69
    %s87 = sphi 0, %s87
    %s89 = sphi 0, %s87
    %s90 = sphi 0, %s89
    %s104 = sphi 0, %s90
    %s108 = sphi 0, %s108
    %s110 = sphi 0, %s108
    %s111 = sphi 0, %s110
    %s125 = sphi 0, %s111
    %s131 = sphi 0, %s133
    %s134 = sphi 0, %s131
    %s135 = sphi 0, %s134
    %s151 = sphi 0, %s135
  $region4: #{tpu_custom_call.1} parent=0 // loop_header_branch
    %14 = sbr.rel (%p12) target = $region8
  $region5: #{tpu_custom_call.1} parent=0 // loop_body
    %s16 = ssub.s32 %s11, 1
    %s17 = ssub.s32 %s11, 2
    %s18 = sadd.s32 %s11, 1
    %s19 = ssub.s32 %s11, %s18
    %p20 = scmp.eq.s32.totalorder %s19, 0
    %s22 = sadd.s32 %s21, 1
    %s23 = scalar_select %p20, %s21, %s22
    %p26 = pneg %p20
    %p27 = scmp.eq.s32.totalorder %s11, 1
    %p28 = por %p26, %p27
    %p29 = scmp.ne.s32.totalorder %s21, %s24
    %p30 = scmp.eq.s32.totalorder %s11, 0
    %p31 = por %p29, %p30
    %p32 = scmp.ne.s32.totalorder %s21, %s24
    %p33 = scmp.eq.s32.totalorder %s16, 1
    %p34 = por %p32, %p33
    %p35 = scmp.ne.s32.totalorder %s24, %s25
    %p36 = scmp.eq.s32.totalorder %s16, 0
    %p37 = por %p35, %p36
    %p38 = scmp.ne.s32.totalorder %s24, %s25
    %p39 = scmp.eq.s32.totalorder %s17, 1
    %p40 = por %p38, %p39
    %p42 = scmp.ne.s32.totalorder %s25, %s41
    %p43 = scmp.eq.s32.totalorder %s17, 0
    %p44 = por %p42, %p43
    %s46 = sadd.s32 %s45, 1
    %p49 = scmp.eq.s32.totalorder %s11, 1
    %p50 = scmp.ne.s32.totalorder %s45, %s47
    %p51 = scmp.eq.s32.totalorder %s11, 0
    %p52 = por %p50, %p51
    %p53 = scmp.ne.s32.totalorder %s45, %s47
    %p54 = scmp.eq.s32.totalorder %s16, 1
    %p55 = por %p53, %p54
    %p56 = scmp.ne.s32.totalorder %s47, %s48
    %p57 = scmp.eq.s32.totalorder %s16, 0
    %p58 = por %p56, %p57
    %p59 = scmp.ne.s32.totalorder %s47, %s48
    %p60 = scmp.eq.s32.totalorder %s17, 1
    %p61 = por %p59, %p60
    %p63 = scmp.ne.s32.totalorder %s48, %s62
    %p64 = scmp.eq.s32.totalorder %s17, 0
    %p65 = por %p63, %p64
    %s67 = sadd.s32 %s66, 1
    %p70 = scmp.eq.s32.totalorder %s11, 1
    %p71 = scmp.ne.s32.totalorder %s66, %s68
    %p72 = scmp.eq.s32.totalorder %s11, 0
    %p73 = por %p71, %p72
    %p74 = scmp.ne.s32.totalorder %s66, %s68
    %p75 = scmp.eq.s32.totalorder %s16, 1
    %p76 = por %p74, %p75
    %p77 = scmp.ne.s32.totalorder %s68, %s69
    %p78 = scmp.eq.s32.totalorder %s16, 0
    %p79 = por %p77, %p78
    %p80 = scmp.ne.s32.totalorder %s68, %s69
    %p81 = scmp.eq.s32.totalorder %s17, 1
    %p82 = por %p80, %p81
    %p84 = scmp.ne.s32.totalorder %s69, %s83
    %p85 = scmp.eq.s32.totalorder %s17, 0
    %p86 = por %p84, %p85
    %s88 = sadd.s32 %s87, 1
    %p91 = scmp.eq.s32.totalorder %s11, 1
    %p92 = scmp.ne.s32.totalorder %s87, %s89
    %p93 = scmp.eq.s32.totalorder %s11, 0
    %p94 = por %p92, %p93
    %p95 = scmp.ne.s32.totalorder %s87, %s89
    %p96 = scmp.eq.s32.totalorder %s16, 1
    %p97 = por %p95, %p96
    %p98 = scmp.ne.s32.totalorder %s89, %s90
    %p99 = scmp.eq.s32.totalorder %s16, 0
    %p100 = por %p98, %p99
    %p101 = scmp.ne.s32.totalorder %s89, %s90
    %p102 = scmp.eq.s32.totalorder %s17, 1
    %p103 = por %p101, %p102
    %p105 = scmp.ne.s32.totalorder %s90, %s104
    %p106 = scmp.eq.s32.totalorder %s17, 0
    %p107 = por %p105, %p106
    %s109 = sadd.s32 %s108, 1
    %p112 = scmp.eq.s32.totalorder %s11, 1
    %p113 = scmp.ne.s32.totalorder %s108, %s110
    %p114 = scmp.eq.s32.totalorder %s11, 0
    %p115 = por %p113, %p114
    %p116 = scmp.ne.s32.totalorder %s108, %s110
    %p117 = scmp.eq.s32.totalorder %s16, 1
    %p118 = por %p116, %p117
    %p119 = scmp.ne.s32.totalorder %s110, %s111
    %p120 = scmp.eq.s32.totalorder %s16, 0
    %p121 = por %p119, %p120
    %p122 = scmp.ne.s32.totalorder %s110, %s111
    %p123 = scmp.eq.s32.totalorder %s17, 1
    %p124 = por %p122, %p123
    %p126 = scmp.ne.s32.totalorder %s111, %s125
    %p127 = scmp.eq.s32.totalorder %s17, 0
    %p128 = por %p126, %p127
    %s129 = ssub.s32 %s11, %s18
    %p130 = scmp.eq.s32.totalorder %s129, 0
    %s132 = sadd.s32 %s131, 1
    %s133 = scalar_select %p130, %s131, %s132
    %p136 = pneg %p130
    %p137 = scmp.eq.s32.totalorder %s11, 1
    %p138 = por %p136, %p137
    %p139 = scmp.ne.s32.totalorder %s131, %s134
    %p140 = scmp.eq.s32.totalorder %s11, 0
    %p141 = por %p139, %p140
    %p142 = scmp.ne.s32.totalorder %s131, %s134
    %p143 = scmp.eq.s32.totalorder %s16, 1
    %p144 = por %p142, %p143
    %p145 = scmp.ne.s32.totalorder %s134, %s135
    %p146 = scmp.eq.s32.totalorder %s16, 0
    %p147 = por %p145, %p146
    %p148 = scmp.ne.s32.totalorder %s134, %s135
    %p149 = scmp.eq.s32.totalorder %s17, 1
    %p150 = por %p148, %p149
    %p152 = scmp.ne.s32.totalorder %s135, %s151
    %p153 = scmp.eq.s32.totalorder %s17, 0
    %p154 = por %p152, %p153
    %p155 = scmp.le.s32.totalorder 1, %s11
    %p156 = scmp.lt.s32.totalorder %s11, 3
    %p157 = pnand %p155, %p156
    %p158 = pneg %p157
    // Predicated region
    $region9: #{tpu_custom_call.1} parent=5 // pred_check
      _
    $region10: #{tpu_custom_call.1} parent=5 // pred_check_branch
      %160 = sbr.rel (%p157) target = $region12
    $region11: #{tpu_custom_call.1} parent=5 // pred_region
      %s161 = ssub.s32 %s11, 1
      // Predicated region
      $region13: #{tpu_custom_call.1} parent=11 // pred_check
        %p162 = pneg %p58
      $region14: #{tpu_custom_call.1} parent=11 // pred_check_branch
        %164 = sbr.rel (%p162) target = $region16
      $region15: #{tpu_custom_call.1} parent=11 // pred_region
        _
      $region16: #{tpu_custom_call.1} parent=11 // pred_fallthru
        _
      // Predicated region
      $region17: #{tpu_custom_call.1} parent=11 // pred_check
        %p165 = pneg %p79
      $region18: #{tpu_custom_call.1} parent=11 // pred_check_branch
        %167 = sbr.rel (%p165) target = $region20
      $region19: #{tpu_custom_call.1} parent=11 // pred_region
        _
      $region20: #{tpu_custom_call.1} parent=11 // pred_fallthru
        _
      // Predicated region
      $region21: #{tpu_custom_call.1} parent=11 // pred_check
        %p168 = pneg %p100
      $region22: #{tpu_custom_call.1} parent=11 // pred_check_branch
        %170 = sbr.rel (%p168) target = $region24
      $region23: #{tpu_custom_call.1} parent=11 // pred_region
        _
      $region24: #{tpu_custom_call.1} parent=11 // pred_fallthru
        _
      // Predicated region
      $region25: #{tpu_custom_call.1} parent=11 // pred_check
        %p171 = pneg %p121
      $region26: #{tpu_custom_call.1} parent=11 // pred_check_branch
        %173 = sbr.rel (%p171) target = $region28
      $region27: #{tpu_custom_call.1} parent=11 // pred_region
        _
      $region28: #{tpu_custom_call.1} parent=11 // pred_fallthru
        _
    $region12: #{tpu_custom_call.1} parent=5 // pred_fallthru
      _
    %p174 = scmp.lt.s32.totalorder %s11, 2
    // Predicated region
    $region29: #{tpu_custom_call.1} parent=5 // pred_check
      %p175 = pneg %p174
    $region30: #{tpu_custom_call.1} parent=5 // pred_check_branch
      %177 = sbr.rel (%p175) target = $region32
    $region31: #{tpu_custom_call.1} parent=5 // pred_region
      // Predicated region
      $region33: #{tpu_custom_call.1} parent=31 // pred_check
        %p178 = pneg %p31
      $region34: #{tpu_custom_call.1} parent=31 // pred_check_branch
        %180 = sbr.rel (%p178) target = $region36
      $region35: #{tpu_custom_call.1} parent=31 // pred_region
        %p181 = scmp.lt.s32.totalorder %s11, 1
        %s182 = scalar_select %p181, %s11, 1
        %s183 = smul.addr %s182, 32
        %s184 = smul.addr %s183, 8
        %s185 = scalar_lea.vmem %s0, %s184
      $region36: #{tpu_custom_call.1} parent=31 // pred_fallthru
        _
    $region32: #{tpu_custom_call.1} parent=5 // pred_fallthru
      _
    %p186 = scmp.le.s32.totalorder 1, %s11
    %p187 = scmp.lt.s32.totalorder %s11, 3
    %p188 = pnand %p186, %p187
    %p189 = pneg %p188
    // Predicated region
    $region37: #{tpu_custom_call.1} parent=5 // pred_check
      _
    $region38: #{tpu_custom_call.1} parent=5 // pred_check_branch
      %191 = sbr.rel (%p188) target = $region40
    $region39: #{tpu_custom_call.1} parent=5 // pred_region
      %s192 = ssub.s32 %s11, 1
      %p193 = scmp.lt.s32.totalorder %s16, 1
      %s194 = scalar_select %p193, %s16, 1
      %s195 = smul.addr %s194, 32
      %s196 = smul.addr %s195, 8
      %s197 = scalar_lea.vmem %s0, %s196
      %p198 = pneg %p37
      %p199 = pneg %p34
      %p200 = pneg %p58
      %p201 = pneg %p55
      %p202 = pneg %p79
      %p203 = pneg %p76
      %p204 = pneg %p100
      %p205 = pneg %p97
      %p206 = pneg %p121
      %p207 = pneg %p118
      %p208 = pneg %p147
      %p209 = pneg %p144
      %p210 = scmp.lt.s32.totalorder %s16, 1
      %s211 = scalar_select %p210, %s16, 1
      %s212 = smul.addr %s211, 32
      %s213 = smul.addr %s212, 8
      %s214 = scalar_lea.vmem %s5, %s213
      %p215 = scmp.lt.s32.totalorder %s16, 1
      %s216 = scalar_select %p215, %s16, 1
      %s217 = smul.addr %s216, 32
      %s218 = smul.addr %s217, 8
      %s219 = scalar_lea.vmem %s0, %s218
      %p220 = scmp.lt.s32.totalorder %s16, 1
      %s221 = scalar_select %p220, %s16, 1
      %s222 = smul.addr %s221, 32
      %s223 = smul.addr %s222, 8
      %s224 = scalar_lea.vmem %s5, %s223
      %vm225 = vcmask 31744
      %226 = vst.msk [vmem:[#allocation2] sm:$0xff] %vm225, 0.0
      %227 = vst.msk [vmem:[#allocation2 + $0x8] sm:$0xff] %vm225, 0.0
      %vm228 = vcmask 25600
      %229 = vst.msk [vmem:[#allocation2 + $0x10] sm:$0x3] %vm228, 0.0
      %230 = vst.msk [vmem:[#allocation2 + $0x18] sm:$0xff] %vm225, 0.0
      %231 = vst.msk [vmem:[#allocation2 + $0x20] sm:$0xff] %vm225, 0.0
      %232 = vst.msk [vmem:[#allocation2 + $0x28] sm:$0x3] %vm228, 0.0
      %233 = vst.msk [vmem:[#allocation2 + $0x30] sm:$0xff] %vm225, 0.0
      %234 = vst.msk [vmem:[#allocation2 + $0x38] sm:$0xff] %vm225, 0.0
      %235 = vst.msk [vmem:[#allocation2 + $0x40] sm:$0x3] %vm228, 0.0
      %236 = vst.msk [vmem:[#allocation2 + $0x48] sm:$0xff] %vm225, 0.0
      %237 = vst.msk [vmem:[#allocation2 + $0x50] sm:$0xff] %vm225, 0.0
      %238 = vst.msk [vmem:[#allocation2 + $0x58] sm:$0x3] %vm228, 0.0
      %239 = vst.msk [vmem:[#allocation2 + $0x60] sm:$0xff] %vm225, 0.0
      %240 = vst.msk [vmem:[#allocation2 + $0x68] sm:$0xff] %vm225, 0.0
      %241 = vst.msk [vmem:[#allocation2 + $0x70] sm:$0x3] %vm228, 0.0
      %242 = vst.msk [vmem:[#allocation2 + $0x78] sm:$0xff] %vm225, 0.0
      %243 = vst.msk [vmem:[#allocation2 + $0x80] sm:$0xff] %vm225, 0.0
      %244 = vst.msk [vmem:[#allocation2 + $0x88] sm:$0x3] %vm228, 0.0
      %245 = vst.msk [vmem:[#allocation2 + $0x90] sm:$0xff] %vm225, 0.0
      %246 = vst.msk [vmem:[#allocation2 + $0x98] sm:$0xff] %vm225, 0.0
      %247 = vst.msk [vmem:[#allocation2 + $0xa0] sm:$0x3] %vm228, 0.0
      %248 = vst.msk [vmem:[#allocation2 + $0xa8] sm:$0xff] %vm225, 0.0
      %249 = vst.msk [vmem:[#allocation2 + $0xb0] sm:$0xff] %vm225, 0.0
      %250 = vst.msk [vmem:[#allocation2 + $0xb8] sm:$0x3] %vm228, 0.0
      %251 = vst.msk [vmem:[#allocation2 + $0xc0] sm:$0xff] %vm225, 0.0
      %252 = vst.msk [vmem:[#allocation2 + $0xc8] sm:$0xff] %vm225, 0.0
      %253 = vst.msk [vmem:[#allocation2 + $0xd0] sm:$0x3] %vm228, 0.0
      %254 = vst.msk [vmem:[#allocation2 + $0xd8] sm:$0xff] %vm225, 0.0
      %255 = vst.msk [vmem:[#allocation2 + $0xe0] sm:$0xff] %vm225, 0.0
      %256 = vst.msk [vmem:[#allocation2 + $0xe8] sm:$0x3] %vm228, 0.0
      %257 = vst.msk [vmem:[#allocation2 + $0xf0] sm:$0xff] %vm225, 0.0
      %258 = vst.msk [vmem:[#allocation2 + $0xf8] sm:$0xff] %vm225, 0.0
      %259 = vst.msk [vmem:[#allocation2 + $0x100] sm:$0x3] %vm228, 0.0
      %260 = vst.msk [vmem:[#allocation2 + $0x108] sm:$0xff] %vm225, 0.0
      %261 = vst.msk [vmem:[#allocation2 + $0x110] sm:$0xff] %vm225, 0.0
      %262 = vst.msk [vmem:[#allocation2 + $0x118] sm:$0x3] %vm228, 0.0
      %263 = vst.msk [vmem:[#allocation2 + $0x120] sm:$0xff] %vm225, 0.0
      %264 = vst.msk [vmem:[#allocation2 + $0x128] sm:$0xff] %vm225, 0.0
      %265 = vst.msk [vmem:[#allocation2 + $0x130] sm:$0x3] %vm228, 0.0
      %266 = vst.msk [vmem:[#allocation2 + $0x138] sm:$0xff] %vm225, 0.0
      %267 = vst.msk [vmem:[#allocation2 + $0x140] sm:$0xff] %vm225, 0.0
      %268 = vst.msk [vmem:[#allocation2 + $0x148] sm:$0x3] %vm228, 0.0
      %269 = vst.msk [vmem:[#allocation2 + $0x150] sm:$0xff] %vm225, 0.0
      %270 = vst.msk [vmem:[#allocation2 + $0x158] sm:$0xff] %vm225, 0.0
      %271 = vst.msk [vmem:[#allocation2 + $0x160] sm:$0x3] %vm228, 0.0
      %272 = vst.msk [vmem:[#allocation2 + $0x168] sm:$0xff] %vm225, 0.0
      %273 = vst.msk [vmem:[#allocation2 + $0x170] sm:$0xff] %vm225, 0.0
      %274 = vst.msk [vmem:[#allocation2 + $0x178] sm:$0x3] %vm228, 0.0
      %275 = vst.msk [vmem:[#allocation2 + $0x180] sm:$0xff] %vm225, 0.0
      %276 = vst.msk [vmem:[#allocation2 + $0x188] sm:$0xff] %vm225, 0.0
      %277 = vst.msk [vmem:[#allocation2 + $0x190] sm:$0x3] %vm228, 0.0
      %278 = vst.msk [vmem:[#allocation2 + $0x198] sm:$0xff] %vm225, 0.0
      %279 = vst.msk [vmem:[#allocation2 + $0x1a0] sm:$0xff] %vm225, 0.0
      %280 = vst.msk [vmem:[#allocation2 + $0x1a8] sm:$0x3] %vm228, 0.0
      %vm281 = vcmask 64512
      %282 = vst.msk [vmem:[#allocation3] sm:$0xff] %vm281, 0.0
      %283 = vst.msk [vmem:[#allocation3 + $0x8] sm:$0xff] %vm281, 0.0
      %vm284 = vcmask 58368
      %285 = vst.msk [vmem:[#allocation3 + $0x10] sm:$0x3] %vm284, 0.0
      %286 = vst.msk [vmem:[#allocation3 + $0x18] sm:$0xff] %vm281, 0.0
      %287 = vst.msk [vmem:[#allocation3 + $0x20] sm:$0xff] %vm281, 0.0
      %288 = vst.msk [vmem:[#allocation3 + $0x28] sm:$0x3] %vm284, 0.0
      %289 = vst.msk [vmem:[#allocation3 + $0x30] sm:$0xff] %vm281, 0.0
      %290 = vst.msk [vmem:[#allocation3 + $0x38] sm:$0xff] %vm281, 0.0
      %291 = vst.msk [vmem:[#allocation3 + $0x40] sm:$0x3] %vm284, 0.0
      %292 = vst.msk [vmem:[#allocation3 + $0x48] sm:$0xff] %vm281, 0.0
      %293 = vst.msk [vmem:[#allocation3 + $0x50] sm:$0xff] %vm281, 0.0
      %294 = vst.msk [vmem:[#allocation3 + $0x58] sm:$0x3] %vm284, 0.0
      %295 = vst.msk [vmem:[#allocation3 + $0x60] sm:$0xff] %vm281, 0.0
      %296 = vst.msk [vmem:[#allocation3 + $0x68] sm:$0xff] %vm281, 0.0
      %297 = vst.msk [vmem:[#allocation3 + $0x70] sm:$0x3] %vm284, 0.0
      %298 = vst.msk [vmem:[#allocation3 + $0x78] sm:$0xff] %vm281, 0.0
      %299 = vst.msk [vmem:[#allocation3 + $0x80] sm:$0xff] %vm281, 0.0
      %300 = vst.msk [vmem:[#allocation3 + $0x88] sm:$0x3] %vm284, 0.0
      %301 = vst.msk [vmem:[#allocation3 + $0x90] sm:$0xff] %vm281, 0.0
      %302 = vst.msk [vmem:[#allocation3 + $0x98] sm:$0xff] %vm281, 0.0
      %303 = vst.msk [vmem:[#allocation3 + $0xa0] sm:$0x3] %vm284, 0.0
      %304 = vst.msk [vmem:[#allocation3 + $0xa8] sm:$0xff] %vm281, 0.0
      %305 = vst.msk [vmem:[#allocation3 + $0xb0] sm:$0xff] %vm281, 0.0
      %306 = vst.msk [vmem:[#allocation3 + $0xb8] sm:$0x3] %vm284, 0.0
      %307 = vst.msk [vmem:[#allocation3 + $0xc0] sm:$0xff] %vm281, 0.0
      %308 = vst.msk [vmem:[#allocation3 + $0xc8] sm:$0xff] %vm281, 0.0
      %309 = vst.msk [vmem:[#allocation3 + $0xd0] sm:$0x3] %vm284, 0.0
      %310 = vst.msk [vmem:[#allocation3 + $0xd8] sm:$0xff] %vm281, 0.0
      %311 = vst.msk [vmem:[#allocation3 + $0xe0] sm:$0xff] %vm281, 0.0
      %312 = vst.msk [vmem:[#allocation3 + $0xe8] sm:$0x3] %vm284, 0.0
      %313 = vst.msk [vmem:[#allocation3 + $0xf0] sm:$0xff] %vm281, 0.0
      %314 = vst.msk [vmem:[#allocation3 + $0xf8] sm:$0xff] %vm281, 0.0
      %315 = vst.msk [vmem:[#allocation3 + $0x100] sm:$0x3] %vm284, 0.0
      %316 = vst.msk [vmem:[#allocation3 + $0x108] sm:$0xff] %vm281, 0.0
      %317 = vst.msk [vmem:[#allocation3 + $0x110] sm:$0xff] %vm281, 0.0
      %318 = vst.msk [vmem:[#allocation3 + $0x118] sm:$0x3] %vm284, 0.0
      %319 = vst.msk [vmem:[#allocation3 + $0x120] sm:$0xff] %vm281, 0.0
      %320 = vst.msk [vmem:[#allocation3 + $0x128] sm:$0xff] %vm281, 0.0
      %321 = vst.msk [vmem:[#allocation3 + $0x130] sm:$0x3] %vm284, 0.0
      %322 = vst.msk [vmem:[#allocation3 + $0x138] sm:$0xff] %vm281, 0.0
      %323 = vst.msk [vmem:[#allocation3 + $0x140] sm:$0xff] %vm281, 0.0
      %324 = vst.msk [vmem:[#allocation3 + $0x148] sm:$0x3] %vm284, 0.0
      %325 = vst.msk [vmem:[#allocation3 + $0x150] sm:$0xff] %vm281, 0.0
      %326 = vst.msk [vmem:[#allocation3 + $0x158] sm:$0xff] %vm281, 0.0
      %327 = vst.msk [vmem:[#allocation3 + $0x160] sm:$0x3] %vm284, 0.0
      %328 = vst.msk [vmem:[#allocation3 + $0x168] sm:$0xff] %vm281, 0.0
      %329 = vst.msk [vmem:[#allocation3 + $0x170] sm:$0xff] %vm281, 0.0
      %330 = vst.msk [vmem:[#allocation3 + $0x178] sm:$0x3] %vm284, 0.0
      %331 = vst.msk [vmem:[#allocation3 + $0x180] sm:$0xff] %vm281, 0.0
      %332 = vst.msk [vmem:[#allocation3 + $0x188] sm:$0xff] %vm281, 0.0
      %333 = vst.msk [vmem:[#allocation3 + $0x190] sm:$0x3] %vm284, 0.0
      %334 = vst.msk [vmem:[#allocation3 + $0x198] sm:$0xff] %vm281, 0.0
      %335 = vst.msk [vmem:[#allocation3 + $0x1a0] sm:$0xff] %vm281, 0.0
      %336 = vst.msk [vmem:[#allocation3 + $0x1a8] sm:$0x3] %vm284, 0.0
      %v337 = vld [vmem:[%s219] sm:$0xff]
      %v338 = vld [vmem:[%s219 + $0x8] sm:$0xff]
      %v339 = vld [vmem:[%s219 + $0x10] sm:$0xff]
      %v340 = vld [vmem:[%s219 + $0x18] sm:$0xff]
      %v341 = vld [vmem:[%s219 + $0x20] sm:$0xff]
      %v342 = vld [vmem:[%s219 + $0x28] sm:$0xff]
      %v343 = vld [vmem:[%s219 + $0x30] sm:$0xff]
      %v344 = vld [vmem:[%s219 + $0x38] sm:$0xff]
      %v345 = vld [vmem:[%s219 + $0x40] sm:$0xff]
      %v346 = vld [vmem:[%s219 + $0x48] sm:$0xff]
      %v347 = vld [vmem:[%s219 + $0x50] sm:$0xff]
      %v348 = vld [vmem:[%s219 + $0x58] sm:$0xff]
      %v349 = vld [vmem:[%s219 + $0x60] sm:$0xff]
      %v350 = vld [vmem:[%s219 + $0x68] sm:$0xff]
      %v351 = vld [vmem:[%s219 + $0x70] sm:$0xff]
      %v352 = vld [vmem:[%s219 + $0x78] sm:$0xff]
      %v353 = vld [vmem:[%s219 + $0x80] sm:$0xff]
      %v354 = vld [vmem:[%s219 + $0x88] sm:$0xff]
      %v355 = vld [vmem:[%s219 + $0x90] sm:$0xff]
      %v356 = vld [vmem:[%s219 + $0x98] sm:$0xff]
      %v357 = vld [vmem:[%s219 + $0xa0] sm:$0xff]
      %v358 = vld [vmem:[%s219 + $0xa8] sm:$0xff]
      %v359 = vld [vmem:[%s219 + $0xb0] sm:$0xff]
      %v360 = vld [vmem:[%s219 + $0xb8] sm:$0xff]
      %v361 = vld [vmem:[%s219 + $0xc0] sm:$0xff]
      %v362 = vld [vmem:[%s219 + $0xc8] sm:$0xff]
      %v363 = vld [vmem:[%s219 + $0xd0] sm:$0xff]
      %v364 = vld [vmem:[%s219 + $0xd8] sm:$0xff]
      %v365 = vld [vmem:[%s219 + $0xe0] sm:$0xff]
      %v366 = vld [vmem:[%s219 + $0xe8] sm:$0xff]
      %v367 = vld [vmem:[%s219 + $0xf0] sm:$0xff]
      %v368 = vld [vmem:[%s219 + $0xf8] sm:$0xff]
      %s369 = scalar_lea.vmem [#allocation2], 24
      %370 = vst.msk [vmem:[%s369 + $0x1] sm:$0xff] %vm225, %v337
      %371 = vst.msk [vmem:[%s369 + $0x9] sm:$0xff] %vm225, %v338
      %372 = vst.msk [vmem:[%s369 + $0x19] sm:$0xff] %vm225, %v339
      %373 = vst.msk [vmem:[%s369 + $0x21] sm:$0xff] %vm225, %v340
      %374 = vst.msk [vmem:[%s369 + $0x31] sm:$0xff] %vm225, %v341
      %375 = vst.msk [vmem:[%s369 + $0x39] sm:$0xff] %vm225, %v342
      %376 = vst.msk [vmem:[%s369 + $0x49] sm:$0xff] %vm225, %v343
      %377 = vst.msk [vmem:[%s369 + $0x51] sm:$0xff] %vm225, %v344
      %378 = vst.msk [vmem:[%s369 + $0x61] sm:$0xff] %vm225, %v345
      %379 = vst.msk [vmem:[%s369 + $0x69] sm:$0xff] %vm225, %v346
      %380 = vst.msk [vmem:[%s369 + $0x79] sm:$0xff] %vm225, %v347
      %381 = vst.msk [vmem:[%s369 + $0x81] sm:$0xff] %vm225, %v348
      %382 = vst.msk [vmem:[%s369 + $0x91] sm:$0xff] %vm225, %v349
      %383 = vst.msk [vmem:[%s369 + $0x99] sm:$0xff] %vm225, %v350
      %384 = vst.msk [vmem:[%s369 + $0xa9] sm:$0xff] %vm225, %v351
      %385 = vst.msk [vmem:[%s369 + $0xb1] sm:$0xff] %vm225, %v352
      %386 = vst.msk [vmem:[%s369 + $0xc1] sm:$0xff] %vm225, %v353
      %387 = vst.msk [vmem:[%s369 + $0xc9] sm:$0xff] %vm225, %v354
      %388 = vst.msk [vmem:[%s369 + $0xd9] sm:$0xff] %vm225, %v355
      %389 = vst.msk [vmem:[%s369 + $0xe1] sm:$0xff] %vm225, %v356
      %390 = vst.msk [vmem:[%s369 + $0xf1] sm:$0xff] %vm225, %v357
      %391 = vst.msk [vmem:[%s369 + $0xf9] sm:$0xff] %vm225, %v358
      %392 = vst.msk [vmem:[%s369 + $0x109] sm:$0xff] %vm225, %v359
      %393 = vst.msk [vmem:[%s369 + $0x111] sm:$0xff] %vm225, %v360
      %394 = vst.msk [vmem:[%s369 + $0x121] sm:$0xff] %vm225, %v361
      %395 = vst.msk [vmem:[%s369 + $0x129] sm:$0xff] %vm225, %v362
      %396 = vst.msk [vmem:[%s369 + $0x139] sm:$0xff] %vm225, %v363
      %397 = vst.msk [vmem:[%s369 + $0x141] sm:$0xff] %vm225, %v364
      %398 = vst.msk [vmem:[%s369 + $0x151] sm:$0xff] %vm225, %v365
      %399 = vst.msk [vmem:[%s369 + $0x159] sm:$0xff] %vm225, %v366
      %400 = vst.msk [vmem:[%s369 + $0x169] sm:$0xff] %vm225, %v367
      %401 = vst.msk [vmem:[%s369 + $0x171] sm:$0xff] %vm225, %v368
      %v402 = vld [vmem:[#allocation2] sm:$0xff]
      %v403 = vld [vmem:[#allocation2 + $0x8] sm:$0xff]
      %v404 = vld [vmem:[#allocation2 + $0x18] sm:$0xff]
      %v405 = vld [vmem:[#allocation2 + $0x20] sm:$0xff]
      %v406 = vld [vmem:[#allocation2 + $0x30] sm:$0xff]
      %v407 = vld [vmem:[#allocation2 + $0x38] sm:$0xff]
      %v408 = vld [vmem:[#allocation2 + $0x48] sm:$0xff]
      %v409 = vld [vmem:[#allocation2 + $0x50] sm:$0xff]
      %v410 = vld [vmem:[#allocation2 + $0x60] sm:$0xff]
      %v411 = vld [vmem:[#allocation2 + $0x68] sm:$0xff]
      %v412 = vld [vmem:[#allocation2 + $0x78] sm:$0xff]
      %v413 = vld [vmem:[#allocation2 + $0x80] sm:$0xff]
      %v414 = vld [vmem:[#allocation2 + $0x90] sm:$0xff]
      %v415 = vld [vmem:[#allocation2 + $0x98] sm:$0xff]
      %v416 = vld [vmem:[#allocation2 + $0xa8] sm:$0xff]
      %v417 = vld [vmem:[#allocation2 + $0xb0] sm:$0xff]
      %v418 = vld [vmem:[#allocation2 + $0xc0] sm:$0xff]
      %v419 = vld [vmem:[#allocation2 + $0xc8] sm:$0xff]
      %v420 = vld [vmem:[#allocation2 + $0xd8] sm:$0xff]
      %v421 = vld [vmem:[#allocation2 + $0xe0] sm:$0xff]
      %v422 = vld [vmem:[#allocation2 + $0xf0] sm:$0xff]
      %v423 = vld [vmem:[#allocation2 + $0xf8] sm:$0xff]
      %v424 = vld [vmem:[#allocation2 + $0x108] sm:$0xff]
      %v425 = vld [vmem:[#allocation2 + $0x110] sm:$0xff]
      %v426 = vld [vmem:[#allocation2 + $0x120] sm:$0xff]
      %v427 = vld [vmem:[#allocation2 + $0x128] sm:$0xff]
      %v428 = vld [vmem:[#allocation2 + $0x138] sm:$0xff]
      %v429 = vld [vmem:[#allocation2 + $0x140] sm:$0xff]
      %v430 = vld [vmem:[#allocation2 + $0x150] sm:$0xff]
      %v431 = vld [vmem:[#allocation2 + $0x158] sm:$0xff]
      %v432 = vld [vmem:[#allocation2 + $0x168] sm:$0xff]
      %v433 = vld [vmem:[#allocation2 + $0x170] sm:$0xff]
      %434 = vst.msk [vmem:[#allocation4] sm:$0xff] %vm225, %v402
      %435 = vst.msk [vmem:[#allocation4 + $0x8] sm:$0xff] %vm225, %v403
      %436 = vst.msk [vmem:[#allocation4 + $0x10] sm:$0xff] %vm225, %v404
      %437 = vst.msk [vmem:[#allocation4 + $0x18] sm:$0xff] %vm225, %v405
      %438 = vst.msk [vmem:[#allocation4 + $0x20] sm:$0xff] %vm225, %v406
      %439 = vst.msk [vmem:[#allocation4 + $0x28] sm:$0xff] %vm225, %v407
      %440 = vst.msk [vmem:[#allocation4 + $0x30] sm:$0xff] %vm225, %v408
      %441 = vst.msk [vmem:[#allocation4 + $0x38] sm:$0xff] %vm225, %v409
      %442 = vst.msk [vmem:[#allocation4 + $0x40] sm:$0xff] %vm225, %v410
      %443 = vst.msk [vmem:[#allocation4 + $0x48] sm:$0xff] %vm225, %v411
      %444 = vst.msk [vmem:[#allocation4 + $0x50] sm:$0xff] %vm225, %v412
      %445 = vst.msk [vmem:[#allocation4 + $0x58] sm:$0xff] %vm225, %v413
      %446 = vst.msk [vmem:[#allocation4 + $0x60] sm:$0xff] %vm225, %v414
      %447 = vst.msk [vmem:[#allocation4 + $0x68] sm:$0xff] %vm225, %v415
      %448 = vst.msk [vmem:[#allocation4 + $0x70] sm:$0xff] %vm225, %v416
      %449 = vst.msk [vmem:[#allocation4 + $0x78] sm:$0xff] %vm225, %v417
      %450 = vst.msk [vmem:[#allocation4 + $0x80] sm:$0xff] %vm225, %v418
      %451 = vst.msk [vmem:[#allocation4 + $0x88] sm:$0xff] %vm225, %v419
      %452 = vst.msk [vmem:[#allocation4 + $0x90] sm:$0xff] %vm225, %v420
      %453 = vst.msk [vmem:[#allocation4 + $0x98] sm:$0xff] %vm225, %v421
      %454 = vst.msk [vmem:[#allocation4 + $0xa0] sm:$0xff] %vm225, %v422
      %455 = vst.msk [vmem:[#allocation4 + $0xa8] sm:$0xff] %vm225, %v423
      %456 = vst.msk [vmem:[#allocation4 + $0xb0] sm:$0xff] %vm225, %v424
      %457 = vst.msk [vmem:[#allocation4 + $0xb8] sm:$0xff] %vm225, %v425
      %458 = vst.msk [vmem:[#allocation4 + $0xc0] sm:$0xff] %vm225, %v426
      %459 = vst.msk [vmem:[#allocation4 + $0xc8] sm:$0xff] %vm225, %v427
      %460 = vst.msk [vmem:[#allocation4 + $0xd0] sm:$0xff] %vm225, %v428
      %461 = vst.msk [vmem:[#allocation4 + $0xd8] sm:$0xff] %vm225, %v429
      %462 = vst.msk [vmem:[#allocation4 + $0xe0] sm:$0xff] %vm225, %v430
      %463 = vst.msk [vmem:[#allocation4 + $0xe8] sm:$0xff] %vm225, %v431
      %464 = vst.msk [vmem:[#allocation4 + $0xf0] sm:$0xff] %vm225, %v432
      %465 = vst.msk [vmem:[#allocation4 + $0xf8] sm:$0xff] %vm225, %v433
      %v466 = vld [vmem:[#allocation2 + $0x1] sm:$0xff]
      %v467 = vld [vmem:[#allocation2 + $0x9] sm:$0xff]
      %v468 = vld [vmem:[#allocation2 + $0x19] sm:$0xff]
      %v469 = vld [vmem:[#allocation2 + $0x21] sm:$0xff]
      %v470 = vld [vmem:[#allocation2 + $0x31] sm:$0xff]
      %v471 = vld [vmem:[#allocation2 + $0x39] sm:$0xff]
      %v472 = vld [vmem:[#allocation2 + $0x49] sm:$0xff]
      %v473 = vld [vmem:[#allocation2 + $0x51] sm:$0xff]
      %v474 = vld [vmem:[#allocation2 + $0x61] sm:$0xff]
      %v475 = vld [vmem:[#allocation2 + $0x69] sm:$0xff]
      %v476 = vld [vmem:[#allocation2 + $0x79] sm:$0xff]
      %v477 = vld [vmem:[#allocation2 + $0x81] sm:$0xff]
      %v478 = vld [vmem:[#allocation2 + $0x91] sm:$0xff]
      %v479 = vld [vmem:[#allocation2 + $0x99] sm:$0xff]
      %v480 = vld [vmem:[#allocation2 + $0xa9] sm:$0xff]
      %v481 = vld [vmem:[#allocation2 + $0xb1] sm:$0xff]
      %v482 = vld [vmem:[#allocation2 + $0xc1] sm:$0xff]
      %v483 = vld [vmem:[#allocation2 + $0xc9] sm:$0xff]
      %v484 = vld [vmem:[#allocation2 + $0xd9] sm:$0xff]
      %v485 = vld [vmem:[#allocation2 + $0xe1] sm:$0xff]
      %v486 = vld [vmem:[#allocation2 + $0xf1] sm:$0xff]
      %v487 = vld [vmem:[#allocation2 + $0xf9] sm:$0xff]
      %v488 = vld [vmem:[#allocation2 + $0x109] sm:$0xff]
      %v489 = vld [vmem:[#allocation2 + $0x111] sm:$0xff]
      %v490 = vld [vmem:[#allocation2 + $0x121] sm:$0xff]
      %v491 = vld [vmem:[#allocation2 + $0x129] sm:$0xff]
      %v492 = vld [vmem:[#allocation2 + $0x139] sm:$0xff]
      %v493 = vld [vmem:[#allocation2 + $0x141] sm:$0xff]
      %v494 = vld [vmem:[#allocation2 + $0x151] sm:$0xff]
      %v495 = vld [vmem:[#allocation2 + $0x159] sm:$0xff]
      %v496 = vld [vmem:[#allocation2 + $0x169] sm:$0xff]
      %v497 = vld [vmem:[#allocation2 + $0x171] sm:$0xff]
      %530 = vrot.lane.b32.xlu0 %v466, 4
      %v531 = vpop.permute.xlu0 %530
      %532 = vrot.lane.b32.xlu0 %v467, 4
      %v533 = vpop.permute.xlu0 %532
      %534 = vrot.lane.b32.xlu0 %v468, 4
      %v535 = vpop.permute.xlu0 %534
      %536 = vrot.lane.b32.xlu0 %v469, 4
      %v537 = vpop.permute.xlu0 %536
      %538 = vrot.lane.b32.xlu0 %v470, 4
      %v539 = vpop.permute.xlu0 %538
      %540 = vrot.lane.b32.xlu0 %v471, 4
      %v541 = vpop.permute.xlu0 %540
      %542 = vrot.lane.b32.xlu0 %v472, 4
      %v543 = vpop.permute.xlu0 %542
      %544 = vrot.lane.b32.xlu0 %v473, 4
      %v545 = vpop.permute.xlu0 %544
      %546 = vrot.lane.b32.xlu0 %v474, 4
      %v547 = vpop.permute.xlu0 %546
      %548 = vrot.lane.b32.xlu0 %v475, 4
      %v549 = vpop.permute.xlu0 %548
      %550 = vrot.lane.b32.xlu0 %v476, 4
      %v551 = vpop.permute.xlu0 %550
      %552 = vrot.lane.b32.xlu0 %v477, 4
      %v553 = vpop.permute.xlu0 %552
      %554 = vrot.lane.b32.xlu0 %v478, 4
      %v555 = vpop.permute.xlu0 %554
      %556 = vrot.lane.b32.xlu0 %v479, 4
      %v557 = vpop.permute.xlu0 %556
      %558 = vrot.lane.b32.xlu0 %v480, 4
      %v559 = vpop.permute.xlu0 %558
      %560 = vrot.lane.b32.xlu0 %v481, 4
      %v561 = vpop.permute.xlu0 %560
      %562 = vrot.lane.b32.xlu0 %v482, 4
      %v563 = vpop.permute.xlu0 %562
      %564 = vrot.lane.b32.xlu0 %v483, 4
      %v565 = vpop.permute.xlu0 %564
      %566 = vrot.lane.b32.xlu0 %v484, 4
      %v567 = vpop.permute.xlu0 %566
      %568 = vrot.lane.b32.xlu0 %v485, 4
      %v569 = vpop.permute.xlu0 %568
      %570 = vrot.lane.b32.xlu0 %v486, 4
      %v571 = vpop.permute.xlu0 %570
      %572 = vrot.lane.b32.xlu0 %v487, 4
      %v573 = vpop.permute.xlu0 %572
      %574 = vrot.lane.b32.xlu0 %v488, 4
      %v575 = vpop.permute.xlu0 %574
      %576 = vrot.lane.b32.xlu0 %v489, 4
      %v577 = vpop.permute.xlu0 %576
      %578 = vrot.lane.b32.xlu0 %v490, 4
      %v579 = vpop.permute.xlu0 %578
      %580 = vrot.lane.b32.xlu0 %v491, 4
      %v581 = vpop.permute.xlu0 %580
      %582 = vrot.lane.b32.xlu0 %v492, 4
      %v583 = vpop.permute.xlu0 %582
      %584 = vrot.lane.b32.xlu0 %v493, 4
      %v585 = vpop.permute.xlu0 %584
      %586 = vrot.lane.b32.xlu0 %v494, 4
      %v587 = vpop.permute.xlu0 %586
      %588 = vrot.lane.b32.xlu0 %v495, 4
      %v589 = vpop.permute.xlu0 %588
      %590 = vrot.lane.b32.xlu0 %v496, 4
      %v591 = vpop.permute.xlu0 %590
      %592 = vrot.lane.b32.xlu0 %v497, 4
      %v593 = vpop.permute.xlu0 %592
      %vm626 = vcmask 64544
      %627 = vst.msk [vmem:[#allocation4] sm:$0xff] %vm626, %v531
      %628 = vst.msk [vmem:[#allocation4 + $0x8] sm:$0xff] %vm626, %v533
      %629 = vst.msk [vmem:[#allocation4 + $0x10] sm:$0xff] %vm626, %v535
      %630 = vst.msk [vmem:[#allocation4 + $0x18] sm:$0xff] %vm626, %v537
      %631 = vst.msk [vmem:[#allocation4 + $0x20] sm:$0xff] %vm626, %v539
      %632 = vst.msk [vmem:[#allocation4 + $0x28] sm:$0xff] %vm626, %v541
      %633 = vst.msk [vmem:[#allocation4 + $0x30] sm:$0xff] %vm626, %v543
      %634 = vst.msk [vmem:[#allocation4 + $0x38] sm:$0xff] %vm626, %v545
      %635 = vst.msk [vmem:[#allocation4 + $0x40] sm:$0xff] %vm626, %v547
      %636 = vst.msk [vmem:[#allocation4 + $0x48] sm:$0xff] %vm626, %v549
      %637 = vst.msk [vmem:[#allocation4 + $0x50] sm:$0xff] %vm626, %v551
      %638 = vst.msk [vmem:[#allocation4 + $0x58] sm:$0xff] %vm626, %v553
      %639 = vst.msk [vmem:[#allocation4 + $0x60] sm:$0xff] %vm626, %v555
      %640 = vst.msk [vmem:[#allocation4 + $0x68] sm:$0xff] %vm626, %v557
      %641 = vst.msk [vmem:[#allocation4 + $0x70] sm:$0xff] %vm626, %v559
      %642 = vst.msk [vmem:[#allocation4 + $0x78] sm:$0xff] %vm626, %v561
      %643 = vst.msk [vmem:[#allocation4 + $0x80] sm:$0xff] %vm626, %v563
      %644 = vst.msk [vmem:[#allocation4 + $0x88] sm:$0xff] %vm626, %v565
      %645 = vst.msk [vmem:[#allocation4 + $0x90] sm:$0xff] %vm626, %v567
      %646 = vst.msk [vmem:[#allocation4 + $0x98] sm:$0xff] %vm626, %v569
      %647 = vst.msk [vmem:[#allocation4 + $0xa0] sm:$0xff] %vm626, %v571
      %648 = vst.msk [vmem:[#allocation4 + $0xa8] sm:$0xff] %vm626, %v573
      %649 = vst.msk [vmem:[#allocation4 + $0xb0] sm:$0xff] %vm626, %v575
      %650 = vst.msk [vmem:[#allocation4 + $0xb8] sm:$0xff] %vm626, %v577
      %651 = vst.msk [vmem:[#allocation4 + $0xc0] sm:$0xff] %vm626, %v579
      %652 = vst.msk [vmem:[#allocation4 + $0xc8] sm:$0xff] %vm626, %v581
      %653 = vst.msk [vmem:[#allocation4 + $0xd0] sm:$0xff] %vm626, %v583
      %654 = vst.msk [vmem:[#allocation4 + $0xd8] sm:$0xff] %vm626, %v585
      %655 = vst.msk [vmem:[#allocation4 + $0xe0] sm:$0xff] %vm626, %v587
      %656 = vst.msk [vmem:[#allocation4 + $0xe8] sm:$0xff] %vm626, %v589
      %657 = vst.msk [vmem:[#allocation4 + $0xf0] sm:$0xff] %vm626, %v591
      %658 = vst.msk [vmem:[#allocation4 + $0xf8] sm:$0xff] %vm626, %v593
      %v659 = vld [vmem:[#allocation2 + $0x2] sm:$0xff]
      %v660 = vld [vmem:[#allocation2 + $0xa] sm:$0xff]
      %v661 = vld [vmem:[#allocation2 + $0x1a] sm:$0xff]
      %v662 = vld [vmem:[#allocation2 + $0x22] sm:$0xff]
      %v663 = vld [vmem:[#allocation2 + $0x32] sm:$0xff]
      %v664 = vld [vmem:[#allocation2 + $0x3a] sm:$0xff]
      %v665 = vld [vmem:[#allocation2 + $0x4a] sm:$0xff]
      %v666 = vld [vmem:[#allocation2 + $0x52] sm:$0xff]
      %v667 = vld [vmem:[#allocation2 + $0x62] sm:$0xff]
      %v668 = vld [vmem:[#allocation2 + $0x6a] sm:$0xff]
      %v669 = vld [vmem:[#allocation2 + $0x7a] sm:$0xff]
      %v670 = vld [vmem:[#allocation2 + $0x82] sm:$0xff]
      %v671 = vld [vmem:[#allocation2 + $0x92] sm:$0xff]
      %v672 = vld [vmem:[#allocation2 + $0x9a] sm:$0xff]
      %v673 = vld [vmem:[#allocation2 + $0xaa] sm:$0xff]
      %v674 = vld [vmem:[#allocation2 + $0xb2] sm:$0xff]
      %v675 = vld [vmem:[#allocation2 + $0xc2] sm:$0xff]
      %v676 = vld [vmem:[#allocation2 + $0xca] sm:$0xff]
      %v677 = vld [vmem:[#allocation2 + $0xda] sm:$0xff]
      %v678 = vld [vmem:[#allocation2 + $0xe2] sm:$0xff]
      %v679 = vld [vmem:[#allocation2 + $0xf2] sm:$0xff]
      %v680 = vld [vmem:[#allocation2 + $0xfa] sm:$0xff]
      %v681 = vld [vmem:[#allocation2 + $0x10a] sm:$0xff]
      %v682 = vld [vmem:[#allocation2 + $0x112] sm:$0xff]
      %v683 = vld [vmem:[#allocation2 + $0x122] sm:$0xff]
      %v684 = vld [vmem:[#allocation2 + $0x12a] sm:$0xff]
      %v685 = vld [vmem:[#allocation2 + $0x13a] sm:$0xff]
      %v686 = vld [vmem:[#allocation2 + $0x142] sm:$0xff]
      %v687 = vld [vmem:[#allocation2 + $0x152] sm:$0xff]
      %v688 = vld [vmem:[#allocation2 + $0x15a] sm:$0xff]
      %v689 = vld [vmem:[#allocation2 + $0x16a] sm:$0xff]
      %v690 = vld [vmem:[#allocation2 + $0x172] sm:$0xff]
      %723 = vrot.lane.b32.xlu0 %v659, 8
      %v724 = vpop.permute.xlu0 %723
      %725 = vrot.lane.b32.xlu0 %v660, 8
      %v726 = vpop.permute.xlu0 %725
      %727 = vrot.lane.b32.xlu0 %v661, 8
      %v728 = vpop.permute.xlu0 %727
      %729 = vrot.lane.b32.xlu0 %v662, 8
      %v730 = vpop.permute.xlu0 %729
      %731 = vrot.lane.b32.xlu0 %v663, 8
      %v732 = vpop.permute.xlu0 %731
      %733 = vrot.lane.b32.xlu0 %v664, 8
      %v734 = vpop.permute.xlu0 %733
      %735 = vrot.lane.b32.xlu0 %v665, 8
      %v736 = vpop.permute.xlu0 %735
      %737 = vrot.lane.b32.xlu0 %v666, 8
      %v738 = vpop.permute.xlu0 %737
      %739 = vrot.lane.b32.xlu0 %v667, 8
      %v740 = vpop.permute.xlu0 %739
      %741 = vrot.lane.b32.xlu0 %v668, 8
      %v742 = vpop.permute.xlu0 %741
      %743 = vrot.lane.b32.xlu0 %v669, 8
      %v744 = vpop.permute.xlu0 %743
      %745 = vrot.lane.b32.xlu0 %v670, 8
      %v746 = vpop.permute.xlu0 %745
      %747 = vrot.lane.b32.xlu0 %v671, 8
      %v748 = vpop.permute.xlu0 %747
      %749 = vrot.lane.b32.xlu0 %v672, 8
      %v750 = vpop.permute.xlu0 %749
      %751 = vrot.lane.b32.xlu0 %v673, 8
      %v752 = vpop.permute.xlu0 %751
      %753 = vrot.lane.b32.xlu0 %v674, 8
      %v754 = vpop.permute.xlu0 %753
      %755 = vrot.lane.b32.xlu0 %v675, 8
      %v756 = vpop.permute.xlu0 %755
      %757 = vrot.lane.b32.xlu0 %v676, 8
      %v758 = vpop.permute.xlu0 %757
      %759 = vrot.lane.b32.xlu0 %v677, 8
      %v760 = vpop.permute.xlu0 %759
      %761 = vrot.lane.b32.xlu0 %v678, 8
      %v762 = vpop.permute.xlu0 %761
      %763 = vrot.lane.b32.xlu0 %v679, 8
      %v764 = vpop.permute.xlu0 %763
      %765 = vrot.lane.b32.xlu0 %v680, 8
      %v766 = vpop.permute.xlu0 %765
      %767 = vrot.lane.b32.xlu0 %v681, 8
      %v768 = vpop.permute.xlu0 %767
      %769 = vrot.lane.b32.xlu0 %v682, 8
      %v770 = vpop.permute.xlu0 %769
      %771 = vrot.lane.b32.xlu0 %v683, 8
      %v772 = vpop.permute.xlu0 %771
      %773 = vrot.lane.b32.xlu0 %v684, 8
      %v774 = vpop.permute.xlu0 %773
      %775 = vrot.lane.b32.xlu0 %v685, 8
      %v776 = vpop.permute.xlu0 %775
      %777 = vrot.lane.b32.xlu0 %v686, 8
      %v778 = vpop.permute.xlu0 %777
      %779 = vrot.lane.b32.xlu0 %v687, 8
      %v780 = vpop.permute.xlu0 %779
      %781 = vrot.lane.b32.xlu0 %v688, 8
      %v782 = vpop.permute.xlu0 %781
      %783 = vrot.lane.b32.xlu0 %v689, 8
      %v784 = vpop.permute.xlu0 %783
      %785 = vrot.lane.b32.xlu0 %v690, 8
      %v786 = vpop.permute.xlu0 %785
      %vm819 = vcmask 97344
      %820 = vst.msk [vmem:[#allocation4] sm:$0xff] %vm819, %v724
      %821 = vst.msk [vmem:[#allocation4 + $0x8] sm:$0xff] %vm819, %v726
      %822 = vst.msk [vmem:[#allocation4 + $0x10] sm:$0xff] %vm819, %v728
      %823 = vst.msk [vmem:[#allocation4 + $0x18] sm:$0xff] %vm819, %v730
      %824 = vst.msk [vmem:[#allocation4 + $0x20] sm:$0xff] %vm819, %v732
      %825 = vst.msk [vmem:[#allocation4 + $0x28] sm:$0xff] %vm819, %v734
      %826 = vst.msk [vmem:[#allocation4 + $0x30] sm:$0xff] %vm819, %v736
      %827 = vst.msk [vmem:[#allocation4 + $0x38] sm:$0xff] %vm819, %v738
      %828 = vst.msk [vmem:[#allocation4 + $0x40] sm:$0xff] %vm819, %v740
      %829 = vst.msk [vmem:[#allocation4 + $0x48] sm:$0xff] %vm819, %v742
      %830 = vst.msk [vmem:[#allocation4 + $0x50] sm:$0xff] %vm819, %v744
      %831 = vst.msk [vmem:[#allocation4 + $0x58] sm:$0xff] %vm819, %v746
      %832 = vst.msk [vmem:[#allocation4 + $0x60] sm:$0xff] %vm819, %v748
      %833 = vst.msk [vmem:[#allocation4 + $0x68] sm:$0xff] %vm819, %v750
      %834 = vst.msk [vmem:[#allocation4 + $0x70] sm:$0xff] %vm819, %v752
      %835 = vst.msk [vmem:[#allocation4 + $0x78] sm:$0xff] %vm819, %v754
      %836 = vst.msk [vmem:[#allocation4 + $0x80] sm:$0xff] %vm819, %v756
      %837 = vst.msk [vmem:[#allocation4 + $0x88] sm:$0xff] %vm819, %v758
      %838 = vst.msk [vmem:[#allocation4 + $0x90] sm:$0xff] %vm819, %v760
      %839 = vst.msk [vmem:[#allocation4 + $0x98] sm:$0xff] %vm819, %v762
      %840 = vst.msk [vmem:[#allocation4 + $0xa0] sm:$0xff] %vm819, %v764
      %841 = vst.msk [vmem:[#allocation4 + $0xa8] sm:$0xff] %vm819, %v766
      %842 = vst.msk [vmem:[#allocation4 + $0xb0] sm:$0xff] %vm819, %v768
      %843 = vst.msk [vmem:[#allocation4 + $0xb8] sm:$0xff] %vm819, %v770
      %844 = vst.msk [vmem:[#allocation4 + $0xc0] sm:$0xff] %vm819, %v772
      %845 = vst.msk [vmem:[#allocation4 + $0xc8] sm:$0xff] %vm819, %v774
      %846 = vst.msk [vmem:[#allocation4 + $0xd0] sm:$0xff] %vm819, %v776
      %847 = vst.msk [vmem:[#allocation4 + $0xd8] sm:$0xff] %vm819, %v778
      %848 = vst.msk [vmem:[#allocation4 + $0xe0] sm:$0xff] %vm819, %v780
      %849 = vst.msk [vmem:[#allocation4 + $0xe8] sm:$0xff] %vm819, %v782
      %850 = vst.msk [vmem:[#allocation4 + $0xf0] sm:$0xff] %vm819, %v784
      %851 = vst.msk [vmem:[#allocation4 + $0xf8] sm:$0xff] %vm819, %v786
      %v852 = vld [vmem:[%s369] sm:$0xff]
      %v853 = vld [vmem:[%s369 + $0x8] sm:$0xff]
      %v854 = vld [vmem:[%s369 + $0x18] sm:$0xff]
      %v855 = vld [vmem:[%s369 + $0x20] sm:$0xff]
      %v856 = vld [vmem:[%s369 + $0x30] sm:$0xff]
      %v857 = vld [vmem:[%s369 + $0x38] sm:$0xff]
      %v858 = vld [vmem:[%s369 + $0x48] sm:$0xff]
      %v859 = vld [vmem:[%s369 + $0x50] sm:$0xff]
      %v860 = vld [vmem:[%s369 + $0x60] sm:$0xff]
      %v861 = vld [vmem:[%s369 + $0x68] sm:$0xff]
      %v862 = vld [vmem:[%s369 + $0x78] sm:$0xff]
      %v863 = vld [vmem:[%s369 + $0x80] sm:$0xff]
      %v864 = vld [vmem:[%s369 + $0x90] sm:$0xff]
      %v865 = vld [vmem:[%s369 + $0x98] sm:$0xff]
      %v866 = vld [vmem:[%s369 + $0xa8] sm:$0xff]
      %v867 = vld [vmem:[%s369 + $0xb0] sm:$0xff]
      %v868 = vld [vmem:[%s369 + $0xc0] sm:$0xff]
      %v869 = vld [vmem:[%s369 + $0xc8] sm:$0xff]
      %v870 = vld [vmem:[%s369 + $0xd8] sm:$0xff]
      %v871 = vld [vmem:[%s369 + $0xe0] sm:$0xff]
      %v872 = vld [vmem:[%s369 + $0xf0] sm:$0xff]
      %v873 = vld [vmem:[%s369 + $0xf8] sm:$0xff]
      %v874 = vld [vmem:[%s369 + $0x108] sm:$0xff]
      %v875 = vld [vmem:[%s369 + $0x110] sm:$0xff]
      %v876 = vld [vmem:[%s369 + $0x120] sm:$0xff]
      %v877 = vld [vmem:[%s369 + $0x128] sm:$0xff]
      %v878 = vld [vmem:[%s369 + $0x138] sm:$0xff]
      %v879 = vld [vmem:[%s369 + $0x140] sm:$0xff]
      %v880 = vld [vmem:[%s369 + $0x150] sm:$0xff]
      %v881 = vld [vmem:[%s369 + $0x158] sm:$0xff]
      %v882 = vld [vmem:[%s369 + $0x168] sm:$0xff]
      %v883 = vld [vmem:[%s369 + $0x170] sm:$0xff]
      %916 = vrot.lane.b32.xlu0 %v852, 12
      %v917 = vpop.permute.xlu0 %916
      %918 = vrot.lane.b32.xlu0 %v853, 12
      %v919 = vpop.permute.xlu0 %918
      %920 = vrot.lane.b32.xlu0 %v854, 12
      %v921 = vpop.permute.xlu0 %920
      %922 = vrot.lane.b32.xlu0 %v855, 12
      %v923 = vpop.permute.xlu0 %922
      %924 = vrot.lane.b32.xlu0 %v856, 12
      %v925 = vpop.permute.xlu0 %924
      %926 = vrot.lane.b32.xlu0 %v857, 12
      %v927 = vpop.permute.xlu0 %926
      %928 = vrot.lane.b32.xlu0 %v858, 12
      %v929 = vpop.permute.xlu0 %928
      %930 = vrot.lane.b32.xlu0 %v859, 12
      %v931 = vpop.permute.xlu0 %930
      %932 = vrot.lane.b32.xlu0 %v860, 12
      %v933 = vpop.permute.xlu0 %932
      %934 = vrot.lane.b32.xlu0 %v861, 12
      %v935 = vpop.permute.xlu0 %934
      %936 = vrot.lane.b32.xlu0 %v862, 12
      %v937 = vpop.permute.xlu0 %936
      %938 = vrot.lane.b32.xlu0 %v863, 12
      %v939 = vpop.permute.xlu0 %938
      %940 = vrot.lane.b32.xlu0 %v864, 12
      %v941 = vpop.permute.xlu0 %940
      %942 = vrot.lane.b32.xlu0 %v865, 12
      %v943 = vpop.permute.xlu0 %942
      %944 = vrot.lane.b32.xlu0 %v866, 12
      %v945 = vpop.permute.xlu0 %944
      %946 = vrot.lane.b32.xlu0 %v867, 12
      %v947 = vpop.permute.xlu0 %946
      %948 = vrot.lane.b32.xlu0 %v868, 12
      %v949 = vpop.permute.xlu0 %948
      %950 = vrot.lane.b32.xlu0 %v869, 12
      %v951 = vpop.permute.xlu0 %950
      %952 = vrot.lane.b32.xlu0 %v870, 12
      %v953 = vpop.permute.xlu0 %952
      %954 = vrot.lane.b32.xlu0 %v871, 12
      %v955 = vpop.permute.xlu0 %954
      %956 = vrot.lane.b32.xlu0 %v872, 12
      %v957 = vpop.permute.xlu0 %956
      %958 = vrot.lane.b32.xlu0 %v873, 12
      %v959 = vpop.permute.xlu0 %958
      %960 = vrot.lane.b32.xlu0 %v874, 12
      %v961 = vpop.permute.xlu0 %960
      %962 = vrot.lane.b32.xlu0 %v875, 12
      %v963 = vpop.permute.xlu0 %962
      %964 = vrot.lane.b32.xlu0 %v876, 12
      %v965 = vpop.permute.xlu0 %964
      %966 = vrot.lane.b32.xlu0 %v877, 12
      %v967 = vpop.permute.xlu0 %966
      %968 = vrot.lane.b32.xlu0 %v878, 12
      %v969 = vpop.permute.xlu0 %968
      %970 = vrot.lane.b32.xlu0 %v879, 12
      %v971 = vpop.permute.xlu0 %970
      %972 = vrot.lane.b32.xlu0 %v880, 12
      %v973 = vpop.permute.xlu0 %972
      %974 = vrot.lane.b32.xlu0 %v881, 12
      %v975 = vpop.permute.xlu0 %974
      %976 = vrot.lane.b32.xlu0 %v882, 12
      %v977 = vpop.permute.xlu0 %976
      %978 = vrot.lane.b32.xlu0 %v883, 12
      %v979 = vpop.permute.xlu0 %978
      %vm1012 = vcmask 130144
      %1013 = vst.msk [vmem:[#allocation4] sm:$0xff] %vm1012, %v917
      %1014 = vst.msk [vmem:[#allocation4 + $0x8] sm:$0xff] %vm1012, %v919
      %1015 = vst.msk [vmem:[#allocation4 + $0x10] sm:$0xff] %vm1012, %v921
      %1016 = vst.msk [vmem:[#allocation4 + $0x18] sm:$0xff] %vm1012, %v923
      %1017 = vst.msk [vmem:[#allocation4 + $0x20] sm:$0xff] %vm1012, %v925
      %1018 = vst.msk [vmem:[#allocation4 + $0x28] sm:$0xff] %vm1012, %v927
      %1019 = vst.msk [vmem:[#allocation4 + $0x30] sm:$0xff] %vm1012, %v929
      %1020 = vst.msk [vmem:[#allocation4 + $0x38] sm:$0xff] %vm1012, %v931
      %1021 = vst.msk [vmem:[#allocation4 + $0x40] sm:$0xff] %vm1012, %v933
      %1022 = vst.msk [vmem:[#allocation4 + $0x48] sm:$0xff] %vm1012, %v935
      %1023 = vst.msk [vmem:[#allocation4 + $0x50] sm:$0xff] %vm1012, %v937
      %1024 = vst.msk [vmem:[#allocation4 + $0x58] sm:$0xff] %vm1012, %v939
      %1025 = vst.msk [vmem:[#allocation4 + $0x60] sm:$0xff] %vm1012, %v941
      %1026 = vst.msk [vmem:[#allocation4 + $0x68] sm:$0xff] %vm1012, %v943
      %1027 = vst.msk [vmem:[#allocation4 + $0x70] sm:$0xff] %vm1012, %v945
      %1028 = vst.msk [vmem:[#allocation4 + $0x78] sm:$0xff] %vm1012, %v947
      %1029 = vst.msk [vmem:[#allocation4 + $0x80] sm:$0xff] %vm1012, %v949
      %1030 = vst.msk [vmem:[#allocation4 + $0x88] sm:$0xff] %vm1012, %v951
      %1031 = vst.msk [vmem:[#allocation4 + $0x90] sm:$0xff] %vm1012, %v953
      %1032 = vst.msk [vmem:[#allocation4 + $0x98] sm:$0xff] %vm1012, %v955
      %1033 = vst.msk [vmem:[#allocation4 + $0xa0] sm:$0xff] %vm1012, %v957
      %1034 = vst.msk [vmem:[#allocation4 + $0xa8] sm:$0xff] %vm1012, %v959
      %1035 = vst.msk [vmem:[#allocation4 + $0xb0] sm:$0xff] %vm1012, %v961
      %1036 = vst.msk [vmem:[#allocation4 + $0xb8] sm:$0xff] %vm1012, %v963
      %1037 = vst.msk [vmem:[#allocation4 + $0xc0] sm:$0xff] %vm1012, %v965
      %1038 = vst.msk [vmem:[#allocation4 + $0xc8] sm:$0xff] %vm1012, %v967
      %1039 = vst.msk [vmem:[#allocation4 + $0xd0] sm:$0xff] %vm1012, %v969
      %1040 = vst.msk [vmem:[#allocation4 + $0xd8] sm:$0xff] %vm1012, %v971
      %1041 = vst.msk [vmem:[#allocation4 + $0xe0] sm:$0xff] %vm1012, %v973
      %1042 = vst.msk [vmem:[#allocation4 + $0xe8] sm:$0xff] %vm1012, %v975
      %1043 = vst.msk [vmem:[#allocation4 + $0xf0] sm:$0xff] %vm1012, %v977
      %1044 = vst.msk [vmem:[#allocation4 + $0xf8] sm:$0xff] %vm1012, %v979
      %v1045 = vld [vmem:[%s369 + $0x1] sm:$0xff]
      %v1046 = vld [vmem:[%s369 + $0x9] sm:$0xff]
      %v1047 = vld [vmem:[%s369 + $0x19] sm:$0xff]
      %v1048 = vld [vmem:[%s369 + $0x21] sm:$0xff]
      %v1049 = vld [vmem:[%s369 + $0x31] sm:$0xff]
      %v1050 = vld [vmem:[%s369 + $0x39] sm:$0xff]
      %v1051 = vld [vmem:[%s369 + $0x49] sm:$0xff]
      %v1052 = vld [vmem:[%s369 + $0x51] sm:$0xff]
      %v1053 = vld [vmem:[%s369 + $0x61] sm:$0xff]
      %v1054 = vld [vmem:[%s369 + $0x69] sm:$0xff]
      %v1055 = vld [vmem:[%s369 + $0x79] sm:$0xff]
      %v1056 = vld [vmem:[%s369 + $0x81] sm:$0xff]
      %v1057 = vld [vmem:[%s369 + $0x91] sm:$0xff]
      %v1058 = vld [vmem:[%s369 + $0x99] sm:$0xff]
      %v1059 = vld [vmem:[%s369 + $0xa9] sm:$0xff]
      %v1060 = vld [vmem:[%s369 + $0xb1] sm:$0xff]
      %v1061 = vld [vmem:[%s369 + $0xc1] sm:$0xff]
      %v1062 = vld [vmem:[%s369 + $0xc9] sm:$0xff]
      %v1063 = vld [vmem:[%s369 + $0xd9] sm:$0xff]
      %v1064 = vld [vmem:[%s369 + $0xe1] sm:$0xff]
      %v1065 = vld [vmem:[%s369 + $0xf1] sm:$0xff]
      %v1066 = vld [vmem:[%s369 + $0xf9] sm:$0xff]
      %v1067 = vld [vmem:[%s369 + $0x109] sm:$0xff]
      %v1068 = vld [vmem:[%s369 + $0x111] sm:$0xff]
      %v1069 = vld [vmem:[%s369 + $0x121] sm:$0xff]
      %v1070 = vld [vmem:[%s369 + $0x129] sm:$0xff]
      %v1071 = vld [vmem:[%s369 + $0x139] sm:$0xff]
      %v1072 = vld [vmem:[%s369 + $0x141] sm:$0xff]
      %v1073 = vld [vmem:[%s369 + $0x151] sm:$0xff]
      %v1074 = vld [vmem:[%s369 + $0x159] sm:$0xff]
      %v1075 = vld [vmem:[%s369 + $0x169] sm:$0xff]
      %v1076 = vld [vmem:[%s369 + $0x171] sm:$0xff]
      %1109 = vrot.lane.b32.xlu0 %v1045, 16
      %v1110 = vpop.permute.xlu0 %1109
      %1111 = vrot.lane.b32.xlu0 %v1046, 16
      %v1112 = vpop.permute.xlu0 %1111
      %1113 = vrot.lane.b32.xlu0 %v1047, 16
      %v1114 = vpop.permute.xlu0 %1113
      %1115 = vrot.lane.b32.xlu0 %v1048, 16
      %v1116 = vpop.permute.xlu0 %1115
      %1117 = vrot.lane.b32.xlu0 %v1049, 16
      %v1118 = vpop.permute.xlu0 %1117
      %1119 = vrot.lane.b32.xlu0 %v1050, 16
      %v1120 = vpop.permute.xlu0 %1119
      %1121 = vrot.lane.b32.xlu0 %v1051, 16
      %v1122 = vpop.permute.xlu0 %1121
      %1123 = vrot.lane.b32.xlu0 %v1052, 16
      %v1124 = vpop.permute.xlu0 %1123
      %1125 = vrot.lane.b32.xlu0 %v1053, 16
      %v1126 = vpop.permute.xlu0 %1125
      %1127 = vrot.lane.b32.xlu0 %v1054, 16
      %v1128 = vpop.permute.xlu0 %1127
      %1129 = vrot.lane.b32.xlu0 %v1055, 16
      %v1130 = vpop.permute.xlu0 %1129
      %1131 = vrot.lane.b32.xlu0 %v1056, 16
      %v1132 = vpop.permute.xlu0 %1131
      %1133 = vrot.lane.b32.xlu0 %v1057, 16
      %v1134 = vpop.permute.xlu0 %1133
      %1135 = vrot.lane.b32.xlu0 %v1058, 16
      %v1136 = vpop.permute.xlu0 %1135
      %1137 = vrot.lane.b32.xlu0 %v1059, 16
      %v1138 = vpop.permute.xlu0 %1137
      %1139 = vrot.lane.b32.xlu0 %v1060, 16
      %v1140 = vpop.permute.xlu0 %1139
      %1141 = vrot.lane.b32.xlu0 %v1061, 16
      %v1142 = vpop.permute.xlu0 %1141
      %1143 = vrot.lane.b32.xlu0 %v1062, 16
      %v1144 = vpop.permute.xlu0 %1143
      %1145 = vrot.lane.b32.xlu0 %v1063, 16
      %v1146 = vpop.permute.xlu0 %1145
      %1147 = vrot.lane.b32.xlu0 %v1064, 16
      %v1148 = vpop.permute.xlu0 %1147
      %1149 = vrot.lane.b32.xlu0 %v1065, 16
      %v1150 = vpop.permute.xlu0 %1149
      %1151 = vrot.lane.b32.xlu0 %v1066, 16
      %v1152 = vpop.permute.xlu0 %1151
      %1153 = vrot.lane.b32.xlu0 %v1067, 16
      %v1154 = vpop.permute.xlu0 %1153
      %1155 = vrot.lane.b32.xlu0 %v1068, 16
      %v1156 = vpop.permute.xlu0 %1155
      %1157 = vrot.lane.b32.xlu0 %v1069, 16
      %v1158 = vpop.permute.xlu0 %1157
      %1159 = vrot.lane.b32.xlu0 %v1070, 16
      %v1160 = vpop.permute.xlu0 %1159
      %1161 = vrot.lane.b32.xlu0 %v1071, 16
      %v1162 = vpop.permute.xlu0 %1161
      %1163 = vrot.lane.b32.xlu0 %v1072, 16
      %v1164 = vpop.permute.xlu0 %1163
      %1165 = vrot.lane.b32.xlu0 %v1073, 16
      %v1166 = vpop.permute.xlu0 %1165
      %1167 = vrot.lane.b32.xlu0 %v1074, 16
      %v1168 = vpop.permute.xlu0 %1167
      %1169 = vrot.lane.b32.xlu0 %v1075, 16
      %v1170 = vpop.permute.xlu0 %1169
      %1171 = vrot.lane.b32.xlu0 %v1076, 16
      %v1172 = vpop.permute.xlu0 %1171
      %vm1205 = vcmask 162944
      %1206 = vst.msk [vmem:[#allocation4] sm:$0xff] %vm1205, %v1110
      %1207 = vst.msk [vmem:[#allocation4 + $0x8] sm:$0xff] %vm1205, %v1112
      %1208 = vst.msk [vmem:[#allocation4 + $0x10] sm:$0xff] %vm1205, %v1114
      %1209 = vst.msk [vmem:[#allocation4 + $0x18] sm:$0xff] %vm1205, %v1116
      %1210 = vst.msk [vmem:[#allocation4 + $0x20] sm:$0xff] %vm1205, %v1118
      %1211 = vst.msk [vmem:[#allocation4 + $0x28] sm:$0xff] %vm1205, %v1120
      %1212 = vst.msk [vmem:[#allocation4 + $0x30] sm:$0xff] %vm1205, %v1122
      %1213 = vst.msk [vmem:[#allocation4 + $0x38] sm:$0xff] %vm1205, %v1124
      %1214 = vst.msk [vmem:[#allocation4 + $0x40] sm:$0xff] %vm1205, %v1126
      %1215 = vst.msk [vmem:[#allocation4 + $0x48] sm:$0xff] %vm1205, %v1128
      %1216 = vst.msk [vmem:[#allocation4 + $0x50] sm:$0xff] %vm1205, %v1130
      %1217 = vst.msk [vmem:[#allocation4 + $0x58] sm:$0xff] %vm1205, %v1132
      %1218 = vst.msk [vmem:[#allocation4 + $0x60] sm:$0xff] %vm1205, %v1134
      %1219 = vst.msk [vmem:[#allocation4 + $0x68] sm:$0xff] %vm1205, %v1136
      %1220 = vst.msk [vmem:[#allocation4 + $0x70] sm:$0xff] %vm1205, %v1138
      %1221 = vst.msk [vmem:[#allocation4 + $0x78] sm:$0xff] %vm1205, %v1140
      %1222 = vst.msk [vmem:[#allocation4 + $0x80] sm:$0xff] %vm1205, %v1142
      %1223 = vst.msk [vmem:[#allocation4 + $0x88] sm:$0xff] %vm1205, %v1144
      %1224 = vst.msk [vmem:[#allocation4 + $0x90] sm:$0xff] %vm1205, %v1146
      %1225 = vst.msk [vmem:[#allocation4 + $0x98] sm:$0xff] %vm1205, %v1148
      %1226 = vst.msk [vmem:[#allocation4 + $0xa0] sm:$0xff] %vm1205, %v1150
      %1227 = vst.msk [vmem:[#allocation4 + $0xa8] sm:$0xff] %vm1205, %v1152
      %1228 = vst.msk [vmem:[#allocation4 + $0xb0] sm:$0xff] %vm1205, %v1154
      %1229 = vst.msk [vmem:[#allocation4 + $0xb8] sm:$0xff] %vm1205, %v1156
      %1230 = vst.msk [vmem:[#allocation4 + $0xc0] sm:$0xff] %vm1205, %v1158
      %1231 = vst.msk [vmem:[#allocation4 + $0xc8] sm:$0xff] %vm1205, %v1160
      %1232 = vst.msk [vmem:[#allocation4 + $0xd0] sm:$0xff] %vm1205, %v1162
      %1233 = vst.msk [vmem:[#allocation4 + $0xd8] sm:$0xff] %vm1205, %v1164
      %1234 = vst.msk [vmem:[#allocation4 + $0xe0] sm:$0xff] %vm1205, %v1166
      %1235 = vst.msk [vmem:[#allocation4 + $0xe8] sm:$0xff] %vm1205, %v1168
      %1236 = vst.msk [vmem:[#allocation4 + $0xf0] sm:$0xff] %vm1205, %v1170
      %1237 = vst.msk [vmem:[#allocation4 + $0xf8] sm:$0xff] %vm1205, %v1172
      %v1238 = vld [vmem:[%s369 + $0x2] sm:$0xff]
      %v1239 = vld [vmem:[%s369 + $0xa] sm:$0xff]
      %v1240 = vld [vmem:[%s369 + $0x1a] sm:$0xff]
      %v1241 = vld [vmem:[%s369 + $0x22] sm:$0xff]
      %v1242 = vld [vmem:[%s369 + $0x32] sm:$0xff]
      %v1243 = vld [vmem:[%s369 + $0x3a] sm:$0xff]
      %v1244 = vld [vmem:[%s369 + $0x4a] sm:$0xff]
      %v1245 = vld [vmem:[%s369 + $0x52] sm:$0xff]
      %v1246 = vld [vmem:[%s369 + $0x62] sm:$0xff]
      %v1247 = vld [vmem:[%s369 + $0x6a] sm:$0xff]
      %v1248 = vld [vmem:[%s369 + $0x7a] sm:$0xff]
      %v1249 = vld [vmem:[%s369 + $0x82] sm:$0xff]
      %v1250 = vld [vmem:[%s369 + $0x92] sm:$0xff]
      %v1251 = vld [vmem:[%s369 + $0x9a] sm:$0xff]
      %v1252 = vld [vmem:[%s369 + $0xaa] sm:$0xff]
      %v1253 = vld [vmem:[%s369 + $0xb2] sm:$0xff]
      %v1254 = vld [vmem:[%s369 + $0xc2] sm:$0xff]
      %v1255 = vld [vmem:[%s369 + $0xca] sm:$0xff]
      %v1256 = vld [vmem:[%s369 + $0xda] sm:$0xff]
      %v1257 = vld [vmem:[%s369 + $0xe2] sm:$0xff]
      %v1258 = vld [vmem:[%s369 + $0xf2] sm:$0xff]
      %v1259 = vld [vmem:[%s369 + $0xfa] sm:$0xff]
      %v1260 = vld [vmem:[%s369 + $0x10a] sm:$0xff]
      %v1261 = vld [vmem:[%s369 + $0x112] sm:$0xff]
      %v1262 = vld [vmem:[%s369 + $0x122] sm:$0xff]
      %v1263 = vld [vmem:[%s369 + $0x12a] sm:$0xff]
      %v1264 = vld [vmem:[%s369 + $0x13a] sm:$0xff]
      %v1265 = vld [vmem:[%s369 + $0x142] sm:$0xff]
      %v1266 = vld [vmem:[%s369 + $0x152] sm:$0xff]
      %v1267 = vld [vmem:[%s369 + $0x15a] sm:$0xff]
      %v1268 = vld [vmem:[%s369 + $0x16a] sm:$0xff]
      %v1269 = vld [vmem:[%s369 + $0x172] sm:$0xff]
      %1302 = vrot.lane.b32.xlu0 %v1238, 20
      %v1303 = vpop.permute.xlu0 %1302
      %1304 = vrot.lane.b32.xlu0 %v1239, 20
      %v1305 = vpop.permute.xlu0 %1304
      %1306 = vrot.lane.b32.xlu0 %v1240, 20
      %v1307 = vpop.permute.xlu0 %1306
      %1308 = vrot.lane.b32.xlu0 %v1241, 20
      %v1309 = vpop.permute.xlu0 %1308
      %1310 = vrot.lane.b32.xlu0 %v1242, 20
      %v1311 = vpop.permute.xlu0 %1310
      %1312 = vrot.lane.b32.xlu0 %v1243, 20
      %v1313 = vpop.permute.xlu0 %1312
      %1314 = vrot.lane.b32.xlu0 %v1244, 20
      %v1315 = vpop.permute.xlu0 %1314
      %1316 = vrot.lane.b32.xlu0 %v1245, 20
      %v1317 = vpop.permute.xlu0 %1316
      %1318 = vrot.lane.b32.xlu0 %v1246, 20
      %v1319 = vpop.permute.xlu0 %1318
      %1320 = vrot.lane.b32.xlu0 %v1247, 20
      %v1321 = vpop.permute.xlu0 %1320
      %1322 = vrot.lane.b32.xlu0 %v1248, 20
      %v1323 = vpop.permute.xlu0 %1322
      %1324 = vrot.lane.b32.xlu0 %v1249, 20
      %v1325 = vpop.permute.xlu0 %1324
      %1326 = vrot.lane.b32.xlu0 %v1250, 20
      %v1327 = vpop.permute.xlu0 %1326
      %1328 = vrot.lane.b32.xlu0 %v1251, 20
      %v1329 = vpop.permute.xlu0 %1328
      %1330 = vrot.lane.b32.xlu0 %v1252, 20
      %v1331 = vpop.permute.xlu0 %1330
      %1332 = vrot.lane.b32.xlu0 %v1253, 20
      %v1333 = vpop.permute.xlu0 %1332
      %1334 = vrot.lane.b32.xlu0 %v1254, 20
      %v1335 = vpop.permute.xlu0 %1334
      %1336 = vrot.lane.b32.xlu0 %v1255, 20
      %v1337 = vpop.permute.xlu0 %1336
      %1338 = vrot.lane.b32.xlu0 %v1256, 20
      %v1339 = vpop.permute.xlu0 %1338
      %1340 = vrot.lane.b32.xlu0 %v1257, 20
      %v1341 = vpop.permute.xlu0 %1340
      %1342 = vrot.lane.b32.xlu0 %v1258, 20
      %v1343 = vpop.permute.xlu0 %1342
      %1344 = vrot.lane.b32.xlu0 %v1259, 20
      %v1345 = vpop.permute.xlu0 %1344
      %1346 = vrot.lane.b32.xlu0 %v1260, 20
      %v1347 = vpop.permute.xlu0 %1346
      %1348 = vrot.lane.b32.xlu0 %v1261, 20
      %v1349 = vpop.permute.xlu0 %1348
      %1350 = vrot.lane.b32.xlu0 %v1262, 20
      %v1351 = vpop.permute.xlu0 %1350
      %1352 = vrot.lane.b32.xlu0 %v1263, 20
      %v1353 = vpop.permute.xlu0 %1352
      %1354 = vrot.lane.b32.xlu0 %v1264, 20
      %v1355 = vpop.permute.xlu0 %1354
      %1356 = vrot.lane.b32.xlu0 %v1265, 20
      %v1357 = vpop.permute.xlu0 %1356
      %1358 = vrot.lane.b32.xlu0 %v1266, 20
      %v1359 = vpop.permute.xlu0 %1358
      %1360 = vrot.lane.b32.xlu0 %v1267, 20
      %v1361 = vpop.permute.xlu0 %1360
      %1362 = vrot.lane.b32.xlu0 %v1268, 20
      %v1363 = vpop.permute.xlu0 %1362
      %1364 = vrot.lane.b32.xlu0 %v1269, 20
      %v1365 = vpop.permute.xlu0 %1364
      %vm1398 = vcmask 195744
      %1399 = vst.msk [vmem:[#allocation4] sm:$0xff] %vm1398, %v1303
      %1400 = vst.msk [vmem:[#allocation4 + $0x8] sm:$0xff] %vm1398, %v1305
      %1401 = vst.msk [vmem:[#allocation4 + $0x10] sm:$0xff] %vm1398, %v1307
      %1402 = vst.msk [vmem:[#allocation4 + $0x18] sm:$0xff] %vm1398, %v1309
      %1403 = vst.msk [vmem:[#allocation4 + $0x20] sm:$0xff] %vm1398, %v1311
      %1404 = vst.msk [vmem:[#allocation4 + $0x28] sm:$0xff] %vm1398, %v1313
      %1405 = vst.msk [vmem:[#allocation4 + $0x30] sm:$0xff] %vm1398, %v1315
      %1406 = vst.msk [vmem:[#allocation4 + $0x38] sm:$0xff] %vm1398, %v1317
      %1407 = vst.msk [vmem:[#allocation4 + $0x40] sm:$0xff] %vm1398, %v1319
      %1408 = vst.msk [vmem:[#allocation4 + $0x48] sm:$0xff] %vm1398, %v1321
      %1409 = vst.msk [vmem:[#allocation4 + $0x50] sm:$0xff] %vm1398, %v1323
      %1410 = vst.msk [vmem:[#allocation4 + $0x58] sm:$0xff] %vm1398, %v1325
      %1411 = vst.msk [vmem:[#allocation4 + $0x60] sm:$0xff] %vm1398, %v1327
      %1412 = vst.msk [vmem:[#allocation4 + $0x68] sm:$0xff] %vm1398, %v1329
      %1413 = vst.msk [vmem:[#allocation4 + $0x70] sm:$0xff] %vm1398, %v1331
      %1414 = vst.msk [vmem:[#allocation4 + $0x78] sm:$0xff] %vm1398, %v1333
      %1415 = vst.msk [vmem:[#allocation4 + $0x80] sm:$0xff] %vm1398, %v1335
      %1416 = vst.msk [vmem:[#allocation4 + $0x88] sm:$0xff] %vm1398, %v1337
      %1417 = vst.msk [vmem:[#allocation4 + $0x90] sm:$0xff] %vm1398, %v1339
      %1418 = vst.msk [vmem:[#allocation4 + $0x98] sm:$0xff] %vm1398, %v1341
      %1419 = vst.msk [vmem:[#allocation4 + $0xa0] sm:$0xff] %vm1398, %v1343
      %1420 = vst.msk [vmem:[#allocation4 + $0xa8] sm:$0xff] %vm1398, %v1345
      %1421 = vst.msk [vmem:[#allocation4 + $0xb0] sm:$0xff] %vm1398, %v1347
      %1422 = vst.msk [vmem:[#allocation4 + $0xb8] sm:$0xff] %vm1398, %v1349
      %1423 = vst.msk [vmem:[#allocation4 + $0xc0] sm:$0xff] %vm1398, %v1351
      %1424 = vst.msk [vmem:[#allocation4 + $0xc8] sm:$0xff] %vm1398, %v1353
      %1425 = vst.msk [vmem:[#allocation4 + $0xd0] sm:$0xff] %vm1398, %v1355
      %1426 = vst.msk [vmem:[#allocation4 + $0xd8] sm:$0xff] %vm1398, %v1357
      %1427 = vst.msk [vmem:[#allocation4 + $0xe0] sm:$0xff] %vm1398, %v1359
      %1428 = vst.msk [vmem:[#allocation4 + $0xe8] sm:$0xff] %vm1398, %v1361
      %1429 = vst.msk [vmem:[#allocation4 + $0xf0] sm:$0xff] %vm1398, %v1363
      %1430 = vst.msk [vmem:[#allocation4 + $0xf8] sm:$0xff] %vm1398, %v1365
      %s1431 = scalar_lea.vmem [#allocation2], 48
      %v1432 = vld [vmem:[%s1431] sm:$0xff]
      %v1433 = vld [vmem:[%s1431 + $0x8] sm:$0xff]
      %v1434 = vld [vmem:[%s1431 + $0x18] sm:$0xff]
      %v1435 = vld [vmem:[%s1431 + $0x20] sm:$0xff]
      %v1436 = vld [vmem:[%s1431 + $0x30] sm:$0xff]
      %v1437 = vld [vmem:[%s1431 + $0x38] sm:$0xff]
      %v1438 = vld [vmem:[%s1431 + $0x48] sm:$0xff]
      %v1439 = vld [vmem:[%s1431 + $0x50] sm:$0xff]
      %v1440 = vld [vmem:[%s1431 + $0x60] sm:$0xff]
      %v1441 = vld [vmem:[%s1431 + $0x68] sm:$0xff]
      %v1442 = vld [vmem:[%s1431 + $0x78] sm:$0xff]
      %v1443 = vld [vmem:[%s1431 + $0x80] sm:$0xff]
      %v1444 = vld [vmem:[%s1431 + $0x90] sm:$0xff]
      %v1445 = vld [vmem:[%s1431 + $0x98] sm:$0xff]
      %v1446 = vld [vmem:[%s1431 + $0xa8] sm:$0xff]
      %v1447 = vld [vmem:[%s1431 + $0xb0] sm:$0xff]
      %v1448 = vld [vmem:[%s1431 + $0xc0] sm:$0xff]
      %v1449 = vld [vmem:[%s1431 + $0xc8] sm:$0xff]
      %v1450 = vld [vmem:[%s1431 + $0xd8] sm:$0xff]
      %v1451 = vld [vmem:[%s1431 + $0xe0] sm:$0xff]
      %v1452 = vld [vmem:[%s1431 + $0xf0] sm:$0xff]
      %v1453 = vld [vmem:[%s1431 + $0xf8] sm:$0xff]
      %v1454 = vld [vmem:[%s1431 + $0x108] sm:$0xff]
      %v1455 = vld [vmem:[%s1431 + $0x110] sm:$0xff]
      %v1456 = vld [vmem:[%s1431 + $0x120] sm:$0xff]
      %v1457 = vld [vmem:[%s1431 + $0x128] sm:$0xff]
      %v1458 = vld [vmem:[%s1431 + $0x138] sm:$0xff]
      %v1459 = vld [vmem:[%s1431 + $0x140] sm:$0xff]
      %v1460 = vld [vmem:[%s1431 + $0x150] sm:$0xff]
      %v1461 = vld [vmem:[%s1431 + $0x158] sm:$0xff]
      %v1462 = vld [vmem:[%s1431 + $0x168] sm:$0xff]
      %v1463 = vld [vmem:[%s1431 + $0x170] sm:$0xff]
      %1496 = vrot.lane.b32.xlu0 %v1432, 24
      %v1497 = vpop.permute.xlu0 %1496
      %1498 = vrot.lane.b32.xlu0 %v1433, 24
      %v1499 = vpop.permute.xlu0 %1498
      %1500 = vrot.lane.b32.xlu0 %v1434, 24
      %v1501 = vpop.permute.xlu0 %1500
      %1502 = vrot.lane.b32.xlu0 %v1435, 24
      %v1503 = vpop.permute.xlu0 %1502
      %1504 = vrot.lane.b32.xlu0 %v1436, 24
      %v1505 = vpop.permute.xlu0 %1504
      %1506 = vrot.lane.b32.xlu0 %v1437, 24
      %v1507 = vpop.permute.xlu0 %1506
      %1508 = vrot.lane.b32.xlu0 %v1438, 24
      %v1509 = vpop.permute.xlu0 %1508
      %1510 = vrot.lane.b32.xlu0 %v1439, 24
      %v1511 = vpop.permute.xlu0 %1510
      %1512 = vrot.lane.b32.xlu0 %v1440, 24
      %v1513 = vpop.permute.xlu0 %1512
      %1514 = vrot.lane.b32.xlu0 %v1441, 24
      %v1515 = vpop.permute.xlu0 %1514
      %1516 = vrot.lane.b32.xlu0 %v1442, 24
      %v1517 = vpop.permute.xlu0 %1516
      %1518 = vrot.lane.b32.xlu0 %v1443, 24
      %v1519 = vpop.permute.xlu0 %1518
      %1520 = vrot.lane.b32.xlu0 %v1444, 24
      %v1521 = vpop.permute.xlu0 %1520
      %1522 = vrot.lane.b32.xlu0 %v1445, 24
      %v1523 = vpop.permute.xlu0 %1522
      %1524 = vrot.lane.b32.xlu0 %v1446, 24
      %v1525 = vpop.permute.xlu0 %1524
      %1526 = vrot.lane.b32.xlu0 %v1447, 24
      %v1527 = vpop.permute.xlu0 %1526
      %1528 = vrot.lane.b32.xlu0 %v1448, 24
      %v1529 = vpop.permute.xlu0 %1528
      %1530 = vrot.lane.b32.xlu0 %v1449, 24
      %v1531 = vpop.permute.xlu0 %1530
      %1532 = vrot.lane.b32.xlu0 %v1450, 24
      %v1533 = vpop.permute.xlu0 %1532
      %1534 = vrot.lane.b32.xlu0 %v1451, 24
      %v1535 = vpop.permute.xlu0 %1534
      %1536 = vrot.lane.b32.xlu0 %v1452, 24
      %v1537 = vpop.permute.xlu0 %1536
      %1538 = vrot.lane.b32.xlu0 %v1453, 24
      %v1539 = vpop.permute.xlu0 %1538
      %1540 = vrot.lane.b32.xlu0 %v1454, 24
      %v1541 = vpop.permute.xlu0 %1540
      %1542 = vrot.lane.b32.xlu0 %v1455, 24
      %v1543 = vpop.permute.xlu0 %1542
      %1544 = vrot.lane.b32.xlu0 %v1456, 24
      %v1545 = vpop.permute.xlu0 %1544
      %1546 = vrot.lane.b32.xlu0 %v1457, 24
      %v1547 = vpop.permute.xlu0 %1546
      %1548 = vrot.lane.b32.xlu0 %v1458, 24
      %v1549 = vpop.permute.xlu0 %1548
      %1550 = vrot.lane.b32.xlu0 %v1459, 24
      %v1551 = vpop.permute.xlu0 %1550
      %1552 = vrot.lane.b32.xlu0 %v1460, 24
      %v1553 = vpop.permute.xlu0 %1552
      %1554 = vrot.lane.b32.xlu0 %v1461, 24
      %v1555 = vpop.permute.xlu0 %1554
      %1556 = vrot.lane.b32.xlu0 %v1462, 24
      %v1557 = vpop.permute.xlu0 %1556
      %1558 = vrot.lane.b32.xlu0 %v1463, 24
      %v1559 = vpop.permute.xlu0 %1558
      %vm1592 = vcmask 228544
      %1593 = vst.msk [vmem:[#allocation4] sm:$0xff] %vm1592, %v1497
      %1594 = vst.msk [vmem:[#allocation4 + $0x8] sm:$0xff] %vm1592, %v1499
      %1595 = vst.msk [vmem:[#allocation4 + $0x10] sm:$0xff] %vm1592, %v1501
      %1596 = vst.msk [vmem:[#allocation4 + $0x18] sm:$0xff] %vm1592, %v1503
      %1597 = vst.msk [vmem:[#allocation4 + $0x20] sm:$0xff] %vm1592, %v1505
      %1598 = vst.msk [vmem:[#allocation4 + $0x28] sm:$0xff] %vm1592, %v1507
      %1599 = vst.msk [vmem:[#allocation4 + $0x30] sm:$0xff] %vm1592, %v1509
      %1600 = vst.msk [vmem:[#allocation4 + $0x38] sm:$0xff] %vm1592, %v1511
      %1601 = vst.msk [vmem:[#allocation4 + $0x40] sm:$0xff] %vm1592, %v1513
      %1602 = vst.msk [vmem:[#allocation4 + $0x48] sm:$0xff] %vm1592, %v1515
      %1603 = vst.msk [vmem:[#allocation4 + $0x50] sm:$0xff] %vm1592, %v1517
      %1604 = vst.msk [vmem:[#allocation4 + $0x58] sm:$0xff] %vm1592, %v1519
      %1605 = vst.msk [vmem:[#allocation4 + $0x60] sm:$0xff] %vm1592, %v1521
      %1606 = vst.msk [vmem:[#allocation4 + $0x68] sm:$0xff] %vm1592, %v1523
      %1607 = vst.msk [vmem:[#allocation4 + $0x70] sm:$0xff] %vm1592, %v1525
      %1608 = vst.msk [vmem:[#allocation4 + $0x78] sm:$0xff] %vm1592, %v1527
      %1609 = vst.msk [vmem:[#allocation4 + $0x80] sm:$0xff] %vm1592, %v1529
      %1610 = vst.msk [vmem:[#allocation4 + $0x88] sm:$0xff] %vm1592, %v1531
      %1611 = vst.msk [vmem:[#allocation4 + $0x90] sm:$0xff] %vm1592, %v1533
      %1612 = vst.msk [vmem:[#allocation4 + $0x98] sm:$0xff] %vm1592, %v1535
      %1613 = vst.msk [vmem:[#allocation4 + $0xa0] sm:$0xff] %vm1592, %v1537
      %1614 = vst.msk [vmem:[#allocation4 + $0xa8] sm:$0xff] %vm1592, %v1539
      %1615 = vst.msk [vmem:[#allocation4 + $0xb0] sm:$0xff] %vm1592, %v1541
      %1616 = vst.msk [vmem:[#allocation4 + $0xb8] sm:$0xff] %vm1592, %v1543
      %1617 = vst.msk [vmem:[#allocation4 + $0xc0] sm:$0xff] %vm1592, %v1545
      %1618 = vst.msk [vmem:[#allocation4 + $0xc8] sm:$0xff] %vm1592, %v1547
      %1619 = vst.msk [vmem:[#allocation4 + $0xd0] sm:$0xff] %vm1592, %v1549
      %1620 = vst.msk [vmem:[#allocation4 + $0xd8] sm:$0xff] %vm1592, %v1551
      %1621 = vst.msk [vmem:[#allocation4 + $0xe0] sm:$0xff] %vm1592, %v1553
      %1622 = vst.msk [vmem:[#allocation4 + $0xe8] sm:$0xff] %vm1592, %v1555
      %1623 = vst.msk [vmem:[#allocation4 + $0xf0] sm:$0xff] %vm1592, %v1557
      %1624 = vst.msk [vmem:[#allocation4 + $0xf8] sm:$0xff] %vm1592, %v1559
      %v1625 = vld [vmem:[%s1431 + $0x1] sm:$0xff]
      %v1626 = vld [vmem:[%s1431 + $0x9] sm:$0xff]
      %v1627 = vld [vmem:[%s1431 + $0x19] sm:$0xff]
      %v1628 = vld [vmem:[%s1431 + $0x21] sm:$0xff]
      %v1629 = vld [vmem:[%s1431 + $0x31] sm:$0xff]
      %v1630 = vld [vmem:[%s1431 + $0x39] sm:$0xff]
      %v1631 = vld [vmem:[%s1431 + $0x49] sm:$0xff]
      %v1632 = vld [vmem:[%s1431 + $0x51] sm:$0xff]
      %v1633 = vld [vmem:[%s1431 + $0x61] sm:$0xff]
      %v1634 = vld [vmem:[%s1431 + $0x69] sm:$0xff]
      %v1635 = vld [vmem:[%s1431 + $0x79] sm:$0xff]
      %v1636 = vld [vmem:[%s1431 + $0x81] sm:$0xff]
      %v1637 = vld [vmem:[%s1431 + $0x91] sm:$0xff]
      %v1638 = vld [vmem:[%s1431 + $0x99] sm:$0xff]
      %v1639 = vld [vmem:[%s1431 + $0xa9] sm:$0xff]
      %v1640 = vld [vmem:[%s1431 + $0xb1] sm:$0xff]
      %v1641 = vld [vmem:[%s1431 + $0xc1] sm:$0xff]
      %v1642 = vld [vmem:[%s1431 + $0xc9] sm:$0xff]
      %v1643 = vld [vmem:[%s1431 + $0xd9] sm:$0xff]
      %v1644 = vld [vmem:[%s1431 + $0xe1] sm:$0xff]
      %v1645 = vld [vmem:[%s1431 + $0xf1] sm:$0xff]
      %v1646 = vld [vmem:[%s1431 + $0xf9] sm:$0xff]
      %v1647 = vld [vmem:[%s1431 + $0x109] sm:$0xff]
      %v1648 = vld [vmem:[%s1431 + $0x111] sm:$0xff]
      %v1649 = vld [vmem:[%s1431 + $0x121] sm:$0xff]
      %v1650 = vld [vmem:[%s1431 + $0x129] sm:$0xff]
      %v1651 = vld [vmem:[%s1431 + $0x139] sm:$0xff]
      %v1652 = vld [vmem:[%s1431 + $0x141] sm:$0xff]
      %v1653 = vld [vmem:[%s1431 + $0x151] sm:$0xff]
      %v1654 = vld [vmem:[%s1431 + $0x159] sm:$0xff]
      %v1655 = vld [vmem:[%s1431 + $0x169] sm:$0xff]
      %v1656 = vld [vmem:[%s1431 + $0x171] sm:$0xff]
      %1689 = vrot.lane.b32.xlu0 %v1625, 28
      %v1690 = vpop.permute.xlu0 %1689
      %1691 = vrot.lane.b32.xlu0 %v1626, 28
      %v1692 = vpop.permute.xlu0 %1691
      %1693 = vrot.lane.b32.xlu0 %v1627, 28
      %v1694 = vpop.permute.xlu0 %1693
      %1695 = vrot.lane.b32.xlu0 %v1628, 28
      %v1696 = vpop.permute.xlu0 %1695
      %1697 = vrot.lane.b32.xlu0 %v1629, 28
      %v1698 = vpop.permute.xlu0 %1697
      %1699 = vrot.lane.b32.xlu0 %v1630, 28
      %v1700 = vpop.permute.xlu0 %1699
      %1701 = vrot.lane.b32.xlu0 %v1631, 28
      %v1702 = vpop.permute.xlu0 %1701
      %1703 = vrot.lane.b32.xlu0 %v1632, 28
      %v1704 = vpop.permute.xlu0 %1703
      %1705 = vrot.lane.b32.xlu0 %v1633, 28
      %v1706 = vpop.permute.xlu0 %1705
      %1707 = vrot.lane.b32.xlu0 %v1634, 28
      %v1708 = vpop.permute.xlu0 %1707
      %1709 = vrot.lane.b32.xlu0 %v1635, 28
      %v1710 = vpop.permute.xlu0 %1709
      %1711 = vrot.lane.b32.xlu0 %v1636, 28
      %v1712 = vpop.permute.xlu0 %1711
      %1713 = vrot.lane.b32.xlu0 %v1637, 28
      %v1714 = vpop.permute.xlu0 %1713
      %1715 = vrot.lane.b32.xlu0 %v1638, 28
      %v1716 = vpop.permute.xlu0 %1715
      %1717 = vrot.lane.b32.xlu0 %v1639, 28
      %v1718 = vpop.permute.xlu0 %1717
      %1719 = vrot.lane.b32.xlu0 %v1640, 28
      %v1720 = vpop.permute.xlu0 %1719
      %1721 = vrot.lane.b32.xlu0 %v1641, 28
      %v1722 = vpop.permute.xlu0 %1721
      %1723 = vrot.lane.b32.xlu0 %v1642, 28
      %v1724 = vpop.permute.xlu0 %1723
      %1725 = vrot.lane.b32.xlu0 %v1643, 28
      %v1726 = vpop.permute.xlu0 %1725
      %1727 = vrot.lane.b32.xlu0 %v1644, 28
      %v1728 = vpop.permute.xlu0 %1727
      %1729 = vrot.lane.b32.xlu0 %v1645, 28
      %v1730 = vpop.permute.xlu0 %1729
      %1731 = vrot.lane.b32.xlu0 %v1646, 28
      %v1732 = vpop.permute.xlu0 %1731
      %1733 = vrot.lane.b32.xlu0 %v1647, 28
      %v1734 = vpop.permute.xlu0 %1733
      %1735 = vrot.lane.b32.xlu0 %v1648, 28
      %v1736 = vpop.permute.xlu0 %1735
      %1737 = vrot.lane.b32.xlu0 %v1649, 28
      %v1738 = vpop.permute.xlu0 %1737
      %1739 = vrot.lane.b32.xlu0 %v1650, 28
      %v1740 = vpop.permute.xlu0 %1739
      %1741 = vrot.lane.b32.xlu0 %v1651, 28
      %v1742 = vpop.permute.xlu0 %1741
      %1743 = vrot.lane.b32.xlu0 %v1652, 28
      %v1744 = vpop.permute.xlu0 %1743
      %1745 = vrot.lane.b32.xlu0 %v1653, 28
      %v1746 = vpop.permute.xlu0 %1745
      %1747 = vrot.lane.b32.xlu0 %v1654, 28
      %v1748 = vpop.permute.xlu0 %1747
      %1749 = vrot.lane.b32.xlu0 %v1655, 28
      %v1750 = vpop.permute.xlu0 %1749
      %1751 = vrot.lane.b32.xlu0 %v1656, 28
      %v1752 = vpop.permute.xlu0 %1751
      %vm1785 = vcmask 261344
      %1786 = vst.msk [vmem:[#allocation4] sm:$0xff] %vm1785, %v1690
      %1787 = vst.msk [vmem:[#allocation4 + $0x8] sm:$0xff] %vm1785, %v1692
      %1788 = vst.msk [vmem:[#allocation4 + $0x10] sm:$0xff] %vm1785, %v1694
      %1789 = vst.msk [vmem:[#allocation4 + $0x18] sm:$0xff] %vm1785, %v1696
      %1790 = vst.msk [vmem:[#allocation4 + $0x20] sm:$0xff] %vm1785, %v1698
      %1791 = vst.msk [vmem:[#allocation4 + $0x28] sm:$0xff] %vm1785, %v1700
      %1792 = vst.msk [vmem:[#allocation4 + $0x30] sm:$0xff] %vm1785, %v1702
      %1793 = vst.msk [vmem:[#allocation4 + $0x38] sm:$0xff] %vm1785, %v1704
      %1794 = vst.msk [vmem:[#allocation4 + $0x40] sm:$0xff] %vm1785, %v1706
      %1795 = vst.msk [vmem:[#allocation4 + $0x48] sm:$0xff] %vm1785, %v1708
      %1796 = vst.msk [vmem:[#allocation4 + $0x50] sm:$0xff] %vm1785, %v1710
      %1797 = vst.msk [vmem:[#allocation4 + $0x58] sm:$0xff] %vm1785, %v1712
      %1798 = vst.msk [vmem:[#allocation4 + $0x60] sm:$0xff] %vm1785, %v1714
      %1799 = vst.msk [vmem:[#allocation4 + $0x68] sm:$0xff] %vm1785, %v1716
      %1800 = vst.msk [vmem:[#allocation4 + $0x70] sm:$0xff] %vm1785, %v1718
      %1801 = vst.msk [vmem:[#allocation4 + $0x78] sm:$0xff] %vm1785, %v1720
      %1802 = vst.msk [vmem:[#allocation4 + $0x80] sm:$0xff] %vm1785, %v1722
      %1803 = vst.msk [vmem:[#allocation4 + $0x88] sm:$0xff] %vm1785, %v1724
      %1804 = vst.msk [vmem:[#allocation4 + $0x90] sm:$0xff] %vm1785, %v1726
      %1805 = vst.msk [vmem:[#allocation4 + $0x98] sm:$0xff] %vm1785, %v1728
      %1806 = vst.msk [vmem:[#allocation4 + $0xa0] sm:$0xff] %vm1785, %v1730
      %1807 = vst.msk [vmem:[#allocation4 + $0xa8] sm:$0xff] %vm1785, %v1732
      %1808 = vst.msk [vmem:[#allocation4 + $0xb0] sm:$0xff] %vm1785, %v1734
      %1809 = vst.msk [vmem:[#allocation4 + $0xb8] sm:$0xff] %vm1785, %v1736
      %1810 = vst.msk [vmem:[#allocation4 + $0xc0] sm:$0xff] %vm1785, %v1738
      %1811 = vst.msk [vmem:[#allocation4 + $0xc8] sm:$0xff] %vm1785, %v1740
      %1812 = vst.msk [vmem:[#allocation4 + $0xd0] sm:$0xff] %vm1785, %v1742
      %1813 = vst.msk [vmem:[#allocation4 + $0xd8] sm:$0xff] %vm1785, %v1744
      %1814 = vst.msk [vmem:[#allocation4 + $0xe0] sm:$0xff] %vm1785, %v1746
      %1815 = vst.msk [vmem:[#allocation4 + $0xe8] sm:$0xff] %vm1785, %v1748
      %1816 = vst.msk [vmem:[#allocation4 + $0xf0] sm:$0xff] %vm1785, %v1750
      %1817 = vst.msk [vmem:[#allocation4 + $0xf8] sm:$0xff] %vm1785, %v1752
      %v1818 = vld [vmem:[%s1431 + $0x2] sm:$0xff]
      %v1819 = vld [vmem:[%s1431 + $0xa] sm:$0xff]
      %v1820 = vld [vmem:[%s1431 + $0x1a] sm:$0xff]
      %v1821 = vld [vmem:[%s1431 + $0x22] sm:$0xff]
      %v1822 = vld [vmem:[%s1431 + $0x32] sm:$0xff]
      %v1823 = vld [vmem:[%s1431 + $0x3a] sm:$0xff]
      %v1824 = vld [vmem:[%s1431 + $0x4a] sm:$0xff]
      %v1825 = vld [vmem:[%s1431 + $0x52] sm:$0xff]
      %v1826 = vld [vmem:[%s1431 + $0x62] sm:$0xff]
      %v1827 = vld [vmem:[%s1431 + $0x6a] sm:$0xff]
      %v1828 = vld [vmem:[%s1431 + $0x7a] sm:$0xff]
      %v1829 = vld [vmem:[%s1431 + $0x82] sm:$0xff]
      %v1830 = vld [vmem:[%s1431 + $0x92] sm:$0xff]
      %v1831 = vld [vmem:[%s1431 + $0x9a] sm:$0xff]
      %v1832 = vld [vmem:[%s1431 + $0xaa] sm:$0xff]
      %v1833 = vld [vmem:[%s1431 + $0xb2] sm:$0xff]
      %v1834 = vld [vmem:[%s1431 + $0xc2] sm:$0xff]
      %v1835 = vld [vmem:[%s1431 + $0xca] sm:$0xff]
      %v1836 = vld [vmem:[%s1431 + $0xda] sm:$0xff]
      %v1837 = vld [vmem:[%s1431 + $0xe2] sm:$0xff]
      %v1838 = vld [vmem:[%s1431 + $0xf2] sm:$0xff]
      %v1839 = vld [vmem:[%s1431 + $0xfa] sm:$0xff]
      %v1840 = vld [vmem:[%s1431 + $0x10a] sm:$0xff]
      %v1841 = vld [vmem:[%s1431 + $0x112] sm:$0xff]
      %v1842 = vld [vmem:[%s1431 + $0x122] sm:$0xff]
      %v1843 = vld [vmem:[%s1431 + $0x12a] sm:$0xff]
      %v1844 = vld [vmem:[%s1431 + $0x13a] sm:$0xff]
      %v1845 = vld [vmem:[%s1431 + $0x142] sm:$0xff]
      %v1846 = vld [vmem:[%s1431 + $0x152] sm:$0xff]
      %v1847 = vld [vmem:[%s1431 + $0x15a] sm:$0xff]
      %v1848 = vld [vmem:[%s1431 + $0x16a] sm:$0xff]
      %v1849 = vld [vmem:[%s1431 + $0x172] sm:$0xff]
      %1882 = vrot.lane.b32.xlu0 %v1818, 32
      %v1883 = vpop.permute.xlu0 %1882
      %1884 = vrot.lane.b32.xlu0 %v1819, 32
      %v1885 = vpop.permute.xlu0 %1884
      %1886 = vrot.lane.b32.xlu0 %v1820, 32
      %v1887 = vpop.permute.xlu0 %1886
      %1888 = vrot.lane.b32.xlu0 %v1821, 32
      %v1889 = vpop.permute.xlu0 %1888
      %1890 = vrot.lane.b32.xlu0 %v1822, 32
      %v1891 = vpop.permute.xlu0 %1890
      %1892 = vrot.lane.b32.xlu0 %v1823, 32
      %v1893 = vpop.permute.xlu0 %1892
      %1894 = vrot.lane.b32.xlu0 %v1824, 32
      %v1895 = vpop.permute.xlu0 %1894
      %1896 = vrot.lane.b32.xlu0 %v1825, 32
      %v1897 = vpop.permute.xlu0 %1896
      %1898 = vrot.lane.b32.xlu0 %v1826, 32
      %v1899 = vpop.permute.xlu0 %1898
      %1900 = vrot.lane.b32.xlu0 %v1827, 32
      %v1901 = vpop.permute.xlu0 %1900
      %1902 = vrot.lane.b32.xlu0 %v1828, 32
      %v1903 = vpop.permute.xlu0 %1902
      %1904 = vrot.lane.b32.xlu0 %v1829, 32
      %v1905 = vpop.permute.xlu0 %1904
      %1906 = vrot.lane.b32.xlu0 %v1830, 32
      %v1907 = vpop.permute.xlu0 %1906
      %1908 = vrot.lane.b32.xlu0 %v1831, 32
      %v1909 = vpop.permute.xlu0 %1908
      %1910 = vrot.lane.b32.xlu0 %v1832, 32
      %v1911 = vpop.permute.xlu0 %1910
      %1912 = vrot.lane.b32.xlu0 %v1833, 32
      %v1913 = vpop.permute.xlu0 %1912
      %1914 = vrot.lane.b32.xlu0 %v1834, 32
      %v1915 = vpop.permute.xlu0 %1914
      %1916 = vrot.lane.b32.xlu0 %v1835, 32
      %v1917 = vpop.permute.xlu0 %1916
      %1918 = vrot.lane.b32.xlu0 %v1836, 32
      %v1919 = vpop.permute.xlu0 %1918
      %1920 = vrot.lane.b32.xlu0 %v1837, 32
      %v1921 = vpop.permute.xlu0 %1920
      %1922 = vrot.lane.b32.xlu0 %v1838, 32
      %v1923 = vpop.permute.xlu0 %1922
      %1924 = vrot.lane.b32.xlu0 %v1839, 32
      %v1925 = vpop.permute.xlu0 %1924
      %1926 = vrot.lane.b32.xlu0 %v1840, 32
      %v1927 = vpop.permute.xlu0 %1926
      %1928 = vrot.lane.b32.xlu0 %v1841, 32
      %v1929 = vpop.permute.xlu0 %1928
      %1930 = vrot.lane.b32.xlu0 %v1842, 32
      %v1931 = vpop.permute.xlu0 %1930
      %1932 = vrot.lane.b32.xlu0 %v1843, 32
      %v1933 = vpop.permute.xlu0 %1932
      %1934 = vrot.lane.b32.xlu0 %v1844, 32
      %v1935 = vpop.permute.xlu0 %1934
      %1936 = vrot.lane.b32.xlu0 %v1845, 32
      %v1937 = vpop.permute.xlu0 %1936
      %1938 = vrot.lane.b32.xlu0 %v1846, 32
      %v1939 = vpop.permute.xlu0 %1938
      %1940 = vrot.lane.b32.xlu0 %v1847, 32
      %v1941 = vpop.permute.xlu0 %1940
      %1942 = vrot.lane.b32.xlu0 %v1848, 32
      %v1943 = vpop.permute.xlu0 %1942
      %1944 = vrot.lane.b32.xlu0 %v1849, 32
      %v1945 = vpop.permute.xlu0 %1944
      %vm1978 = vcmask 294144
      %1979 = vst.msk [vmem:[#allocation4] sm:$0xff] %vm1978, %v1883
      %1980 = vst.msk [vmem:[#allocation4 + $0x8] sm:$0xff] %vm1978, %v1885
      %1981 = vst.msk [vmem:[#allocation4 + $0x10] sm:$0xff] %vm1978, %v1887
      %1982 = vst.msk [vmem:[#allocation4 + $0x18] sm:$0xff] %vm1978, %v1889
      %1983 = vst.msk [vmem:[#allocation4 + $0x20] sm:$0xff] %vm1978, %v1891
      %1984 = vst.msk [vmem:[#allocation4 + $0x28] sm:$0xff] %vm1978, %v1893
      %1985 = vst.msk [vmem:[#allocation4 + $0x30] sm:$0xff] %vm1978, %v1895
      %1986 = vst.msk [vmem:[#allocation4 + $0x38] sm:$0xff] %vm1978, %v1897
      %1987 = vst.msk [vmem:[#allocation4 + $0x40] sm:$0xff] %vm1978, %v1899
      %1988 = vst.msk [vmem:[#allocation4 + $0x48] sm:$0xff] %vm1978, %v1901
      %1989 = vst.msk [vmem:[#allocation4 + $0x50] sm:$0xff] %vm1978, %v1903
      %1990 = vst.msk [vmem:[#allocation4 + $0x58] sm:$0xff] %vm1978, %v1905
      %1991 = vst.msk [vmem:[#allocation4 + $0x60] sm:$0xff] %vm1978, %v1907
      %1992 = vst.msk [vmem:[#allocation4 + $0x68] sm:$0xff] %vm1978, %v1909
      %1993 = vst.msk [vmem:[#allocation4 + $0x70] sm:$0xff] %vm1978, %v1911
      %1994 = vst.msk [vmem:[#allocation4 + $0x78] sm:$0xff] %vm1978, %v1913
      %1995 = vst.msk [vmem:[#allocation4 + $0x80] sm:$0xff] %vm1978, %v1915
      %1996 = vst.msk [vmem:[#allocation4 + $0x88] sm:$0xff] %vm1978, %v1917
      %1997 = vst.msk [vmem:[#allocation4 + $0x90] sm:$0xff] %vm1978, %v1919
      %1998 = vst.msk [vmem:[#allocation4 + $0x98] sm:$0xff] %vm1978, %v1921
      %1999 = vst.msk [vmem:[#allocation4 + $0xa0] sm:$0xff] %vm1978, %v1923
      %2000 = vst.msk [vmem:[#allocation4 + $0xa8] sm:$0xff] %vm1978, %v1925
      %2001 = vst.msk [vmem:[#allocation4 + $0xb0] sm:$0xff] %vm1978, %v1927
      %2002 = vst.msk [vmem:[#allocation4 + $0xb8] sm:$0xff] %vm1978, %v1929
      %2003 = vst.msk [vmem:[#allocation4 + $0xc0] sm:$0xff] %vm1978, %v1931
      %2004 = vst.msk [vmem:[#allocation4 + $0xc8] sm:$0xff] %vm1978, %v1933
      %2005 = vst.msk [vmem:[#allocation4 + $0xd0] sm:$0xff] %vm1978, %v1935
      %2006 = vst.msk [vmem:[#allocation4 + $0xd8] sm:$0xff] %vm1978, %v1937
      %2007 = vst.msk [vmem:[#allocation4 + $0xe0] sm:$0xff] %vm1978, %v1939
      %2008 = vst.msk [vmem:[#allocation4 + $0xe8] sm:$0xff] %vm1978, %v1941
      %2009 = vst.msk [vmem:[#allocation4 + $0xf0] sm:$0xff] %vm1978, %v1943
      %2010 = vst.msk [vmem:[#allocation4 + $0xf8] sm:$0xff] %vm1978, %v1945
      %v2011 = vld [vmem:[#allocation4] sm:$0xff]
      %v2012 = vld [vmem:[#allocation4 + $0x8] sm:$0xff]
      %v2013 = vld [vmem:[#allocation4 + $0x10] sm:$0xff]
      %v2014 = vld [vmem:[#allocation4 + $0x18] sm:$0xff]
      %v2015 = vld [vmem:[#allocation4 + $0x20] sm:$0xff]
      %v2016 = vld [vmem:[#allocation4 + $0x28] sm:$0xff]
      %v2017 = vld [vmem:[#allocation4 + $0x30] sm:$0xff]
      %v2018 = vld [vmem:[#allocation4 + $0x38] sm:$0xff]
      %v2019 = vld [vmem:[#allocation4 + $0x40] sm:$0xff]
      %v2020 = vld [vmem:[#allocation4 + $0x48] sm:$0xff]
      %v2021 = vld [vmem:[#allocation4 + $0x50] sm:$0xff]
      %v2022 = vld [vmem:[#allocation4 + $0x58] sm:$0xff]
      %v2023 = vld [vmem:[#allocation4 + $0x60] sm:$0xff]
      %v2024 = vld [vmem:[#allocation4 + $0x68] sm:$0xff]
      %v2025 = vld [vmem:[#allocation4 + $0x70] sm:$0xff]
      %v2026 = vld [vmem:[#allocation4 + $0x78] sm:$0xff]
      %v2027 = vld [vmem:[#allocation4 + $0x80] sm:$0xff]
      %v2028 = vld [vmem:[#allocation4 + $0x88] sm:$0xff]
      %v2029 = vld [vmem:[#allocation4 + $0x90] sm:$0xff]
      %v2030 = vld [vmem:[#allocation4 + $0x98] sm:$0xff]
      %v2031 = vld [vmem:[#allocation4 + $0xa0] sm:$0xff]
      %v2032 = vld [vmem:[#allocation4 + $0xa8] sm:$0xff]
      %v2033 = vld [vmem:[#allocation4 + $0xb0] sm:$0xff]
      %v2034 = vld [vmem:[#allocation4 + $0xb8] sm:$0xff]
      %v2035 = vld [vmem:[#allocation4 + $0xc0] sm:$0xff]
      %v2036 = vld [vmem:[#allocation4 + $0xc8] sm:$0xff]
      %v2037 = vld [vmem:[#allocation4 + $0xd0] sm:$0xff]
      %v2038 = vld [vmem:[#allocation4 + $0xd8] sm:$0xff]
      %v2039 = vld [vmem:[#allocation4 + $0xe0] sm:$0xff]
      %v2040 = vld [vmem:[#allocation4 + $0xe8] sm:$0xff]
      %v2041 = vld [vmem:[#allocation4 + $0xf0] sm:$0xff]
      %v2042 = vld [vmem:[#allocation4 + $0xf8] sm:$0xff]
      %v2043 = vld [vmem:[%s1] sm:$0xff]
      %v2044 = vld [vmem:[%s1 + $0x8] sm:$0xff]
      %v2045 = vld [vmem:[%s1 + $0x10] sm:$0xff]
      %v2046 = vld [vmem:[%s1 + $0x18] sm:$0xff]
      %v2047 = vld [vmem:[%s1 + $0x20] sm:$0xf]
      %v2048 = vld [vmem:[%s2] sm:$0x1]
      %v2050 = vlaneseq
      %v2051 = vshrl.u32 %v2050, 7
      %v2052 = vsub.s32 0, %v2051
      %v2053 = vrot.slane %v2048, %v2052
      %vm2055 = vcmask 293888
      %v2057 = vsel %vm2055, %v2011, 0
      %v2060 = vsel %vm2055, %v2012, 0
      %v2063 = vsel %vm2055, %v2013, 0
      %v2066 = vsel %vm2055, %v2014, 0
      %v2069 = vsel %vm2055, %v2015, 0
      %v2072 = vsel %vm2055, %v2016, 0
      %v2075 = vsel %vm2055, %v2017, 0
      %v2078 = vsel %vm2055, %v2018, 0
      %v2081 = vsel %vm2055, %v2019, 0
      %v2084 = vsel %vm2055, %v2020, 0
      %v2087 = vsel %vm2055, %v2021, 0
      %v2090 = vsel %vm2055, %v2022, 0
      %v2093 = vsel %vm2055, %v2023, 0
      %v2096 = vsel %vm2055, %v2024, 0
      %v2099 = vsel %vm2055, %v2025, 0
      %v2102 = vsel %vm2055, %v2026, 0
      %v2105 = vsel %vm2055, %v2027, 0
      %v2108 = vsel %vm2055, %v2028, 0
      %v2111 = vsel %vm2055, %v2029, 0
      %v2114 = vsel %vm2055, %v2030, 0
      %v2117 = vsel %vm2055, %v2031, 0
      %v2120 = vsel %vm2055, %v2032, 0
      %v2123 = vsel %vm2055, %v2033, 0
      %v2126 = vsel %vm2055, %v2034, 0
      %v2129 = vsel %vm2055, %v2035, 0
      %v2132 = vsel %vm2055, %v2036, 0
      %v2135 = vsel %vm2055, %v2037, 0
      %v2138 = vsel %vm2055, %v2038, 0
      %v2141 = vsel %vm2055, %v2039, 0
      %v2144 = vsel %vm2055, %v2040, 0
      %v2147 = vsel %vm2055, %v2041, 0
      %v2150 = vsel %vm2055, %v2042, 0
      %vm2152 = vcmask 1043456
      %v2154 = vsel %vm2152, %v2047, 0
      %2156 = vmatprep.subr.mxu0 0.0
      %2157 = vmatpush1.msra.mxu0 0.0
      %2158 = vmatprep.subr.mxu0 0.0
      %2159 = vmatpush1.msra.mxu0 0.0
      %2160 = vmatprep.subr.mxu0 0.0
      %2161 = vmatpush1.msra.mxu0 0.0
      %2162 = vmatprep.subr.mxu0 0.0
      %2163 = vmatpush1.msra.mxu0 0.0
      %2164 = vmatprep.subr.mxu0 0.0
      %2165 = vmatpush1.msra.mxu0 0.0
      %2166 = vmatprep.subr.mxu0 0.0
      %2167 = vmatpush1.msra.mxu0 0.0
      %2168 = vmatprep.subr.mxu0 0.0
      %2169 = vmatpush1.msra.mxu0 0.0
      %2170 = vmatprep.subr.mxu0 0.0
      %2171 = vmatpush1.msra.mxu0 0.0
      %2172 = vmatprep.subr.mxu0 0.0
      %2173 = vmatpush1.msra.mxu0 0.0
      %2174 = vmatprep.subr.mxu0 0.0
      %2175 = vmatpush1.msra.mxu0 0.0
      %2176 = vmatprep.subr.mxu0 0.0
      %2177 = vmatpush1.msra.mxu0 0.0
      %2178 = vmatprep.subr.mxu0 0.0
      %2179 = vmatpush1.msra.mxu0 %v2154
      %2180 = vmatprep.subr.mxu0 0.0
      %2181 = vmatpush1.msra.mxu0 %v2046
      %2182 = vmatprep.subr.mxu0 0.0
      %2183 = vmatpush1.msra.mxu0 %v2045
      %2184 = vmatprep.subr.mxu0 0.0
      %2185 = vmatpush1.msra.mxu0 %v2044
      %2186 = vmatprep.subr.mxu0 0.0
      %2187 = vmatpush1.msra.mxu0 %v2043
      %2188 = vmatprep.subr.mxu0 0.0
      %2189 = vmatpush2.msra.mxu0 0.0
      %2190 = vmatprep.subr.mxu0 0.0
      %2191 = vmatpush2.msra.mxu0 0.0
      %2192 = vmatprep.subr.mxu0 0.0
      %2193 = vmatpush2.msra.mxu0 0.0
      %2194 = vmatprep.subr.mxu0 0.0
      %2195 = vmatpush2.msra.mxu0 0.0
      %2196 = vmatprep.subr.mxu0 0.0
      %2197 = vmatpush2.msra.mxu0 0.0
      %2198 = vmatprep.subr.mxu0 0.0
      %2199 = vmatpush2.msra.mxu0 0.0
      %2200 = vmatprep.subr.mxu0 0.0
      %2201 = vmatpush2.msra.mxu0 0.0
      %2202 = vmatprep.subr.mxu0 0.0
      %2203 = vmatpush2.msra.mxu0 0.0
      %2204 = vmatprep.subr.mxu0 0.0
      %2205 = vmatpush2.msra.mxu0 0.0
      %2206 = vmatprep.subr.mxu0 0.0
      %2207 = vmatpush2.msra.mxu0 0.0
      %2208 = vmatprep.subr.mxu0 0.0
      %2209 = vmatpush2.msra.mxu0 0.0
      %2210 = vmatprep.subr.mxu0 0.0
      %2211 = vmatpush2.msra.mxu0 0.0
      %2212 = vmatprep.subr.mxu0 0.0
      %2213 = vmatpush2.msra.mxu0 0.0
      %2214 = vmatprep.subr.mxu0 0.0
      %2215 = vmatpush2.msra.mxu0 0.0
      %2216 = vmatprep.subr.mxu0 0.0
      %2217 = vmatpush2.msra.mxu0 0.0
      %2218 = vmatprep.subr.mxu0 0.0
      %2219 = vmatpush2.msra.mxu0 0.0
      %2220 = vmatprep.mubr.f32.mxu0 0.0
      %2221 = vmatmul.mubr.f32.gmra.mxu0 %v2057
      %v2222 = vpop.f32.mrf.mxu0
      %v2223 = vadd.f32 %v2053, %v2222
      %v2224 = vpop.f32.mrf.mxu0
      %2225 = vmatprep.mubr.f32.mxu0 0.0
      %2226 = vmatmul.mubr.f32.gmra.mxu0 %v2060
      %v2227 = vpop.f32.mrf.mxu0
      %v2228 = vadd.f32 %v2053, %v2227
      %v2229 = vpop.f32.mrf.mxu0
      %2230 = vmatprep.mubr.f32.mxu0 0.0
      %2231 = vmatmul.mubr.f32.gmra.mxu0 %v2063
      %v2232 = vpop.f32.mrf.mxu0
      %v2233 = vadd.f32 %v2053, %v2232
      %v2234 = vpop.f32.mrf.mxu0
      %2235 = vmatprep.mubr.f32.mxu0 0.0
      %2236 = vmatmul.mubr.f32.gmra.mxu0 %v2066
      %v2237 = vpop.f32.mrf.mxu0
      %v2238 = vadd.f32 %v2053, %v2237
      %v2239 = vpop.f32.mrf.mxu0
      %2240 = vmatprep.mubr.f32.mxu0 0.0
      %2241 = vmatmul.mubr.f32.gmra.mxu0 %v2069
      %v2242 = vpop.f32.mrf.mxu0
      %v2243 = vadd.f32 %v2053, %v2242
      %v2244 = vpop.f32.mrf.mxu0
      %2245 = vmatprep.mubr.f32.mxu0 0.0
      %2246 = vmatmul.mubr.f32.gmra.mxu0 %v2072
      %v2247 = vpop.f32.mrf.mxu0
      %v2248 = vadd.f32 %v2053, %v2247
      %v2249 = vpop.f32.mrf.mxu0
      %2250 = vmatprep.mubr.f32.mxu0 0.0
      %2251 = vmatmul.mubr.f32.gmra.mxu0 %v2075
      %v2252 = vpop.f32.mrf.mxu0
      %v2253 = vadd.f32 %v2053, %v2252
      %v2254 = vpop.f32.mrf.mxu0
      %2255 = vmatprep.mubr.f32.mxu0 0.0
      %2256 = vmatmul.mubr.f32.gmra.mxu0 %v2078
      %v2257 = vpop.f32.mrf.mxu0
      %v2258 = vadd.f32 %v2053, %v2257
      %v2259 = vpop.f32.mrf.mxu0
      %2260 = vmatprep.mubr.f32.mxu0 0.0
      %2261 = vmatmul.mubr.f32.gmra.mxu0 %v2081
      %v2262 = vpop.f32.mrf.mxu0
      %v2263 = vadd.f32 %v2053, %v2262
      %v2264 = vpop.f32.mrf.mxu0
      %2265 = vmatprep.mubr.f32.mxu0 0.0
      %2266 = vmatmul.mubr.f32.gmra.mxu0 %v2084
      %v2267 = vpop.f32.mrf.mxu0
      %v2268 = vadd.f32 %v2053, %v2267
      %v2269 = vpop.f32.mrf.mxu0
      %2270 = vmatprep.mubr.f32.mxu0 0.0
      %2271 = vmatmul.mubr.f32.gmra.mxu0 %v2087
      %v2272 = vpop.f32.mrf.mxu0
      %v2273 = vadd.f32 %v2053, %v2272
      %v2274 = vpop.f32.mrf.mxu0
      %2275 = vmatprep.mubr.f32.mxu0 0.0
      %2276 = vmatmul.mubr.f32.gmra.mxu0 %v2090
      %v2277 = vpop.f32.mrf.mxu0
      %v2278 = vadd.f32 %v2053, %v2277
      %v2279 = vpop.f32.mrf.mxu0
      %2280 = vmatprep.mubr.f32.mxu0 0.0
      %2281 = vmatmul.mubr.f32.gmra.mxu0 %v2093
      %v2282 = vpop.f32.mrf.mxu0
      %v2283 = vadd.f32 %v2053, %v2282
      %v2284 = vpop.f32.mrf.mxu0
      %2285 = vmatprep.mubr.f32.mxu0 0.0
      %2286 = vmatmul.mubr.f32.gmra.mxu0 %v2096
      %v2287 = vpop.f32.mrf.mxu0
      %v2288 = vadd.f32 %v2053, %v2287
      %v2289 = vpop.f32.mrf.mxu0
      %2290 = vmatprep.mubr.f32.mxu0 0.0
      %2291 = vmatmul.mubr.f32.gmra.mxu0 %v2099
      %v2292 = vpop.f32.mrf.mxu0
      %v2293 = vadd.f32 %v2053, %v2292
      %v2294 = vpop.f32.mrf.mxu0
      %2295 = vmatprep.mubr.f32.mxu0 0.0
      %2296 = vmatmul.mubr.f32.gmra.mxu0 %v2102
      %v2297 = vpop.f32.mrf.mxu0
      %v2298 = vadd.f32 %v2053, %v2297
      %v2299 = vpop.f32.mrf.mxu0
      %2300 = vmatprep.mubr.f32.mxu0 0.0
      %2301 = vmatmul.mubr.f32.gmra.mxu0 %v2105
      %v2302 = vpop.f32.mrf.mxu0
      %v2303 = vadd.f32 %v2053, %v2302
      %v2304 = vpop.f32.mrf.mxu0
      %2305 = vmatprep.mubr.f32.mxu0 0.0
      %2306 = vmatmul.mubr.f32.gmra.mxu0 %v2108
      %v2307 = vpop.f32.mrf.mxu0
      %v2308 = vadd.f32 %v2053, %v2307
      %v2309 = vpop.f32.mrf.mxu0
      %2310 = vmatprep.mubr.f32.mxu0 0.0
      %2311 = vmatmul.mubr.f32.gmra.mxu0 %v2111
      %v2312 = vpop.f32.mrf.mxu0
      %v2313 = vadd.f32 %v2053, %v2312
      %v2314 = vpop.f32.mrf.mxu0
      %2315 = vmatprep.mubr.f32.mxu0 0.0
      %2316 = vmatmul.mubr.f32.gmra.mxu0 %v2114
      %v2317 = vpop.f32.mrf.mxu0
      %v2318 = vadd.f32 %v2053, %v2317
      %v2319 = vpop.f32.mrf.mxu0
      %2320 = vmatprep.mubr.f32.mxu0 0.0
      %2321 = vmatmul.mubr.f32.gmra.mxu0 %v2117
      %v2322 = vpop.f32.mrf.mxu0
      %v2323 = vadd.f32 %v2053, %v2322
      %v2324 = vpop.f32.mrf.mxu0
      %2325 = vmatprep.mubr.f32.mxu0 0.0
      %2326 = vmatmul.mubr.f32.gmra.mxu0 %v2120
      %v2327 = vpop.f32.mrf.mxu0
      %v2328 = vadd.f32 %v2053, %v2327
      %v2329 = vpop.f32.mrf.mxu0
      %2330 = vmatprep.mubr.f32.mxu0 0.0
      %2331 = vmatmul.mubr.f32.gmra.mxu0 %v2123
      %v2332 = vpop.f32.mrf.mxu0
      %v2333 = vadd.f32 %v2053, %v2332
      %v2334 = vpop.f32.mrf.mxu0
      %2335 = vmatprep.mubr.f32.mxu0 0.0
      %2336 = vmatmul.mubr.f32.gmra.mxu0 %v2126
      %v2337 = vpop.f32.mrf.mxu0
      %v2338 = vadd.f32 %v2053, %v2337
      %v2339 = vpop.f32.mrf.mxu0
      %2340 = vmatprep.mubr.f32.mxu0 0.0
      %2341 = vmatmul.mubr.f32.gmra.mxu0 %v2129
      %v2342 = vpop.f32.mrf.mxu0
      %v2343 = vadd.f32 %v2053, %v2342
      %v2344 = vpop.f32.mrf.mxu0
      %2345 = vmatprep.mubr.f32.mxu0 0.0
      %2346 = vmatmul.mubr.f32.gmra.mxu0 %v2132
      %v2347 = vpop.f32.mrf.mxu0
      %v2348 = vadd.f32 %v2053, %v2347
      %v2349 = vpop.f32.mrf.mxu0
      %2350 = vmatprep.mubr.f32.mxu0 0.0
      %2351 = vmatmul.mubr.f32.gmra.mxu0 %v2135
      %v2352 = vpop.f32.mrf.mxu0
      %v2353 = vadd.f32 %v2053, %v2352
      %v2354 = vpop.f32.mrf.mxu0
      %2355 = vmatprep.mubr.f32.mxu0 0.0
      %2356 = vmatmul.mubr.f32.gmra.mxu0 %v2138
      %v2357 = vpop.f32.mrf.mxu0
      %v2358 = vadd.f32 %v2053, %v2357
      %v2359 = vpop.f32.mrf.mxu0
      %2360 = vmatprep.mubr.f32.mxu0 0.0
      %2361 = vmatmul.mubr.f32.gmra.mxu0 %v2141
      %v2362 = vpop.f32.mrf.mxu0
      %v2363 = vadd.f32 %v2053, %v2362
      %v2364 = vpop.f32.mrf.mxu0
      %2365 = vmatprep.mubr.f32.mxu0 0.0
      %2366 = vmatmul.mubr.f32.gmra.mxu0 %v2144
      %v2367 = vpop.f32.mrf.mxu0
      %v2368 = vadd.f32 %v2053, %v2367
      %v2369 = vpop.f32.mrf.mxu0
      %2370 = vmatprep.mubr.f32.mxu0 0.0
      %2371 = vmatmul.mubr.f32.gmra.mxu0 %v2147
      %v2372 = vpop.f32.mrf.mxu0
      %v2373 = vadd.f32 %v2053, %v2372
      %v2374 = vpop.f32.mrf.mxu0
      %2375 = vmatprep.mubr.f32.mxu0 0.0
      %2376 = vmatmul.mubr.f32.gmra.mxu0 %v2150
      %v2377 = vpop.f32.mrf.mxu0
      %v2378 = vadd.f32 %v2053, %v2377
      %v2379 = vpop.f32.mrf.mxu0
      %2380 = vdwg.mxu0
      %v2381 = vmax.f32 %v2223, 0.0
      %v2382 = vmax.f32 %v2228, 0.0
      %v2383 = vmax.f32 %v2233, 0.0
      %v2384 = vmax.f32 %v2238, 0.0
      %v2385 = vmax.f32 %v2243, 0.0
      %v2386 = vmax.f32 %v2248, 0.0
      %v2387 = vmax.f32 %v2253, 0.0
      %v2388 = vmax.f32 %v2258, 0.0
      %v2389 = vmax.f32 %v2263, 0.0
      %v2390 = vmax.f32 %v2268, 0.0
      %v2391 = vmax.f32 %v2273, 0.0
      %v2392 = vmax.f32 %v2278, 0.0
      %v2393 = vmax.f32 %v2283, 0.0
      %v2394 = vmax.f32 %v2288, 0.0
      %v2395 = vmax.f32 %v2293, 0.0
      %v2396 = vmax.f32 %v2298, 0.0
      %v2397 = vmax.f32 %v2303, 0.0
      %v2398 = vmax.f32 %v2308, 0.0
      %v2399 = vmax.f32 %v2313, 0.0
      %v2400 = vmax.f32 %v2318, 0.0
      %v2401 = vmax.f32 %v2323, 0.0
      %v2402 = vmax.f32 %v2328, 0.0
      %v2403 = vmax.f32 %v2333, 0.0
      %v2404 = vmax.f32 %v2338, 0.0
      %v2405 = vmax.f32 %v2343, 0.0
      %v2406 = vmax.f32 %v2348, 0.0
      %v2407 = vmax.f32 %v2353, 0.0
      %v2408 = vmax.f32 %v2358, 0.0
      %v2409 = vmax.f32 %v2363, 0.0
      %v2410 = vmax.f32 %v2368, 0.0
      %v2411 = vmax.f32 %v2373, 0.0
      %v2412 = vmax.f32 %v2378, 0.0
      %s2413 = scalar_lea.vmem [#allocation3], 24
      %2414 = vst.msk [vmem:[%s2413 + $0x1] sm:$0xff] %vm281, %v2381
      %2415 = vst.msk [vmem:[%s2413 + $0x9] sm:$0xff] %vm281, %v2382
      %2416 = vst.msk [vmem:[%s2413 + $0x19] sm:$0xff] %vm281, %v2383
      %2417 = vst.msk [vmem:[%s2413 + $0x21] sm:$0xff] %vm281, %v2384
      %2418 = vst.msk [vmem:[%s2413 + $0x31] sm:$0xff] %vm281, %v2385
      %2419 = vst.msk [vmem:[%s2413 + $0x39] sm:$0xff] %vm281, %v2386
      %2420 = vst.msk [vmem:[%s2413 + $0x49] sm:$0xff] %vm281, %v2387
      %2421 = vst.msk [vmem:[%s2413 + $0x51] sm:$0xff] %vm281, %v2388
      %2422 = vst.msk [vmem:[%s2413 + $0x61] sm:$0xff] %vm281, %v2389
      %2423 = vst.msk [vmem:[%s2413 + $0x69] sm:$0xff] %vm281, %v2390
      %2424 = vst.msk [vmem:[%s2413 + $0x79] sm:$0xff] %vm281, %v2391
      %2425 = vst.msk [vmem:[%s2413 + $0x81] sm:$0xff] %vm281, %v2392
      %2426 = vst.msk [vmem:[%s2413 + $0x91] sm:$0xff] %vm281, %v2393
      %2427 = vst.msk [vmem:[%s2413 + $0x99] sm:$0xff] %vm281, %v2394
      %2428 = vst.msk [vmem:[%s2413 + $0xa9] sm:$0xff] %vm281, %v2395
      %2429 = vst.msk [vmem:[%s2413 + $0xb1] sm:$0xff] %vm281, %v2396
      %2430 = vst.msk [vmem:[%s2413 + $0xc1] sm:$0xff] %vm281, %v2397
      %2431 = vst.msk [vmem:[%s2413 + $0xc9] sm:$0xff] %vm281, %v2398
      %2432 = vst.msk [vmem:[%s2413 + $0xd9] sm:$0xff] %vm281, %v2399
      %2433 = vst.msk [vmem:[%s2413 + $0xe1] sm:$0xff] %vm281, %v2400
      %2434 = vst.msk [vmem:[%s2413 + $0xf1] sm:$0xff] %vm281, %v2401
      %2435 = vst.msk [vmem:[%s2413 + $0xf9] sm:$0xff] %vm281, %v2402
      %2436 = vst.msk [vmem:[%s2413 + $0x109] sm:$0xff] %vm281, %v2403
      %2437 = vst.msk [vmem:[%s2413 + $0x111] sm:$0xff] %vm281, %v2404
      %2438 = vst.msk [vmem:[%s2413 + $0x121] sm:$0xff] %vm281, %v2405
      %2439 = vst.msk [vmem:[%s2413 + $0x129] sm:$0xff] %vm281, %v2406
      %2440 = vst.msk [vmem:[%s2413 + $0x139] sm:$0xff] %vm281, %v2407
      %2441 = vst.msk [vmem:[%s2413 + $0x141] sm:$0xff] %vm281, %v2408
      %2442 = vst.msk [vmem:[%s2413 + $0x151] sm:$0xff] %vm281, %v2409
      %2443 = vst.msk [vmem:[%s2413 + $0x159] sm:$0xff] %vm281, %v2410
      %2444 = vst.msk [vmem:[%s2413 + $0x169] sm:$0xff] %vm281, %v2411
      %2445 = vst.msk [vmem:[%s2413 + $0x171] sm:$0xff] %vm281, %v2412
      %v2446 = vld [vmem:[#allocation3] sm:$0xff]
      %v2447 = vld [vmem:[#allocation3 + $0x8] sm:$0xff]
      %v2448 = vld [vmem:[#allocation3 + $0x18] sm:$0xff]
      %v2449 = vld [vmem:[#allocation3 + $0x20] sm:$0xff]
      %v2450 = vld [vmem:[#allocation3 + $0x30] sm:$0xff]
      %v2451 = vld [vmem:[#allocation3 + $0x38] sm:$0xff]
      %v2452 = vld [vmem:[#allocation3 + $0x48] sm:$0xff]
      %v2453 = vld [vmem:[#allocation3 + $0x50] sm:$0xff]
      %v2454 = vld [vmem:[#allocation3 + $0x60] sm:$0xff]
      %v2455 = vld [vmem:[#allocation3 + $0x68] sm:$0xff]
      %v2456 = vld [vmem:[#allocation3 + $0x78] sm:$0xff]
      %v2457 = vld [vmem:[#allocation3 + $0x80] sm:$0xff]
      %v2458 = vld [vmem:[#allocation3 + $0x90] sm:$0xff]
      %v2459 = vld [vmem:[#allocation3 + $0x98] sm:$0xff]
      %v2460 = vld [vmem:[#allocation3 + $0xa8] sm:$0xff]
      %v2461 = vld [vmem:[#allocation3 + $0xb0] sm:$0xff]
      %v2462 = vld [vmem:[#allocation3 + $0xc0] sm:$0xff]
      %v2463 = vld [vmem:[#allocation3 + $0xc8] sm:$0xff]
      %v2464 = vld [vmem:[#allocation3 + $0xd8] sm:$0xff]
      %v2465 = vld [vmem:[#allocation3 + $0xe0] sm:$0xff]
      %v2466 = vld [vmem:[#allocation3 + $0xf0] sm:$0xff]
      %v2467 = vld [vmem:[#allocation3 + $0xf8] sm:$0xff]
      %v2468 = vld [vmem:[#allocation3 + $0x108] sm:$0xff]
      %v2469 = vld [vmem:[#allocation3 + $0x110] sm:$0xff]
      %v2470 = vld [vmem:[#allocation3 + $0x120] sm:$0xff]
      %v2471 = vld [vmem:[#allocation3 + $0x128] sm:$0xff]
      %v2472 = vld [vmem:[#allocation3 + $0x138] sm:$0xff]
      %v2473 = vld [vmem:[#allocation3 + $0x140] sm:$0xff]
      %v2474 = vld [vmem:[#allocation3 + $0x150] sm:$0xff]
      %v2475 = vld [vmem:[#allocation3 + $0x158] sm:$0xff]
      %v2476 = vld [vmem:[#allocation3 + $0x168] sm:$0xff]
      %v2477 = vld [vmem:[#allocation3 + $0x170] sm:$0xff]
      %2478 = vst.msk [vmem:[#allocation5] sm:$0xff] %vm281, %v2446
      %2479 = vst.msk [vmem:[#allocation5 + $0x8] sm:$0xff] %vm281, %v2447
      %2480 = vst.msk [vmem:[#allocation5 + $0x10] sm:$0xff] %vm281, %v2448
      %2481 = vst.msk [vmem:[#allocation5 + $0x18] sm:$0xff] %vm281, %v2449
      %2482 = vst.msk [vmem:[#allocation5 + $0x20] sm:$0xff] %vm281, %v2450
      %2483 = vst.msk [vmem:[#allocation5 + $0x28] sm:$0xff] %vm281, %v2451
      %2484 = vst.msk [vmem:[#allocation5 + $0x30] sm:$0xff] %vm281, %v2452
      %2485 = vst.msk [vmem:[#allocation5 + $0x38] sm:$0xff] %vm281, %v2453
      %2486 = vst.msk [vmem:[#allocation5 + $0x40] sm:$0xff] %vm281, %v2454
      %2487 = vst.msk [vmem:[#allocation5 + $0x48] sm:$0xff] %vm281, %v2455
      %2488 = vst.msk [vmem:[#allocation5 + $0x50] sm:$0xff] %vm281, %v2456
      %2489 = vst.msk [vmem:[#allocation5 + $0x58] sm:$0xff] %vm281, %v2457
      %2490 = vst.msk [vmem:[#allocation5 + $0x60] sm:$0xff] %vm281, %v2458
      %2491 = vst.msk [vmem:[#allocation5 + $0x68] sm:$0xff] %vm281, %v2459
      %2492 = vst.msk [vmem:[#allocation5 + $0x70] sm:$0xff] %vm281, %v2460
      %2493 = vst.msk [vmem:[#allocation5 + $0x78] sm:$0xff] %vm281, %v2461
      %2494 = vst.msk [vmem:[#allocation5 + $0x80] sm:$0xff] %vm281, %v2462
      %2495 = vst.msk [vmem:[#allocation5 + $0x88] sm:$0xff] %vm281, %v2463
      %2496 = vst.msk [vmem:[#allocation5 + $0x90] sm:$0xff] %vm281, %v2464
      %2497 = vst.msk [vmem:[#allocation5 + $0x98] sm:$0xff] %vm281, %v2465
      %2498 = vst.msk [vmem:[#allocation5 + $0xa0] sm:$0xff] %vm281, %v2466
      %2499 = vst.msk [vmem:[#allocation5 + $0xa8] sm:$0xff] %vm281, %v2467
      %2500 = vst.msk [vmem:[#allocation5 + $0xb0] sm:$0xff] %vm281, %v2468
      %2501 = vst.msk [vmem:[#allocation5 + $0xb8] sm:$0xff] %vm281, %v2469
      %2502 = vst.msk [vmem:[#allocation5 + $0xc0] sm:$0xff] %vm281, %v2470
      %2503 = vst.msk [vmem:[#allocation5 + $0xc8] sm:$0xff] %vm281, %v2471
      %2504 = vst.msk [vmem:[#allocation5 + $0xd0] sm:$0xff] %vm281, %v2472
      %2505 = vst.msk [vmem:[#allocation5 + $0xd8] sm:$0xff] %vm281, %v2473
      %2506 = vst.msk [vmem:[#allocation5 + $0xe0] sm:$0xff] %vm281, %v2474
      %2507 = vst.msk [vmem:[#allocation5 + $0xe8] sm:$0xff] %vm281, %v2475
      %2508 = vst.msk [vmem:[#allocation5 + $0xf0] sm:$0xff] %vm281, %v2476
      %2509 = vst.msk [vmem:[#allocation5 + $0xf8] sm:$0xff] %vm281, %v2477
      %v2510 = vld [vmem:[#allocation3 + $0x1] sm:$0xff]
      %v2511 = vld [vmem:[#allocation3 + $0x9] sm:$0xff]
      %v2512 = vld [vmem:[#allocation3 + $0x19] sm:$0xff]
      %v2513 = vld [vmem:[#allocation3 + $0x21] sm:$0xff]
      %v2514 = vld [vmem:[#allocation3 + $0x31] sm:$0xff]
      %v2515 = vld [vmem:[#allocation3 + $0x39] sm:$0xff]
      %v2516 = vld [vmem:[#allocation3 + $0x49] sm:$0xff]
      %v2517 = vld [vmem:[#allocation3 + $0x51] sm:$0xff]
      %v2518 = vld [vmem:[#allocation3 + $0x61] sm:$0xff]
      %v2519 = vld [vmem:[#allocation3 + $0x69] sm:$0xff]
      %v2520 = vld [vmem:[#allocation3 + $0x79] sm:$0xff]
      %v2521 = vld [vmem:[#allocation3 + $0x81] sm:$0xff]
      %v2522 = vld [vmem:[#allocation3 + $0x91] sm:$0xff]
      %v2523 = vld [vmem:[#allocation3 + $0x99] sm:$0xff]
      %v2524 = vld [vmem:[#allocation3 + $0xa9] sm:$0xff]
      %v2525 = vld [vmem:[#allocation3 + $0xb1] sm:$0xff]
      %v2526 = vld [vmem:[#allocation3 + $0xc1] sm:$0xff]
      %v2527 = vld [vmem:[#allocation3 + $0xc9] sm:$0xff]
      %v2528 = vld [vmem:[#allocation3 + $0xd9] sm:$0xff]
      %v2529 = vld [vmem:[#allocation3 + $0xe1] sm:$0xff]
      %v2530 = vld [vmem:[#allocation3 + $0xf1] sm:$0xff]
      %v2531 = vld [vmem:[#allocation3 + $0xf9] sm:$0xff]
      %v2532 = vld [vmem:[#allocation3 + $0x109] sm:$0xff]
      %v2533 = vld [vmem:[#allocation3 + $0x111] sm:$0xff]
      %v2534 = vld [vmem:[#allocation3 + $0x121] sm:$0xff]
      %v2535 = vld [vmem:[#allocation3 + $0x129] sm:$0xff]
      %v2536 = vld [vmem:[#allocation3 + $0x139] sm:$0xff]
      %v2537 = vld [vmem:[#allocation3 + $0x141] sm:$0xff]
      %v2538 = vld [vmem:[#allocation3 + $0x151] sm:$0xff]
      %v2539 = vld [vmem:[#allocation3 + $0x159] sm:$0xff]
      %v2540 = vld [vmem:[#allocation3 + $0x169] sm:$0xff]
      %v2541 = vld [vmem:[#allocation3 + $0x171] sm:$0xff]
      %2574 = vrot.lane.b32.xlu0 %v2510, 8
      %v2575 = vpop.permute.xlu0 %2574
      %2576 = vrot.lane.b32.xlu0 %v2511, 8
      %v2577 = vpop.permute.xlu0 %2576
      %2578 = vrot.lane.b32.xlu0 %v2512, 8
      %v2579 = vpop.permute.xlu0 %2578
      %2580 = vrot.lane.b32.xlu0 %v2513, 8
      %v2581 = vpop.permute.xlu0 %2580
      %2582 = vrot.lane.b32.xlu0 %v2514, 8
      %v2583 = vpop.permute.xlu0 %2582
      %2584 = vrot.lane.b32.xlu0 %v2515, 8
      %v2585 = vpop.permute.xlu0 %2584
      %2586 = vrot.lane.b32.xlu0 %v2516, 8
      %v2587 = vpop.permute.xlu0 %2586
      %2588 = vrot.lane.b32.xlu0 %v2517, 8
      %v2589 = vpop.permute.xlu0 %2588
      %2590 = vrot.lane.b32.xlu0 %v2518, 8
      %v2591 = vpop.permute.xlu0 %2590
      %2592 = vrot.lane.b32.xlu0 %v2519, 8
      %v2593 = vpop.permute.xlu0 %2592
      %2594 = vrot.lane.b32.xlu0 %v2520, 8
      %v2595 = vpop.permute.xlu0 %2594
      %2596 = vrot.lane.b32.xlu0 %v2521, 8
      %v2597 = vpop.permute.xlu0 %2596
      %2598 = vrot.lane.b32.xlu0 %v2522, 8
      %v2599 = vpop.permute.xlu0 %2598
      %2600 = vrot.lane.b32.xlu0 %v2523, 8
      %v2601 = vpop.permute.xlu0 %2600
      %2602 = vrot.lane.b32.xlu0 %v2524, 8
      %v2603 = vpop.permute.xlu0 %2602
      %2604 = vrot.lane.b32.xlu0 %v2525, 8
      %v2605 = vpop.permute.xlu0 %2604
      %2606 = vrot.lane.b32.xlu0 %v2526, 8
      %v2607 = vpop.permute.xlu0 %2606
      %2608 = vrot.lane.b32.xlu0 %v2527, 8
      %v2609 = vpop.permute.xlu0 %2608
      %2610 = vrot.lane.b32.xlu0 %v2528, 8
      %v2611 = vpop.permute.xlu0 %2610
      %2612 = vrot.lane.b32.xlu0 %v2529, 8
      %v2613 = vpop.permute.xlu0 %2612
      %2614 = vrot.lane.b32.xlu0 %v2530, 8
      %v2615 = vpop.permute.xlu0 %2614
      %2616 = vrot.lane.b32.xlu0 %v2531, 8
      %v2617 = vpop.permute.xlu0 %2616
      %2618 = vrot.lane.b32.xlu0 %v2532, 8
      %v2619 = vpop.permute.xlu0 %2618
      %2620 = vrot.lane.b32.xlu0 %v2533, 8
      %v2621 = vpop.permute.xlu0 %2620
      %2622 = vrot.lane.b32.xlu0 %v2534, 8
      %v2623 = vpop.permute.xlu0 %2622
      %2624 = vrot.lane.b32.xlu0 %v2535, 8
      %v2625 = vpop.permute.xlu0 %2624
      %2626 = vrot.lane.b32.xlu0 %v2536, 8
      %v2627 = vpop.permute.xlu0 %2626
      %2628 = vrot.lane.b32.xlu0 %v2537, 8
      %v2629 = vpop.permute.xlu0 %2628
      %2630 = vrot.lane.b32.xlu0 %v2538, 8
      %v2631 = vpop.permute.xlu0 %2630
      %2632 = vrot.lane.b32.xlu0 %v2539, 8
      %v2633 = vpop.permute.xlu0 %2632
      %2634 = vrot.lane.b32.xlu0 %v2540, 8
      %v2635 = vpop.permute.xlu0 %2634
      %2636 = vrot.lane.b32.xlu0 %v2541, 8
      %v2637 = vpop.permute.xlu0 %2636
      %vm2670 = vcmask 130112
      %2671 = vst.msk [vmem:[#allocation5] sm:$0xff] %vm2670, %v2575
      %2672 = vst.msk [vmem:[#allocation5 + $0x8] sm:$0xff] %vm2670, %v2577
      %2673 = vst.msk [vmem:[#allocation5 + $0x10] sm:$0xff] %vm2670, %v2579
      %2674 = vst.msk [vmem:[#allocation5 + $0x18] sm:$0xff] %vm2670, %v2581
      %2675 = vst.msk [vmem:[#allocation5 + $0x20] sm:$0xff] %vm2670, %v2583
      %2676 = vst.msk [vmem:[#allocation5 + $0x28] sm:$0xff] %vm2670, %v2585
      %2677 = vst.msk [vmem:[#allocation5 + $0x30] sm:$0xff] %vm2670, %v2587
      %2678 = vst.msk [vmem:[#allocation5 + $0x38] sm:$0xff] %vm2670, %v2589
      %2679 = vst.msk [vmem:[#allocation5 + $0x40] sm:$0xff] %vm2670, %v2591
      %2680 = vst.msk [vmem:[#allocation5 + $0x48] sm:$0xff] %vm2670, %v2593
      %2681 = vst.msk [vmem:[#allocation5 + $0x50] sm:$0xff] %vm2670, %v2595
      %2682 = vst.msk [vmem:[#allocation5 + $0x58] sm:$0xff] %vm2670, %v2597
      %2683 = vst.msk [vmem:[#allocation5 + $0x60] sm:$0xff] %vm2670, %v2599
      %2684 = vst.msk [vmem:[#allocation5 + $0x68] sm:$0xff] %vm2670, %v2601
      %2685 = vst.msk [vmem:[#allocation5 + $0x70] sm:$0xff] %vm2670, %v2603
      %2686 = vst.msk [vmem:[#allocation5 + $0x78] sm:$0xff] %vm2670, %v2605
      %2687 = vst.msk [vmem:[#allocation5 + $0x80] sm:$0xff] %vm2670, %v2607
      %2688 = vst.msk [vmem:[#allocation5 + $0x88] sm:$0xff] %vm2670, %v2609
      %2689 = vst.msk [vmem:[#allocation5 + $0x90] sm:$0xff] %vm2670, %v2611
      %2690 = vst.msk [vmem:[#allocation5 + $0x98] sm:$0xff] %vm2670, %v2613
      %2691 = vst.msk [vmem:[#allocation5 + $0xa0] sm:$0xff] %vm2670, %v2615
      %2692 = vst.msk [vmem:[#allocation5 + $0xa8] sm:$0xff] %vm2670, %v2617
      %2693 = vst.msk [vmem:[#allocation5 + $0xb0] sm:$0xff] %vm2670, %v2619
      %2694 = vst.msk [vmem:[#allocation5 + $0xb8] sm:$0xff] %vm2670, %v2621
      %2695 = vst.msk [vmem:[#allocation5 + $0xc0] sm:$0xff] %vm2670, %v2623
      %2696 = vst.msk [vmem:[#allocation5 + $0xc8] sm:$0xff] %vm2670, %v2625
      %2697 = vst.msk [vmem:[#allocation5 + $0xd0] sm:$0xff] %vm2670, %v2627
      %2698 = vst.msk [vmem:[#allocation5 + $0xd8] sm:$0xff] %vm2670, %v2629
      %2699 = vst.msk [vmem:[#allocation5 + $0xe0] sm:$0xff] %vm2670, %v2631
      %2700 = vst.msk [vmem:[#allocation5 + $0xe8] sm:$0xff] %vm2670, %v2633
      %2701 = vst.msk [vmem:[#allocation5 + $0xf0] sm:$0xff] %vm2670, %v2635
      %2702 = vst.msk [vmem:[#allocation5 + $0xf8] sm:$0xff] %vm2670, %v2637
      %v2703 = vld [vmem:[#allocation3 + $0x2] sm:$0xff]
      %v2704 = vld [vmem:[#allocation3 + $0xa] sm:$0xff]
      %v2705 = vld [vmem:[#allocation3 + $0x1a] sm:$0xff]
      %v2706 = vld [vmem:[#allocation3 + $0x22] sm:$0xff]
      %v2707 = vld [vmem:[#allocation3 + $0x32] sm:$0xff]
      %v2708 = vld [vmem:[#allocation3 + $0x3a] sm:$0xff]
      %v2709 = vld [vmem:[#allocation3 + $0x4a] sm:$0xff]
      %v2710 = vld [vmem:[#allocation3 + $0x52] sm:$0xff]
      %v2711 = vld [vmem:[#allocation3 + $0x62] sm:$0xff]
      %v2712 = vld [vmem:[#allocation3 + $0x6a] sm:$0xff]
      %v2713 = vld [vmem:[#allocation3 + $0x7a] sm:$0xff]
      %v2714 = vld [vmem:[#allocation3 + $0x82] sm:$0xff]
      %v2715 = vld [vmem:[#allocation3 + $0x92] sm:$0xff]
      %v2716 = vld [vmem:[#allocation3 + $0x9a] sm:$0xff]
      %v2717 = vld [vmem:[#allocation3 + $0xaa] sm:$0xff]
      %v2718 = vld [vmem:[#allocation3 + $0xb2] sm:$0xff]
      %v2719 = vld [vmem:[#allocation3 + $0xc2] sm:$0xff]
      %v2720 = vld [vmem:[#allocation3 + $0xca] sm:$0xff]
      %v2721 = vld [vmem:[#allocation3 + $0xda] sm:$0xff]
      %v2722 = vld [vmem:[#allocation3 + $0xe2] sm:$0xff]
      %v2723 = vld [vmem:[#allocation3 + $0xf2] sm:$0xff]
      %v2724 = vld [vmem:[#allocation3 + $0xfa] sm:$0xff]
      %v2725 = vld [vmem:[#allocation3 + $0x10a] sm:$0xff]
      %v2726 = vld [vmem:[#allocation3 + $0x112] sm:$0xff]
      %v2727 = vld [vmem:[#allocation3 + $0x122] sm:$0xff]
      %v2728 = vld [vmem:[#allocation3 + $0x12a] sm:$0xff]
      %v2729 = vld [vmem:[#allocation3 + $0x13a] sm:$0xff]
      %v2730 = vld [vmem:[#allocation3 + $0x142] sm:$0xff]
      %v2731 = vld [vmem:[#allocation3 + $0x152] sm:$0xff]
      %v2732 = vld [vmem:[#allocation3 + $0x15a] sm:$0xff]
      %v2733 = vld [vmem:[#allocation3 + $0x16a] sm:$0xff]
      %v2734 = vld [vmem:[#allocation3 + $0x172] sm:$0xff]
      %2767 = vrot.lane.b32.xlu0 %v2703, 16
      %v2768 = vpop.permute.xlu0 %2767
      %2769 = vrot.lane.b32.xlu0 %v2704, 16
      %v2770 = vpop.permute.xlu0 %2769
      %2771 = vrot.lane.b32.xlu0 %v2705, 16
      %v2772 = vpop.permute.xlu0 %2771
      %2773 = vrot.lane.b32.xlu0 %v2706, 16
      %v2774 = vpop.permute.xlu0 %2773
      %2775 = vrot.lane.b32.xlu0 %v2707, 16
      %v2776 = vpop.permute.xlu0 %2775
      %2777 = vrot.lane.b32.xlu0 %v2708, 16
      %v2778 = vpop.permute.xlu0 %2777
      %2779 = vrot.lane.b32.xlu0 %v2709, 16
      %v2780 = vpop.permute.xlu0 %2779
      %2781 = vrot.lane.b32.xlu0 %v2710, 16
      %v2782 = vpop.permute.xlu0 %2781
      %2783 = vrot.lane.b32.xlu0 %v2711, 16
      %v2784 = vpop.permute.xlu0 %2783
      %2785 = vrot.lane.b32.xlu0 %v2712, 16
      %v2786 = vpop.permute.xlu0 %2785
      %2787 = vrot.lane.b32.xlu0 %v2713, 16
      %v2788 = vpop.permute.xlu0 %2787
      %2789 = vrot.lane.b32.xlu0 %v2714, 16
      %v2790 = vpop.permute.xlu0 %2789
      %2791 = vrot.lane.b32.xlu0 %v2715, 16
      %v2792 = vpop.permute.xlu0 %2791
      %2793 = vrot.lane.b32.xlu0 %v2716, 16
      %v2794 = vpop.permute.xlu0 %2793
      %2795 = vrot.lane.b32.xlu0 %v2717, 16
      %v2796 = vpop.permute.xlu0 %2795
      %2797 = vrot.lane.b32.xlu0 %v2718, 16
      %v2798 = vpop.permute.xlu0 %2797
      %2799 = vrot.lane.b32.xlu0 %v2719, 16
      %v2800 = vpop.permute.xlu0 %2799
      %2801 = vrot.lane.b32.xlu0 %v2720, 16
      %v2802 = vpop.permute.xlu0 %2801
      %2803 = vrot.lane.b32.xlu0 %v2721, 16
      %v2804 = vpop.permute.xlu0 %2803
      %2805 = vrot.lane.b32.xlu0 %v2722, 16
      %v2806 = vpop.permute.xlu0 %2805
      %2807 = vrot.lane.b32.xlu0 %v2723, 16
      %v2808 = vpop.permute.xlu0 %2807
      %2809 = vrot.lane.b32.xlu0 %v2724, 16
      %v2810 = vpop.permute.xlu0 %2809
      %2811 = vrot.lane.b32.xlu0 %v2725, 16
      %v2812 = vpop.permute.xlu0 %2811
      %2813 = vrot.lane.b32.xlu0 %v2726, 16
      %v2814 = vpop.permute.xlu0 %2813
      %2815 = vrot.lane.b32.xlu0 %v2727, 16
      %v2816 = vpop.permute.xlu0 %2815
      %2817 = vrot.lane.b32.xlu0 %v2728, 16
      %v2818 = vpop.permute.xlu0 %2817
      %2819 = vrot.lane.b32.xlu0 %v2729, 16
      %v2820 = vpop.permute.xlu0 %2819
      %2821 = vrot.lane.b32.xlu0 %v2730, 16
      %v2822 = vpop.permute.xlu0 %2821
      %2823 = vrot.lane.b32.xlu0 %v2731, 16
      %v2824 = vpop.permute.xlu0 %2823
      %2825 = vrot.lane.b32.xlu0 %v2732, 16
      %v2826 = vpop.permute.xlu0 %2825
      %2827 = vrot.lane.b32.xlu0 %v2733, 16
      %v2828 = vpop.permute.xlu0 %2827
      %2829 = vrot.lane.b32.xlu0 %v2734, 16
      %v2830 = vpop.permute.xlu0 %2829
      %vm2863 = vcmask 195712
      %2864 = vst.msk [vmem:[#allocation5] sm:$0xff] %vm2863, %v2768
      %2865 = vst.msk [vmem:[#allocation5 + $0x8] sm:$0xff] %vm2863, %v2770
      %2866 = vst.msk [vmem:[#allocation5 + $0x10] sm:$0xff] %vm2863, %v2772
      %2867 = vst.msk [vmem:[#allocation5 + $0x18] sm:$0xff] %vm2863, %v2774
      %2868 = vst.msk [vmem:[#allocation5 + $0x20] sm:$0xff] %vm2863, %v2776
      %2869 = vst.msk [vmem:[#allocation5 + $0x28] sm:$0xff] %vm2863, %v2778
      %2870 = vst.msk [vmem:[#allocation5 + $0x30] sm:$0xff] %vm2863, %v2780
      %2871 = vst.msk [vmem:[#allocation5 + $0x38] sm:$0xff] %vm2863, %v2782
      %2872 = vst.msk [vmem:[#allocation5 + $0x40] sm:$0xff] %vm2863, %v2784
      %2873 = vst.msk [vmem:[#allocation5 + $0x48] sm:$0xff] %vm2863, %v2786
      %2874 = vst.msk [vmem:[#allocation5 + $0x50] sm:$0xff] %vm2863, %v2788
      %2875 = vst.msk [vmem:[#allocation5 + $0x58] sm:$0xff] %vm2863, %v2790
      %2876 = vst.msk [vmem:[#allocation5 + $0x60] sm:$0xff] %vm2863, %v2792
      %2877 = vst.msk [vmem:[#allocation5 + $0x68] sm:$0xff] %vm2863, %v2794
      %2878 = vst.msk [vmem:[#allocation5 + $0x70] sm:$0xff] %vm2863, %v2796
      %2879 = vst.msk [vmem:[#allocation5 + $0x78] sm:$0xff] %vm2863, %v2798
      %2880 = vst.msk [vmem:[#allocation5 + $0x80] sm:$0xff] %vm2863, %v2800
      %2881 = vst.msk [vmem:[#allocation5 + $0x88] sm:$0xff] %vm2863, %v2802
      %2882 = vst.msk [vmem:[#allocation5 + $0x90] sm:$0xff] %vm2863, %v2804
      %2883 = vst.msk [vmem:[#allocation5 + $0x98] sm:$0xff] %vm2863, %v2806
      %2884 = vst.msk [vmem:[#allocation5 + $0xa0] sm:$0xff] %vm2863, %v2808
      %2885 = vst.msk [vmem:[#allocation5 + $0xa8] sm:$0xff] %vm2863, %v2810
      %2886 = vst.msk [vmem:[#allocation5 + $0xb0] sm:$0xff] %vm2863, %v2812
      %2887 = vst.msk [vmem:[#allocation5 + $0xb8] sm:$0xff] %vm2863, %v2814
      %2888 = vst.msk [vmem:[#allocation5 + $0xc0] sm:$0xff] %vm2863, %v2816
      %2889 = vst.msk [vmem:[#allocation5 + $0xc8] sm:$0xff] %vm2863, %v2818
      %2890 = vst.msk [vmem:[#allocation5 + $0xd0] sm:$0xff] %vm2863, %v2820
      %2891 = vst.msk [vmem:[#allocation5 + $0xd8] sm:$0xff] %vm2863, %v2822
      %2892 = vst.msk [vmem:[#allocation5 + $0xe0] sm:$0xff] %vm2863, %v2824
      %2893 = vst.msk [vmem:[#allocation5 + $0xe8] sm:$0xff] %vm2863, %v2826
      %2894 = vst.msk [vmem:[#allocation5 + $0xf0] sm:$0xff] %vm2863, %v2828
      %2895 = vst.msk [vmem:[#allocation5 + $0xf8] sm:$0xff] %vm2863, %v2830
      %v2896 = vld [vmem:[%s2413] sm:$0xff]
      %v2897 = vld [vmem:[%s2413 + $0x8] sm:$0xff]
      %v2898 = vld [vmem:[%s2413 + $0x18] sm:$0xff]
      %v2899 = vld [vmem:[%s2413 + $0x20] sm:$0xff]
      %v2900 = vld [vmem:[%s2413 + $0x30] sm:$0xff]
      %v2901 = vld [vmem:[%s2413 + $0x38] sm:$0xff]
      %v2902 = vld [vmem:[%s2413 + $0x48] sm:$0xff]
      %v2903 = vld [vmem:[%s2413 + $0x50] sm:$0xff]
      %v2904 = vld [vmem:[%s2413 + $0x60] sm:$0xff]
      %v2905 = vld [vmem:[%s2413 + $0x68] sm:$0xff]
      %v2906 = vld [vmem:[%s2413 + $0x78] sm:$0xff]
      %v2907 = vld [vmem:[%s2413 + $0x80] sm:$0xff]
      %v2908 = vld [vmem:[%s2413 + $0x90] sm:$0xff]
      %v2909 = vld [vmem:[%s2413 + $0x98] sm:$0xff]
      %v2910 = vld [vmem:[%s2413 + $0xa8] sm:$0xff]
      %v2911 = vld [vmem:[%s2413 + $0xb0] sm:$0xff]
      %v2912 = vld [vmem:[%s2413 + $0xc0] sm:$0xff]
      %v2913 = vld [vmem:[%s2413 + $0xc8] sm:$0xff]
      %v2914 = vld [vmem:[%s2413 + $0xd8] sm:$0xff]
      %v2915 = vld [vmem:[%s2413 + $0xe0] sm:$0xff]
      %v2916 = vld [vmem:[%s2413 + $0xf0] sm:$0xff]
      %v2917 = vld [vmem:[%s2413 + $0xf8] sm:$0xff]
      %v2918 = vld [vmem:[%s2413 + $0x108] sm:$0xff]
      %v2919 = vld [vmem:[%s2413 + $0x110] sm:$0xff]
      %v2920 = vld [vmem:[%s2413 + $0x120] sm:$0xff]
      %v2921 = vld [vmem:[%s2413 + $0x128] sm:$0xff]
      %v2922 = vld [vmem:[%s2413 + $0x138] sm:$0xff]
      %v2923 = vld [vmem:[%s2413 + $0x140] sm:$0xff]
      %v2924 = vld [vmem:[%s2413 + $0x150] sm:$0xff]
      %v2925 = vld [vmem:[%s2413 + $0x158] sm:$0xff]
      %v2926 = vld [vmem:[%s2413 + $0x168] sm:$0xff]
      %v2927 = vld [vmem:[%s2413 + $0x170] sm:$0xff]
      %2960 = vrot.lane.b32.xlu0 %v2896, 24
      %v2961 = vpop.permute.xlu0 %2960
      %2962 = vrot.lane.b32.xlu0 %v2897, 24
      %v2963 = vpop.permute.xlu0 %2962
      %2964 = vrot.lane.b32.xlu0 %v2898, 24
      %v2965 = vpop.permute.xlu0 %2964
      %2966 = vrot.lane.b32.xlu0 %v2899, 24
      %v2967 = vpop.permute.xlu0 %2966
      %2968 = vrot.lane.b32.xlu0 %v2900, 24
      %v2969 = vpop.permute.xlu0 %2968
      %2970 = vrot.lane.b32.xlu0 %v2901, 24
      %v2971 = vpop.permute.xlu0 %2970
      %2972 = vrot.lane.b32.xlu0 %v2902, 24
      %v2973 = vpop.permute.xlu0 %2972
      %2974 = vrot.lane.b32.xlu0 %v2903, 24
      %v2975 = vpop.permute.xlu0 %2974
      %2976 = vrot.lane.b32.xlu0 %v2904, 24
      %v2977 = vpop.permute.xlu0 %2976
      %2978 = vrot.lane.b32.xlu0 %v2905, 24
      %v2979 = vpop.permute.xlu0 %2978
      %2980 = vrot.lane.b32.xlu0 %v2906, 24
      %v2981 = vpop.permute.xlu0 %2980
      %2982 = vrot.lane.b32.xlu0 %v2907, 24
      %v2983 = vpop.permute.xlu0 %2982
      %2984 = vrot.lane.b32.xlu0 %v2908, 24
      %v2985 = vpop.permute.xlu0 %2984
      %2986 = vrot.lane.b32.xlu0 %v2909, 24
      %v2987 = vpop.permute.xlu0 %2986
      %2988 = vrot.lane.b32.xlu0 %v2910, 24
      %v2989 = vpop.permute.xlu0 %2988
      %2990 = vrot.lane.b32.xlu0 %v2911, 24
      %v2991 = vpop.permute.xlu0 %2990
      %2992 = vrot.lane.b32.xlu0 %v2912, 24
      %v2993 = vpop.permute.xlu0 %2992
      %2994 = vrot.lane.b32.xlu0 %v2913, 24
      %v2995 = vpop.permute.xlu0 %2994
      %2996 = vrot.lane.b32.xlu0 %v2914, 24
      %v2997 = vpop.permute.xlu0 %2996
      %2998 = vrot.lane.b32.xlu0 %v2915, 24
      %v2999 = vpop.permute.xlu0 %2998
      %3000 = vrot.lane.b32.xlu0 %v2916, 24
      %v3001 = vpop.permute.xlu0 %3000
      %3002 = vrot.lane.b32.xlu0 %v2917, 24
      %v3003 = vpop.permute.xlu0 %3002
      %3004 = vrot.lane.b32.xlu0 %v2918, 24
      %v3005 = vpop.permute.xlu0 %3004
      %3006 = vrot.lane.b32.xlu0 %v2919, 24
      %v3007 = vpop.permute.xlu0 %3006
      %3008 = vrot.lane.b32.xlu0 %v2920, 24
      %v3009 = vpop.permute.xlu0 %3008
      %3010 = vrot.lane.b32.xlu0 %v2921, 24
      %v3011 = vpop.permute.xlu0 %3010
      %3012 = vrot.lane.b32.xlu0 %v2922, 24
      %v3013 = vpop.permute.xlu0 %3012
      %3014 = vrot.lane.b32.xlu0 %v2923, 24
      %v3015 = vpop.permute.xlu0 %3014
      %3016 = vrot.lane.b32.xlu0 %v2924, 24
      %v3017 = vpop.permute.xlu0 %3016
      %3018 = vrot.lane.b32.xlu0 %v2925, 24
      %v3019 = vpop.permute.xlu0 %3018
      %3020 = vrot.lane.b32.xlu0 %v2926, 24
      %v3021 = vpop.permute.xlu0 %3020
      %3022 = vrot.lane.b32.xlu0 %v2927, 24
      %v3023 = vpop.permute.xlu0 %3022
      %vm3056 = vcmask 261312
      %3057 = vst.msk [vmem:[#allocation5] sm:$0xff] %vm3056, %v2961
      %3058 = vst.msk [vmem:[#allocation5 + $0x8] sm:$0xff] %vm3056, %v2963
      %3059 = vst.msk [vmem:[#allocation5 + $0x10] sm:$0xff] %vm3056, %v2965
      %3060 = vst.msk [vmem:[#allocation5 + $0x18] sm:$0xff] %vm3056, %v2967
      %3061 = vst.msk [vmem:[#allocation5 + $0x20] sm:$0xff] %vm3056, %v2969
      %3062 = vst.msk [vmem:[#allocation5 + $0x28] sm:$0xff] %vm3056, %v2971
      %3063 = vst.msk [vmem:[#allocation5 + $0x30] sm:$0xff] %vm3056, %v2973
      %3064 = vst.msk [vmem:[#allocation5 + $0x38] sm:$0xff] %vm3056, %v2975
      %3065 = vst.msk [vmem:[#allocation5 + $0x40] sm:$0xff] %vm3056, %v2977
      %3066 = vst.msk [vmem:[#allocation5 + $0x48] sm:$0xff] %vm3056, %v2979
      %3067 = vst.msk [vmem:[#allocation5 + $0x50] sm:$0xff] %vm3056, %v2981
      %3068 = vst.msk [vmem:[#allocation5 + $0x58] sm:$0xff] %vm3056, %v2983
      %3069 = vst.msk [vmem:[#allocation5 + $0x60] sm:$0xff] %vm3056, %v2985
      %3070 = vst.msk [vmem:[#allocation5 + $0x68] sm:$0xff] %vm3056, %v2987
      %3071 = vst.msk [vmem:[#allocation5 + $0x70] sm:$0xff] %vm3056, %v2989
      %3072 = vst.msk [vmem:[#allocation5 + $0x78] sm:$0xff] %vm3056, %v2991
      %3073 = vst.msk [vmem:[#allocation5 + $0x80] sm:$0xff] %vm3056, %v2993
      %3074 = vst.msk [vmem:[#allocation5 + $0x88] sm:$0xff] %vm3056, %v2995
      %3075 = vst.msk [vmem:[#allocation5 + $0x90] sm:$0xff] %vm3056, %v2997
      %3076 = vst.msk [vmem:[#allocation5 + $0x98] sm:$0xff] %vm3056, %v2999
      %3077 = vst.msk [vmem:[#allocation5 + $0xa0] sm:$0xff] %vm3056, %v3001
      %3078 = vst.msk [vmem:[#allocation5 + $0xa8] sm:$0xff] %vm3056, %v3003
      %3079 = vst.msk [vmem:[#allocation5 + $0xb0] sm:$0xff] %vm3056, %v3005
      %3080 = vst.msk [vmem:[#allocation5 + $0xb8] sm:$0xff] %vm3056, %v3007
      %3081 = vst.msk [vmem:[#allocation5 + $0xc0] sm:$0xff] %vm3056, %v3009
      %3082 = vst.msk [vmem:[#allocation5 + $0xc8] sm:$0xff] %vm3056, %v3011
      %3083 = vst.msk [vmem:[#allocation5 + $0xd0] sm:$0xff] %vm3056, %v3013
      %3084 = vst.msk [vmem:[#allocation5 + $0xd8] sm:$0xff] %vm3056, %v3015
      %3085 = vst.msk [vmem:[#allocation5 + $0xe0] sm:$0xff] %vm3056, %v3017
      %3086 = vst.msk [vmem:[#allocation5 + $0xe8] sm:$0xff] %vm3056, %v3019
      %3087 = vst.msk [vmem:[#allocation5 + $0xf0] sm:$0xff] %vm3056, %v3021
      %3088 = vst.msk [vmem:[#allocation5 + $0xf8] sm:$0xff] %vm3056, %v3023
      %v3089 = vld [vmem:[%s2413 + $0x1] sm:$0xff]
      %v3090 = vld [vmem:[%s2413 + $0x9] sm:$0xff]
      %v3091 = vld [vmem:[%s2413 + $0x19] sm:$0xff]
      %v3092 = vld [vmem:[%s2413 + $0x21] sm:$0xff]
      %v3093 = vld [vmem:[%s2413 + $0x31] sm:$0xff]
      %v3094 = vld [vmem:[%s2413 + $0x39] sm:$0xff]
      %v3095 = vld [vmem:[%s2413 + $0x49] sm:$0xff]
      %v3096 = vld [vmem:[%s2413 + $0x51] sm:$0xff]
      %v3097 = vld [vmem:[%s2413 + $0x61] sm:$0xff]
      %v3098 = vld [vmem:[%s2413 + $0x69] sm:$0xff]
      %v3099 = vld [vmem:[%s2413 + $0x79] sm:$0xff]
      %v3100 = vld [vmem:[%s2413 + $0x81] sm:$0xff]
      %v3101 = vld [vmem:[%s2413 + $0x91] sm:$0xff]
      %v3102 = vld [vmem:[%s2413 + $0x99] sm:$0xff]
      %v3103 = vld [vmem:[%s2413 + $0xa9] sm:$0xff]
      %v3104 = vld [vmem:[%s2413 + $0xb1] sm:$0xff]
      %v3105 = vld [vmem:[%s2413 + $0xc1] sm:$0xff]
      %v3106 = vld [vmem:[%s2413 + $0xc9] sm:$0xff]
      %v3107 = vld [vmem:[%s2413 + $0xd9] sm:$0xff]
      %v3108 = vld [vmem:[%s2413 + $0xe1] sm:$0xff]
      %v3109 = vld [vmem:[%s2413 + $0xf1] sm:$0xff]
      %v3110 = vld [vmem:[%s2413 + $0xf9] sm:$0xff]
      %v3111 = vld [vmem:[%s2413 + $0x109] sm:$0xff]
      %v3112 = vld [vmem:[%s2413 + $0x111] sm:$0xff]
      %v3113 = vld [vmem:[%s2413 + $0x121] sm:$0xff]
      %v3114 = vld [vmem:[%s2413 + $0x129] sm:$0xff]
      %v3115 = vld [vmem:[%s2413 + $0x139] sm:$0xff]
      %v3116 = vld [vmem:[%s2413 + $0x141] sm:$0xff]
      %v3117 = vld [vmem:[%s2413 + $0x151] sm:$0xff]
      %v3118 = vld [vmem:[%s2413 + $0x159] sm:$0xff]
      %v3119 = vld [vmem:[%s2413 + $0x169] sm:$0xff]
      %v3120 = vld [vmem:[%s2413 + $0x171] sm:$0xff]
      %3153 = vrot.lane.b32.xlu0 %v3089, 32
      %v3154 = vpop.permute.xlu0 %3153
      %3155 = vrot.lane.b32.xlu0 %v3090, 32
      %v3156 = vpop.permute.xlu0 %3155
      %3157 = vrot.lane.b32.xlu0 %v3091, 32
      %v3158 = vpop.permute.xlu0 %3157
      %3159 = vrot.lane.b32.xlu0 %v3092, 32
      %v3160 = vpop.permute.xlu0 %3159
      %3161 = vrot.lane.b32.xlu0 %v3093, 32
      %v3162 = vpop.permute.xlu0 %3161
      %3163 = vrot.lane.b32.xlu0 %v3094, 32
      %v3164 = vpop.permute.xlu0 %3163
      %3165 = vrot.lane.b32.xlu0 %v3095, 32
      %v3166 = vpop.permute.xlu0 %3165
      %3167 = vrot.lane.b32.xlu0 %v3096, 32
      %v3168 = vpop.permute.xlu0 %3167
      %3169 = vrot.lane.b32.xlu0 %v3097, 32
      %v3170 = vpop.permute.xlu0 %3169
      %3171 = vrot.lane.b32.xlu0 %v3098, 32
      %v3172 = vpop.permute.xlu0 %3171
      %3173 = vrot.lane.b32.xlu0 %v3099, 32
      %v3174 = vpop.permute.xlu0 %3173
      %3175 = vrot.lane.b32.xlu0 %v3100, 32
      %v3176 = vpop.permute.xlu0 %3175
      %3177 = vrot.lane.b32.xlu0 %v3101, 32
      %v3178 = vpop.permute.xlu0 %3177
      %3179 = vrot.lane.b32.xlu0 %v3102, 32
      %v3180 = vpop.permute.xlu0 %3179
      %3181 = vrot.lane.b32.xlu0 %v3103, 32
      %v3182 = vpop.permute.xlu0 %3181
      %3183 = vrot.lane.b32.xlu0 %v3104, 32
      %v3184 = vpop.permute.xlu0 %3183
      %3185 = vrot.lane.b32.xlu0 %v3105, 32
      %v3186 = vpop.permute.xlu0 %3185
      %3187 = vrot.lane.b32.xlu0 %v3106, 32
      %v3188 = vpop.permute.xlu0 %3187
      %3189 = vrot.lane.b32.xlu0 %v3107, 32
      %v3190 = vpop.permute.xlu0 %3189
      %3191 = vrot.lane.b32.xlu0 %v3108, 32
      %v3192 = vpop.permute.xlu0 %3191
      %3193 = vrot.lane.b32.xlu0 %v3109, 32
      %v3194 = vpop.permute.xlu0 %3193
      %3195 = vrot.lane.b32.xlu0 %v3110, 32
      %v3196 = vpop.permute.xlu0 %3195
      %3197 = vrot.lane.b32.xlu0 %v3111, 32
      %v3198 = vpop.permute.xlu0 %3197
      %3199 = vrot.lane.b32.xlu0 %v3112, 32
      %v3200 = vpop.permute.xlu0 %3199
      %3201 = vrot.lane.b32.xlu0 %v3113, 32
      %v3202 = vpop.permute.xlu0 %3201
      %3203 = vrot.lane.b32.xlu0 %v3114, 32
      %v3204 = vpop.permute.xlu0 %3203
      %3205 = vrot.lane.b32.xlu0 %v3115, 32
      %v3206 = vpop.permute.xlu0 %3205
      %3207 = vrot.lane.b32.xlu0 %v3116, 32
      %v3208 = vpop.permute.xlu0 %3207
      %3209 = vrot.lane.b32.xlu0 %v3117, 32
      %v3210 = vpop.permute.xlu0 %3209
      %3211 = vrot.lane.b32.xlu0 %v3118, 32
      %v3212 = vpop.permute.xlu0 %3211
      %3213 = vrot.lane.b32.xlu0 %v3119, 32
      %v3214 = vpop.permute.xlu0 %3213
      %3215 = vrot.lane.b32.xlu0 %v3120, 32
      %v3216 = vpop.permute.xlu0 %3215
      %vm3249 = vcmask 326912
      %3250 = vst.msk [vmem:[#allocation5] sm:$0xff] %vm3249, %v3154
      %3251 = vst.msk [vmem:[#allocation5 + $0x8] sm:$0xff] %vm3249, %v3156
      %3252 = vst.msk [vmem:[#allocation5 + $0x10] sm:$0xff] %vm3249, %v3158
      %3253 = vst.msk [vmem:[#allocation5 + $0x18] sm:$0xff] %vm3249, %v3160
      %3254 = vst.msk [vmem:[#allocation5 + $0x20] sm:$0xff] %vm3249, %v3162
      %3255 = vst.msk [vmem:[#allocation5 + $0x28] sm:$0xff] %vm3249, %v3164
      %3256 = vst.msk [vmem:[#allocation5 + $0x30] sm:$0xff] %vm3249, %v3166
      %3257 = vst.msk [vmem:[#allocation5 + $0x38] sm:$0xff] %vm3249, %v3168
      %3258 = vst.msk [vmem:[#allocation5 + $0x40] sm:$0xff] %vm3249, %v3170
      %3259 = vst.msk [vmem:[#allocation5 + $0x48] sm:$0xff] %vm3249, %v3172
      %3260 = vst.msk [vmem:[#allocation5 + $0x50] sm:$0xff] %vm3249, %v3174
      %3261 = vst.msk [vmem:[#allocation5 + $0x58] sm:$0xff] %vm3249, %v3176
      %3262 = vst.msk [vmem:[#allocation5 + $0x60] sm:$0xff] %vm3249, %v3178
      %3263 = vst.msk [vmem:[#allocation5 + $0x68] sm:$0xff] %vm3249, %v3180
      %3264 = vst.msk [vmem:[#allocation5 + $0x70] sm:$0xff] %vm3249, %v3182
      %3265 = vst.msk [vmem:[#allocation5 + $0x78] sm:$0xff] %vm3249, %v3184
      %3266 = vst.msk [vmem:[#allocation5 + $0x80] sm:$0xff] %vm3249, %v3186
      %3267 = vst.msk [vmem:[#allocation5 + $0x88] sm:$0xff] %vm3249, %v3188
      %3268 = vst.msk [vmem:[#allocation5 + $0x90] sm:$0xff] %vm3249, %v3190
      %3269 = vst.msk [vmem:[#allocation5 + $0x98] sm:$0xff] %vm3249, %v3192
      %3270 = vst.msk [vmem:[#allocation5 + $0xa0] sm:$0xff] %vm3249, %v3194
      %3271 = vst.msk [vmem:[#allocation5 + $0xa8] sm:$0xff] %vm3249, %v3196
      %3272 = vst.msk [vmem:[#allocation5 + $0xb0] sm:$0xff] %vm3249, %v3198
      %3273 = vst.msk [vmem:[#allocation5 + $0xb8] sm:$0xff] %vm3249, %v3200
      %3274 = vst.msk [vmem:[#allocation5 + $0xc0] sm:$0xff] %vm3249, %v3202
      %3275 = vst.msk [vmem:[#allocation5 + $0xc8] sm:$0xff] %vm3249, %v3204
      %3276 = vst.msk [vmem:[#allocation5 + $0xd0] sm:$0xff] %vm3249, %v3206
      %3277 = vst.msk [vmem:[#allocation5 + $0xd8] sm:$0xff] %vm3249, %v3208
      %3278 = vst.msk [vmem:[#allocation5 + $0xe0] sm:$0xff] %vm3249, %v3210
      %3279 = vst.msk [vmem:[#allocation5 + $0xe8] sm:$0xff] %vm3249, %v3212
      %3280 = vst.msk [vmem:[#allocation5 + $0xf0] sm:$0xff] %vm3249, %v3214
      %3281 = vst.msk [vmem:[#allocation5 + $0xf8] sm:$0xff] %vm3249, %v3216
      %v3282 = vld [vmem:[%s2413 + $0x2] sm:$0xff]
      %v3283 = vld [vmem:[%s2413 + $0xa] sm:$0xff]
      %v3284 = vld [vmem:[%s2413 + $0x1a] sm:$0xff]
      %v3285 = vld [vmem:[%s2413 + $0x22] sm:$0xff]
      %v3286 = vld [vmem:[%s2413 + $0x32] sm:$0xff]
      %v3287 = vld [vmem:[%s2413 + $0x3a] sm:$0xff]
      %v3288 = vld [vmem:[%s2413 + $0x4a] sm:$0xff]
      %v3289 = vld [vmem:[%s2413 + $0x52] sm:$0xff]
      %v3290 = vld [vmem:[%s2413 + $0x62] sm:$0xff]
      %v3291 = vld [vmem:[%s2413 + $0x6a] sm:$0xff]
      %v3292 = vld [vmem:[%s2413 + $0x7a] sm:$0xff]
      %v3293 = vld [vmem:[%s2413 + $0x82] sm:$0xff]
      %v3294 = vld [vmem:[%s2413 + $0x92] sm:$0xff]
      %v3295 = vld [vmem:[%s2413 + $0x9a] sm:$0xff]
      %v3296 = vld [vmem:[%s2413 + $0xaa] sm:$0xff]
      %v3297 = vld [vmem:[%s2413 + $0xb2] sm:$0xff]
      %v3298 = vld [vmem:[%s2413 + $0xc2] sm:$0xff]
      %v3299 = vld [vmem:[%s2413 + $0xca] sm:$0xff]
      %v3300 = vld [vmem:[%s2413 + $0xda] sm:$0xff]
      %v3301 = vld [vmem:[%s2413 + $0xe2] sm:$0xff]
      %v3302 = vld [vmem:[%s2413 + $0xf2] sm:$0xff]
      %v3303 = vld [vmem:[%s2413 + $0xfa] sm:$0xff]
      %v3304 = vld [vmem:[%s2413 + $0x10a] sm:$0xff]
      %v3305 = vld [vmem:[%s2413 + $0x112] sm:$0xff]
      %v3306 = vld [vmem:[%s2413 + $0x122] sm:$0xff]
      %v3307 = vld [vmem:[%s2413 + $0x12a] sm:$0xff]
      %v3308 = vld [vmem:[%s2413 + $0x13a] sm:$0xff]
      %v3309 = vld [vmem:[%s2413 + $0x142] sm:$0xff]
      %v3310 = vld [vmem:[%s2413 + $0x152] sm:$0xff]
      %v3311 = vld [vmem:[%s2413 + $0x15a] sm:$0xff]
      %v3312 = vld [vmem:[%s2413 + $0x16a] sm:$0xff]
      %v3313 = vld [vmem:[%s2413 + $0x172] sm:$0xff]
      %3346 = vrot.lane.b32.xlu0 %v3282, 40
      %v3347 = vpop.permute.xlu0 %3346
      %3348 = vrot.lane.b32.xlu0 %v3283, 40
      %v3349 = vpop.permute.xlu0 %3348
      %3350 = vrot.lane.b32.xlu0 %v3284, 40
      %v3351 = vpop.permute.xlu0 %3350
      %3352 = vrot.lane.b32.xlu0 %v3285, 40
      %v3353 = vpop.permute.xlu0 %3352
      %3354 = vrot.lane.b32.xlu0 %v3286, 40
      %v3355 = vpop.permute.xlu0 %3354
      %3356 = vrot.lane.b32.xlu0 %v3287, 40
      %v3357 = vpop.permute.xlu0 %3356
      %3358 = vrot.lane.b32.xlu0 %v3288, 40
      %v3359 = vpop.permute.xlu0 %3358
      %3360 = vrot.lane.b32.xlu0 %v3289, 40
      %v3361 = vpop.permute.xlu0 %3360
      %3362 = vrot.lane.b32.xlu0 %v3290, 40
      %v3363 = vpop.permute.xlu0 %3362
      %3364 = vrot.lane.b32.xlu0 %v3291, 40
      %v3365 = vpop.permute.xlu0 %3364
      %3366 = vrot.lane.b32.xlu0 %v3292, 40
      %v3367 = vpop.permute.xlu0 %3366
      %3368 = vrot.lane.b32.xlu0 %v3293, 40
      %v3369 = vpop.permute.xlu0 %3368
      %3370 = vrot.lane.b32.xlu0 %v3294, 40
      %v3371 = vpop.permute.xlu0 %3370
      %3372 = vrot.lane.b32.xlu0 %v3295, 40
      %v3373 = vpop.permute.xlu0 %3372
      %3374 = vrot.lane.b32.xlu0 %v3296, 40
      %v3375 = vpop.permute.xlu0 %3374
      %3376 = vrot.lane.b32.xlu0 %v3297, 40
      %v3377 = vpop.permute.xlu0 %3376
      %3378 = vrot.lane.b32.xlu0 %v3298, 40
      %v3379 = vpop.permute.xlu0 %3378
      %3380 = vrot.lane.b32.xlu0 %v3299, 40
      %v3381 = vpop.permute.xlu0 %3380
      %3382 = vrot.lane.b32.xlu0 %v3300, 40
      %v3383 = vpop.permute.xlu0 %3382
      %3384 = vrot.lane.b32.xlu0 %v3301, 40
      %v3385 = vpop.permute.xlu0 %3384
      %3386 = vrot.lane.b32.xlu0 %v3302, 40
      %v3387 = vpop.permute.xlu0 %3386
      %3388 = vrot.lane.b32.xlu0 %v3303, 40
      %v3389 = vpop.permute.xlu0 %3388
      %3390 = vrot.lane.b32.xlu0 %v3304, 40
      %v3391 = vpop.permute.xlu0 %3390
      %3392 = vrot.lane.b32.xlu0 %v3305, 40
      %v3393 = vpop.permute.xlu0 %3392
      %3394 = vrot.lane.b32.xlu0 %v3306, 40
      %v3395 = vpop.permute.xlu0 %3394
      %3396 = vrot.lane.b32.xlu0 %v3307, 40
      %v3397 = vpop.permute.xlu0 %3396
      %3398 = vrot.lane.b32.xlu0 %v3308, 40
      %v3399 = vpop.permute.xlu0 %3398
      %3400 = vrot.lane.b32.xlu0 %v3309, 40
      %v3401 = vpop.permute.xlu0 %3400
      %3402 = vrot.lane.b32.xlu0 %v3310, 40
      %v3403 = vpop.permute.xlu0 %3402
      %3404 = vrot.lane.b32.xlu0 %v3311, 40
      %v3405 = vpop.permute.xlu0 %3404
      %3406 = vrot.lane.b32.xlu0 %v3312, 40
      %v3407 = vpop.permute.xlu0 %3406
      %3408 = vrot.lane.b32.xlu0 %v3313, 40
      %v3409 = vpop.permute.xlu0 %3408
      %vm3442 = vcmask 392512
      %3443 = vst.msk [vmem:[#allocation5] sm:$0xff] %vm3442, %v3347
      %3444 = vst.msk [vmem:[#allocation5 + $0x8] sm:$0xff] %vm3442, %v3349
      %3445 = vst.msk [vmem:[#allocation5 + $0x10] sm:$0xff] %vm3442, %v3351
      %3446 = vst.msk [vmem:[#allocation5 + $0x18] sm:$0xff] %vm3442, %v3353
      %3447 = vst.msk [vmem:[#allocation5 + $0x20] sm:$0xff] %vm3442, %v3355
      %3448 = vst.msk [vmem:[#allocation5 + $0x28] sm:$0xff] %vm3442, %v3357
      %3449 = vst.msk [vmem:[#allocation5 + $0x30] sm:$0xff] %vm3442, %v3359
      %3450 = vst.msk [vmem:[#allocation5 + $0x38] sm:$0xff] %vm3442, %v3361
      %3451 = vst.msk [vmem:[#allocation5 + $0x40] sm:$0xff] %vm3442, %v3363
      %3452 = vst.msk [vmem:[#allocation5 + $0x48] sm:$0xff] %vm3442, %v3365
      %3453 = vst.msk [vmem:[#allocation5 + $0x50] sm:$0xff] %vm3442, %v3367
      %3454 = vst.msk [vmem:[#allocation5 + $0x58] sm:$0xff] %vm3442, %v3369
      %3455 = vst.msk [vmem:[#allocation5 + $0x60] sm:$0xff] %vm3442, %v3371
      %3456 = vst.msk [vmem:[#allocation5 + $0x68] sm:$0xff] %vm3442, %v3373
      %3457 = vst.msk [vmem:[#allocation5 + $0x70] sm:$0xff] %vm3442, %v3375
      %3458 = vst.msk [vmem:[#allocation5 + $0x78] sm:$0xff] %vm3442, %v3377
      %3459 = vst.msk [vmem:[#allocation5 + $0x80] sm:$0xff] %vm3442, %v3379
      %3460 = vst.msk [vmem:[#allocation5 + $0x88] sm:$0xff] %vm3442, %v3381
      %3461 = vst.msk [vmem:[#allocation5 + $0x90] sm:$0xff] %vm3442, %v3383
      %3462 = vst.msk [vmem:[#allocation5 + $0x98] sm:$0xff] %vm3442, %v3385
      %3463 = vst.msk [vmem:[#allocation5 + $0xa0] sm:$0xff] %vm3442, %v3387
      %3464 = vst.msk [vmem:[#allocation5 + $0xa8] sm:$0xff] %vm3442, %v3389
      %3465 = vst.msk [vmem:[#allocation5 + $0xb0] sm:$0xff] %vm3442, %v3391
      %3466 = vst.msk [vmem:[#allocation5 + $0xb8] sm:$0xff] %vm3442, %v3393
      %3467 = vst.msk [vmem:[#allocation5 + $0xc0] sm:$0xff] %vm3442, %v3395
      %3468 = vst.msk [vmem:[#allocation5 + $0xc8] sm:$0xff] %vm3442, %v3397
      %3469 = vst.msk [vmem:[#allocation5 + $0xd0] sm:$0xff] %vm3442, %v3399
      %3470 = vst.msk [vmem:[#allocation5 + $0xd8] sm:$0xff] %vm3442, %v3401
      %3471 = vst.msk [vmem:[#allocation5 + $0xe0] sm:$0xff] %vm3442, %v3403
      %3472 = vst.msk [vmem:[#allocation5 + $0xe8] sm:$0xff] %vm3442, %v3405
      %3473 = vst.msk [vmem:[#allocation5 + $0xf0] sm:$0xff] %vm3442, %v3407
      %3474 = vst.msk [vmem:[#allocation5 + $0xf8] sm:$0xff] %vm3442, %v3409
      %s3475 = scalar_lea.vmem [#allocation3], 48
      %v3476 = vld [vmem:[%s3475] sm:$0xff]
      %v3477 = vld [vmem:[%s3475 + $0x8] sm:$0xff]
      %v3478 = vld [vmem:[%s3475 + $0x18] sm:$0xff]
      %v3479 = vld [vmem:[%s3475 + $0x20] sm:$0xff]
      %v3480 = vld [vmem:[%s3475 + $0x30] sm:$0xff]
      %v3481 = vld [vmem:[%s3475 + $0x38] sm:$0xff]
      %v3482 = vld [vmem:[%s3475 + $0x48] sm:$0xff]
      %v3483 = vld [vmem:[%s3475 + $0x50] sm:$0xff]
      %v3484 = vld [vmem:[%s3475 + $0x60] sm:$0xff]
      %v3485 = vld [vmem:[%s3475 + $0x68] sm:$0xff]
      %v3486 = vld [vmem:[%s3475 + $0x78] sm:$0xff]
      %v3487 = vld [vmem:[%s3475 + $0x80] sm:$0xff]
      %v3488 = vld [vmem:[%s3475 + $0x90] sm:$0xff]
      %v3489 = vld [vmem:[%s3475 + $0x98] sm:$0xff]
      %v3490 = vld [vmem:[%s3475 + $0xa8] sm:$0xff]
      %v3491 = vld [vmem:[%s3475 + $0xb0] sm:$0xff]
      %v3492 = vld [vmem:[%s3475 + $0xc0] sm:$0xff]
      %v3493 = vld [vmem:[%s3475 + $0xc8] sm:$0xff]
      %v3494 = vld [vmem:[%s3475 + $0xd8] sm:$0xff]
      %v3495 = vld [vmem:[%s3475 + $0xe0] sm:$0xff]
      %v3496 = vld [vmem:[%s3475 + $0xf0] sm:$0xff]
      %v3497 = vld [vmem:[%s3475 + $0xf8] sm:$0xff]
      %v3498 = vld [vmem:[%s3475 + $0x108] sm:$0xff]
      %v3499 = vld [vmem:[%s3475 + $0x110] sm:$0xff]
      %v3500 = vld [vmem:[%s3475 + $0x120] sm:$0xff]
      %v3501 = vld [vmem:[%s3475 + $0x128] sm:$0xff]
      %v3502 = vld [vmem:[%s3475 + $0x138] sm:$0xff]
      %v3503 = vld [vmem:[%s3475 + $0x140] sm:$0xff]
      %v3504 = vld [vmem:[%s3475 + $0x150] sm:$0xff]
      %v3505 = vld [vmem:[%s3475 + $0x158] sm:$0xff]
      %v3506 = vld [vmem:[%s3475 + $0x168] sm:$0xff]
      %v3507 = vld [vmem:[%s3475 + $0x170] sm:$0xff]
      %3540 = vrot.lane.b32.xlu0 %v3476, 48
      %v3541 = vpop.permute.xlu0 %3540
      %3542 = vrot.lane.b32.xlu0 %v3477, 48
      %v3543 = vpop.permute.xlu0 %3542
      %3544 = vrot.lane.b32.xlu0 %v3478, 48
      %v3545 = vpop.permute.xlu0 %3544
      %3546 = vrot.lane.b32.xlu0 %v3479, 48
      %v3547 = vpop.permute.xlu0 %3546
      %3548 = vrot.lane.b32.xlu0 %v3480, 48
      %v3549 = vpop.permute.xlu0 %3548
      %3550 = vrot.lane.b32.xlu0 %v3481, 48
      %v3551 = vpop.permute.xlu0 %3550
      %3552 = vrot.lane.b32.xlu0 %v3482, 48
      %v3553 = vpop.permute.xlu0 %3552
      %3554 = vrot.lane.b32.xlu0 %v3483, 48
      %v3555 = vpop.permute.xlu0 %3554
      %3556 = vrot.lane.b32.xlu0 %v3484, 48
      %v3557 = vpop.permute.xlu0 %3556
      %3558 = vrot.lane.b32.xlu0 %v3485, 48
      %v3559 = vpop.permute.xlu0 %3558
      %3560 = vrot.lane.b32.xlu0 %v3486, 48
      %v3561 = vpop.permute.xlu0 %3560
      %3562 = vrot.lane.b32.xlu0 %v3487, 48
      %v3563 = vpop.permute.xlu0 %3562
      %3564 = vrot.lane.b32.xlu0 %v3488, 48
      %v3565 = vpop.permute.xlu0 %3564
      %3566 = vrot.lane.b32.xlu0 %v3489, 48
      %v3567 = vpop.permute.xlu0 %3566
      %3568 = vrot.lane.b32.xlu0 %v3490, 48
      %v3569 = vpop.permute.xlu0 %3568
      %3570 = vrot.lane.b32.xlu0 %v3491, 48
      %v3571 = vpop.permute.xlu0 %3570
      %3572 = vrot.lane.b32.xlu0 %v3492, 48
      %v3573 = vpop.permute.xlu0 %3572
      %3574 = vrot.lane.b32.xlu0 %v3493, 48
      %v3575 = vpop.permute.xlu0 %3574
      %3576 = vrot.lane.b32.xlu0 %v3494, 48
      %v3577 = vpop.permute.xlu0 %3576
      %3578 = vrot.lane.b32.xlu0 %v3495, 48
      %v3579 = vpop.permute.xlu0 %3578
      %3580 = vrot.lane.b32.xlu0 %v3496, 48
      %v3581 = vpop.permute.xlu0 %3580
      %3582 = vrot.lane.b32.xlu0 %v3497, 48
      %v3583 = vpop.permute.xlu0 %3582
      %3584 = vrot.lane.b32.xlu0 %v3498, 48
      %v3585 = vpop.permute.xlu0 %3584
      %3586 = vrot.lane.b32.xlu0 %v3499, 48
      %v3587 = vpop.permute.xlu0 %3586
      %3588 = vrot.lane.b32.xlu0 %v3500, 48
      %v3589 = vpop.permute.xlu0 %3588
      %3590 = vrot.lane.b32.xlu0 %v3501, 48
      %v3591 = vpop.permute.xlu0 %3590
      %3592 = vrot.lane.b32.xlu0 %v3502, 48
      %v3593 = vpop.permute.xlu0 %3592
      %3594 = vrot.lane.b32.xlu0 %v3503, 48
      %v3595 = vpop.permute.xlu0 %3594
      %3596 = vrot.lane.b32.xlu0 %v3504, 48
      %v3597 = vpop.permute.xlu0 %3596
      %3598 = vrot.lane.b32.xlu0 %v3505, 48
      %v3599 = vpop.permute.xlu0 %3598
      %3600 = vrot.lane.b32.xlu0 %v3506, 48
      %v3601 = vpop.permute.xlu0 %3600
      %3602 = vrot.lane.b32.xlu0 %v3507, 48
      %v3603 = vpop.permute.xlu0 %3602
      %vm3636 = vcmask 458112
      %3637 = vst.msk [vmem:[#allocation5] sm:$0xff] %vm3636, %v3541
      %3638 = vst.msk [vmem:[#allocation5 + $0x8] sm:$0xff] %vm3636, %v3543
      %3639 = vst.msk [vmem:[#allocation5 + $0x10] sm:$0xff] %vm3636, %v3545
      %3640 = vst.msk [vmem:[#allocation5 + $0x18] sm:$0xff] %vm3636, %v3547
      %3641 = vst.msk [vmem:[#allocation5 + $0x20] sm:$0xff] %vm3636, %v3549
      %3642 = vst.msk [vmem:[#allocation5 + $0x28] sm:$0xff] %vm3636, %v3551
      %3643 = vst.msk [vmem:[#allocation5 + $0x30] sm:$0xff] %vm3636, %v3553
      %3644 = vst.msk [vmem:[#allocation5 + $0x38] sm:$0xff] %vm3636, %v3555
      %3645 = vst.msk [vmem:[#allocation5 + $0x40] sm:$0xff] %vm3636, %v3557
      %3646 = vst.msk [vmem:[#allocation5 + $0x48] sm:$0xff] %vm3636, %v3559
      %3647 = vst.msk [vmem:[#allocation5 + $0x50] sm:$0xff] %vm3636, %v3561
      %3648 = vst.msk [vmem:[#allocation5 + $0x58] sm:$0xff] %vm3636, %v3563
      %3649 = vst.msk [vmem:[#allocation5 + $0x60] sm:$0xff] %vm3636, %v3565
      %3650 = vst.msk [vmem:[#allocation5 + $0x68] sm:$0xff] %vm3636, %v3567
      %3651 = vst.msk [vmem:[#allocation5 + $0x70] sm:$0xff] %vm3636, %v3569
      %3652 = vst.msk [vmem:[#allocation5 + $0x78] sm:$0xff] %vm3636, %v3571
      %3653 = vst.msk [vmem:[#allocation5 + $0x80] sm:$0xff] %vm3636, %v3573
      %3654 = vst.msk [vmem:[#allocation5 + $0x88] sm:$0xff] %vm3636, %v3575
      %3655 = vst.msk [vmem:[#allocation5 + $0x90] sm:$0xff] %vm3636, %v3577
      %3656 = vst.msk [vmem:[#allocation5 + $0x98] sm:$0xff] %vm3636, %v3579
      %3657 = vst.msk [vmem:[#allocation5 + $0xa0] sm:$0xff] %vm3636, %v3581
      %3658 = vst.msk [vmem:[#allocation5 + $0xa8] sm:$0xff] %vm3636, %v3583
      %3659 = vst.msk [vmem:[#allocation5 + $0xb0] sm:$0xff] %vm3636, %v3585
      %3660 = vst.msk [vmem:[#allocation5 + $0xb8] sm:$0xff] %vm3636, %v3587
      %3661 = vst.msk [vmem:[#allocation5 + $0xc0] sm:$0xff] %vm3636, %v3589
      %3662 = vst.msk [vmem:[#allocation5 + $0xc8] sm:$0xff] %vm3636, %v3591
      %3663 = vst.msk [vmem:[#allocation5 + $0xd0] sm:$0xff] %vm3636, %v3593
      %3664 = vst.msk [vmem:[#allocation5 + $0xd8] sm:$0xff] %vm3636, %v3595
      %3665 = vst.msk [vmem:[#allocation5 + $0xe0] sm:$0xff] %vm3636, %v3597
      %3666 = vst.msk [vmem:[#allocation5 + $0xe8] sm:$0xff] %vm3636, %v3599
      %3667 = vst.msk [vmem:[#allocation5 + $0xf0] sm:$0xff] %vm3636, %v3601
      %3668 = vst.msk [vmem:[#allocation5 + $0xf8] sm:$0xff] %vm3636, %v3603
      %v3669 = vld [vmem:[%s3475 + $0x1] sm:$0xff]
      %v3670 = vld [vmem:[%s3475 + $0x9] sm:$0xff]
      %v3671 = vld [vmem:[%s3475 + $0x19] sm:$0xff]
      %v3672 = vld [vmem:[%s3475 + $0x21] sm:$0xff]
      %v3673 = vld [vmem:[%s3475 + $0x31] sm:$0xff]
      %v3674 = vld [vmem:[%s3475 + $0x39] sm:$0xff]
      %v3675 = vld [vmem:[%s3475 + $0x49] sm:$0xff]
      %v3676 = vld [vmem:[%s3475 + $0x51] sm:$0xff]
      %v3677 = vld [vmem:[%s3475 + $0x61] sm:$0xff]
      %v3678 = vld [vmem:[%s3475 + $0x69] sm:$0xff]
      %v3679 = vld [vmem:[%s3475 + $0x79] sm:$0xff]
      %v3680 = vld [vmem:[%s3475 + $0x81] sm:$0xff]
      %v3681 = vld [vmem:[%s3475 + $0x91] sm:$0xff]
      %v3682 = vld [vmem:[%s3475 + $0x99] sm:$0xff]
      %v3683 = vld [vmem:[%s3475 + $0xa9] sm:$0xff]
      %v3684 = vld [vmem:[%s3475 + $0xb1] sm:$0xff]
      %v3685 = vld [vmem:[%s3475 + $0xc1] sm:$0xff]
      %v3686 = vld [vmem:[%s3475 + $0xc9] sm:$0xff]
      %v3687 = vld [vmem:[%s3475 + $0xd9] sm:$0xff]
      %v3688 = vld [vmem:[%s3475 + $0xe1] sm:$0xff]
      %v3689 = vld [vmem:[%s3475 + $0xf1] sm:$0xff]
      %v3690 = vld [vmem:[%s3475 + $0xf9] sm:$0xff]
      %v3691 = vld [vmem:[%s3475 + $0x109] sm:$0xff]
      %v3692 = vld [vmem:[%s3475 + $0x111] sm:$0xff]
      %v3693 = vld [vmem:[%s3475 + $0x121] sm:$0xff]
      %v3694 = vld [vmem:[%s3475 + $0x129] sm:$0xff]
      %v3695 = vld [vmem:[%s3475 + $0x139] sm:$0xff]
      %v3696 = vld [vmem:[%s3475 + $0x141] sm:$0xff]
      %v3697 = vld [vmem:[%s3475 + $0x151] sm:$0xff]
      %v3698 = vld [vmem:[%s3475 + $0x159] sm:$0xff]
      %v3699 = vld [vmem:[%s3475 + $0x169] sm:$0xff]
      %v3700 = vld [vmem:[%s3475 + $0x171] sm:$0xff]
      %3733 = vrot.lane.b32.xlu0 %v3669, 56
      %v3734 = vpop.permute.xlu0 %3733
      %3735 = vrot.lane.b32.xlu0 %v3670, 56
      %v3736 = vpop.permute.xlu0 %3735
      %3737 = vrot.lane.b32.xlu0 %v3671, 56
      %v3738 = vpop.permute.xlu0 %3737
      %3739 = vrot.lane.b32.xlu0 %v3672, 56
      %v3740 = vpop.permute.xlu0 %3739
      %3741 = vrot.lane.b32.xlu0 %v3673, 56
      %v3742 = vpop.permute.xlu0 %3741
      %3743 = vrot.lane.b32.xlu0 %v3674, 56
      %v3744 = vpop.permute.xlu0 %3743
      %3745 = vrot.lane.b32.xlu0 %v3675, 56
      %v3746 = vpop.permute.xlu0 %3745
      %3747 = vrot.lane.b32.xlu0 %v3676, 56
      %v3748 = vpop.permute.xlu0 %3747
      %3749 = vrot.lane.b32.xlu0 %v3677, 56
      %v3750 = vpop.permute.xlu0 %3749
      %3751 = vrot.lane.b32.xlu0 %v3678, 56
      %v3752 = vpop.permute.xlu0 %3751
      %3753 = vrot.lane.b32.xlu0 %v3679, 56
      %v3754 = vpop.permute.xlu0 %3753
      %3755 = vrot.lane.b32.xlu0 %v3680, 56
      %v3756 = vpop.permute.xlu0 %3755
      %3757 = vrot.lane.b32.xlu0 %v3681, 56
      %v3758 = vpop.permute.xlu0 %3757
      %3759 = vrot.lane.b32.xlu0 %v3682, 56
      %v3760 = vpop.permute.xlu0 %3759
      %3761 = vrot.lane.b32.xlu0 %v3683, 56
      %v3762 = vpop.permute.xlu0 %3761
      %3763 = vrot.lane.b32.xlu0 %v3684, 56
      %v3764 = vpop.permute.xlu0 %3763
      %3765 = vrot.lane.b32.xlu0 %v3685, 56
      %v3766 = vpop.permute.xlu0 %3765
      %3767 = vrot.lane.b32.xlu0 %v3686, 56
      %v3768 = vpop.permute.xlu0 %3767
      %3769 = vrot.lane.b32.xlu0 %v3687, 56
      %v3770 = vpop.permute.xlu0 %3769
      %3771 = vrot.lane.b32.xlu0 %v3688, 56
      %v3772 = vpop.permute.xlu0 %3771
      %3773 = vrot.lane.b32.xlu0 %v3689, 56
      %v3774 = vpop.permute.xlu0 %3773
      %3775 = vrot.lane.b32.xlu0 %v3690, 56
      %v3776 = vpop.permute.xlu0 %3775
      %3777 = vrot.lane.b32.xlu0 %v3691, 56
      %v3778 = vpop.permute.xlu0 %3777
      %3779 = vrot.lane.b32.xlu0 %v3692, 56
      %v3780 = vpop.permute.xlu0 %3779
      %3781 = vrot.lane.b32.xlu0 %v3693, 56
      %v3782 = vpop.permute.xlu0 %3781
      %3783 = vrot.lane.b32.xlu0 %v3694, 56
      %v3784 = vpop.permute.xlu0 %3783
      %3785 = vrot.lane.b32.xlu0 %v3695, 56
      %v3786 = vpop.permute.xlu0 %3785
      %3787 = vrot.lane.b32.xlu0 %v3696, 56
      %v3788 = vpop.permute.xlu0 %3787
      %3789 = vrot.lane.b32.xlu0 %v3697, 56
      %v3790 = vpop.permute.xlu0 %3789
      %3791 = vrot.lane.b32.xlu0 %v3698, 56
      %v3792 = vpop.permute.xlu0 %3791
      %3793 = vrot.lane.b32.xlu0 %v3699, 56
      %v3794 = vpop.permute.xlu0 %3793
      %3795 = vrot.lane.b32.xlu0 %v3700, 56
      %v3796 = vpop.permute.xlu0 %3795
      %vm3829 = vcmask 523712
      %3830 = vst.msk [vmem:[#allocation5] sm:$0xff] %vm3829, %v3734
      %3831 = vst.msk [vmem:[#allocation5 + $0x8] sm:$0xff] %vm3829, %v3736
      %3832 = vst.msk [vmem:[#allocation5 + $0x10] sm:$0xff] %vm3829, %v3738
      %3833 = vst.msk [vmem:[#allocation5 + $0x18] sm:$0xff] %vm3829, %v3740
      %3834 = vst.msk [vmem:[#allocation5 + $0x20] sm:$0xff] %vm3829, %v3742
      %3835 = vst.msk [vmem:[#allocation5 + $0x28] sm:$0xff] %vm3829, %v3744
      %3836 = vst.msk [vmem:[#allocation5 + $0x30] sm:$0xff] %vm3829, %v3746
      %3837 = vst.msk [vmem:[#allocation5 + $0x38] sm:$0xff] %vm3829, %v3748
      %3838 = vst.msk [vmem:[#allocation5 + $0x40] sm:$0xff] %vm3829, %v3750
      %3839 = vst.msk [vmem:[#allocation5 + $0x48] sm:$0xff] %vm3829, %v3752
      %3840 = vst.msk [vmem:[#allocation5 + $0x50] sm:$0xff] %vm3829, %v3754
      %3841 = vst.msk [vmem:[#allocation5 + $0x58] sm:$0xff] %vm3829, %v3756
      %3842 = vst.msk [vmem:[#allocation5 + $0x60] sm:$0xff] %vm3829, %v3758
      %3843 = vst.msk [vmem:[#allocation5 + $0x68] sm:$0xff] %vm3829, %v3760
      %3844 = vst.msk [vmem:[#allocation5 + $0x70] sm:$0xff] %vm3829, %v3762
      %3845 = vst.msk [vmem:[#allocation5 + $0x78] sm:$0xff] %vm3829, %v3764
      %3846 = vst.msk [vmem:[#allocation5 + $0x80] sm:$0xff] %vm3829, %v3766
      %3847 = vst.msk [vmem:[#allocation5 + $0x88] sm:$0xff] %vm3829, %v3768
      %3848 = vst.msk [vmem:[#allocation5 + $0x90] sm:$0xff] %vm3829, %v3770
      %3849 = vst.msk [vmem:[#allocation5 + $0x98] sm:$0xff] %vm3829, %v3772
      %3850 = vst.msk [vmem:[#allocation5 + $0xa0] sm:$0xff] %vm3829, %v3774
      %3851 = vst.msk [vmem:[#allocation5 + $0xa8] sm:$0xff] %vm3829, %v3776
      %3852 = vst.msk [vmem:[#allocation5 + $0xb0] sm:$0xff] %vm3829, %v3778
      %3853 = vst.msk [vmem:[#allocation5 + $0xb8] sm:$0xff] %vm3829, %v3780
      %3854 = vst.msk [vmem:[#allocation5 + $0xc0] sm:$0xff] %vm3829, %v3782
      %3855 = vst.msk [vmem:[#allocation5 + $0xc8] sm:$0xff] %vm3829, %v3784
      %3856 = vst.msk [vmem:[#allocation5 + $0xd0] sm:$0xff] %vm3829, %v3786
      %3857 = vst.msk [vmem:[#allocation5 + $0xd8] sm:$0xff] %vm3829, %v3788
      %3858 = vst.msk [vmem:[#allocation5 + $0xe0] sm:$0xff] %vm3829, %v3790
      %3859 = vst.msk [vmem:[#allocation5 + $0xe8] sm:$0xff] %vm3829, %v3792
      %3860 = vst.msk [vmem:[#allocation5 + $0xf0] sm:$0xff] %vm3829, %v3794
      %3861 = vst.msk [vmem:[#allocation5 + $0xf8] sm:$0xff] %vm3829, %v3796
      %v3862 = vld [vmem:[%s3475 + $0x2] sm:$0xff]
      %v3863 = vld [vmem:[%s3475 + $0xa] sm:$0xff]
      %v3864 = vld [vmem:[%s3475 + $0x1a] sm:$0xff]
      %v3865 = vld [vmem:[%s3475 + $0x22] sm:$0xff]
      %v3866 = vld [vmem:[%s3475 + $0x32] sm:$0xff]
      %v3867 = vld [vmem:[%s3475 + $0x3a] sm:$0xff]
      %v3868 = vld [vmem:[%s3475 + $0x4a] sm:$0xff]
      %v3869 = vld [vmem:[%s3475 + $0x52] sm:$0xff]
      %v3870 = vld [vmem:[%s3475 + $0x62] sm:$0xff]
      %v3871 = vld [vmem:[%s3475 + $0x6a] sm:$0xff]
      %v3872 = vld [vmem:[%s3475 + $0x7a] sm:$0xff]
      %v3873 = vld [vmem:[%s3475 + $0x82] sm:$0xff]
      %v3874 = vld [vmem:[%s3475 + $0x92] sm:$0xff]
      %v3875 = vld [vmem:[%s3475 + $0x9a] sm:$0xff]
      %v3876 = vld [vmem:[%s3475 + $0xaa] sm:$0xff]
      %v3877 = vld [vmem:[%s3475 + $0xb2] sm:$0xff]
      %v3878 = vld [vmem:[%s3475 + $0xc2] sm:$0xff]
      %v3879 = vld [vmem:[%s3475 + $0xca] sm:$0xff]
      %v3880 = vld [vmem:[%s3475 + $0xda] sm:$0xff]
      %v3881 = vld [vmem:[%s3475 + $0xe2] sm:$0xff]
      %v3882 = vld [vmem:[%s3475 + $0xf2] sm:$0xff]
      %v3883 = vld [vmem:[%s3475 + $0xfa] sm:$0xff]
      %v3884 = vld [vmem:[%s3475 + $0x10a] sm:$0xff]
      %v3885 = vld [vmem:[%s3475 + $0x112] sm:$0xff]
      %v3886 = vld [vmem:[%s3475 + $0x122] sm:$0xff]
      %v3887 = vld [vmem:[%s3475 + $0x12a] sm:$0xff]
      %v3888 = vld [vmem:[%s3475 + $0x13a] sm:$0xff]
      %v3889 = vld [vmem:[%s3475 + $0x142] sm:$0xff]
      %v3890 = vld [vmem:[%s3475 + $0x152] sm:$0xff]
      %v3891 = vld [vmem:[%s3475 + $0x15a] sm:$0xff]
      %v3892 = vld [vmem:[%s3475 + $0x16a] sm:$0xff]
      %v3893 = vld [vmem:[%s3475 + $0x172] sm:$0xff]
      %3926 = vrot.lane.b32.xlu0 %v3862, 64
      %v3927 = vpop.permute.xlu0 %3926
      %3928 = vrot.lane.b32.xlu0 %v3863, 64
      %v3929 = vpop.permute.xlu0 %3928
      %3930 = vrot.lane.b32.xlu0 %v3864, 64
      %v3931 = vpop.permute.xlu0 %3930
      %3932 = vrot.lane.b32.xlu0 %v3865, 64
      %v3933 = vpop.permute.xlu0 %3932
      %3934 = vrot.lane.b32.xlu0 %v3866, 64
      %v3935 = vpop.permute.xlu0 %3934
      %3936 = vrot.lane.b32.xlu0 %v3867, 64
      %v3937 = vpop.permute.xlu0 %3936
      %3938 = vrot.lane.b32.xlu0 %v3868, 64
      %v3939 = vpop.permute.xlu0 %3938
      %3940 = vrot.lane.b32.xlu0 %v3869, 64
      %v3941 = vpop.permute.xlu0 %3940
      %3942 = vrot.lane.b32.xlu0 %v3870, 64
      %v3943 = vpop.permute.xlu0 %3942
      %3944 = vrot.lane.b32.xlu0 %v3871, 64
      %v3945 = vpop.permute.xlu0 %3944
      %3946 = vrot.lane.b32.xlu0 %v3872, 64
      %v3947 = vpop.permute.xlu0 %3946
      %3948 = vrot.lane.b32.xlu0 %v3873, 64
      %v3949 = vpop.permute.xlu0 %3948
      %3950 = vrot.lane.b32.xlu0 %v3874, 64
      %v3951 = vpop.permute.xlu0 %3950
      %3952 = vrot.lane.b32.xlu0 %v3875, 64
      %v3953 = vpop.permute.xlu0 %3952
      %3954 = vrot.lane.b32.xlu0 %v3876, 64
      %v3955 = vpop.permute.xlu0 %3954
      %3956 = vrot.lane.b32.xlu0 %v3877, 64
      %v3957 = vpop.permute.xlu0 %3956
      %3958 = vrot.lane.b32.xlu0 %v3878, 64
      %v3959 = vpop.permute.xlu0 %3958
      %3960 = vrot.lane.b32.xlu0 %v3879, 64
      %v3961 = vpop.permute.xlu0 %3960
      %3962 = vrot.lane.b32.xlu0 %v3880, 64
      %v3963 = vpop.permute.xlu0 %3962
      %3964 = vrot.lane.b32.xlu0 %v3881, 64
      %v3965 = vpop.permute.xlu0 %3964
      %3966 = vrot.lane.b32.xlu0 %v3882, 64
      %v3967 = vpop.permute.xlu0 %3966
      %3968 = vrot.lane.b32.xlu0 %v3883, 64
      %v3969 = vpop.permute.xlu0 %3968
      %3970 = vrot.lane.b32.xlu0 %v3884, 64
      %v3971 = vpop.permute.xlu0 %3970
      %3972 = vrot.lane.b32.xlu0 %v3885, 64
      %v3973 = vpop.permute.xlu0 %3972
      %3974 = vrot.lane.b32.xlu0 %v3886, 64
      %v3975 = vpop.permute.xlu0 %3974
      %3976 = vrot.lane.b32.xlu0 %v3887, 64
      %v3977 = vpop.permute.xlu0 %3976
      %3978 = vrot.lane.b32.xlu0 %v3888, 64
      %v3979 = vpop.permute.xlu0 %3978
      %3980 = vrot.lane.b32.xlu0 %v3889, 64
      %v3981 = vpop.permute.xlu0 %3980
      %3982 = vrot.lane.b32.xlu0 %v3890, 64
      %v3983 = vpop.permute.xlu0 %3982
      %3984 = vrot.lane.b32.xlu0 %v3891, 64
      %v3985 = vpop.permute.xlu0 %3984
      %3986 = vrot.lane.b32.xlu0 %v3892, 64
      %v3987 = vpop.permute.xlu0 %3986
      %3988 = vrot.lane.b32.xlu0 %v3893, 64
      %v3989 = vpop.permute.xlu0 %3988
      %vm4022 = vcmask 589312
      %4023 = vst.msk [vmem:[#allocation5] sm:$0xff] %vm4022, %v3927
      %4024 = vst.msk [vmem:[#allocation5 + $0x8] sm:$0xff] %vm4022, %v3929
      %4025 = vst.msk [vmem:[#allocation5 + $0x10] sm:$0xff] %vm4022, %v3931
      %4026 = vst.msk [vmem:[#allocation5 + $0x18] sm:$0xff] %vm4022, %v3933
      %4027 = vst.msk [vmem:[#allocation5 + $0x20] sm:$0xff] %vm4022, %v3935
      %4028 = vst.msk [vmem:[#allocation5 + $0x28] sm:$0xff] %vm4022, %v3937
      %4029 = vst.msk [vmem:[#allocation5 + $0x30] sm:$0xff] %vm4022, %v3939
      %4030 = vst.msk [vmem:[#allocation5 + $0x38] sm:$0xff] %vm4022, %v3941
      %4031 = vst.msk [vmem:[#allocation5 + $0x40] sm:$0xff] %vm4022, %v3943
      %4032 = vst.msk [vmem:[#allocation5 + $0x48] sm:$0xff] %vm4022, %v3945
      %4033 = vst.msk [vmem:[#allocation5 + $0x50] sm:$0xff] %vm4022, %v3947
      %4034 = vst.msk [vmem:[#allocation5 + $0x58] sm:$0xff] %vm4022, %v3949
      %4035 = vst.msk [vmem:[#allocation5 + $0x60] sm:$0xff] %vm4022, %v3951
      %4036 = vst.msk [vmem:[#allocation5 + $0x68] sm:$0xff] %vm4022, %v3953
      %4037 = vst.msk [vmem:[#allocation5 + $0x70] sm:$0xff] %vm4022, %v3955
      %4038 = vst.msk [vmem:[#allocation5 + $0x78] sm:$0xff] %vm4022, %v3957
      %4039 = vst.msk [vmem:[#allocation5 + $0x80] sm:$0xff] %vm4022, %v3959
      %4040 = vst.msk [vmem:[#allocation5 + $0x88] sm:$0xff] %vm4022, %v3961
      %4041 = vst.msk [vmem:[#allocation5 + $0x90] sm:$0xff] %vm4022, %v3963
      %4042 = vst.msk [vmem:[#allocation5 + $0x98] sm:$0xff] %vm4022, %v3965
      %4043 = vst.msk [vmem:[#allocation5 + $0xa0] sm:$0xff] %vm4022, %v3967
      %4044 = vst.msk [vmem:[#allocation5 + $0xa8] sm:$0xff] %vm4022, %v3969
      %4045 = vst.msk [vmem:[#allocation5 + $0xb0] sm:$0xff] %vm4022, %v3971
      %4046 = vst.msk [vmem:[#allocation5 + $0xb8] sm:$0xff] %vm4022, %v3973
      %4047 = vst.msk [vmem:[#allocation5 + $0xc0] sm:$0xff] %vm4022, %v3975
      %4048 = vst.msk [vmem:[#allocation5 + $0xc8] sm:$0xff] %vm4022, %v3977
      %4049 = vst.msk [vmem:[#allocation5 + $0xd0] sm:$0xff] %vm4022, %v3979
      %4050 = vst.msk [vmem:[#allocation5 + $0xd8] sm:$0xff] %vm4022, %v3981
      %4051 = vst.msk [vmem:[#allocation5 + $0xe0] sm:$0xff] %vm4022, %v3983
      %4052 = vst.msk [vmem:[#allocation5 + $0xe8] sm:$0xff] %vm4022, %v3985
      %4053 = vst.msk [vmem:[#allocation5 + $0xf0] sm:$0xff] %vm4022, %v3987
      %4054 = vst.msk [vmem:[#allocation5 + $0xf8] sm:$0xff] %vm4022, %v3989
      %v4055 = vld [vmem:[%s369 + $0x1] sm:$0xff]
      %v4056 = vld [vmem:[%s369 + $0x9] sm:$0xff]
      %v4057 = vld [vmem:[%s369 + $0x19] sm:$0xff]
      %v4058 = vld [vmem:[%s369 + $0x21] sm:$0xff]
      %v4059 = vld [vmem:[%s369 + $0x31] sm:$0xff]
      %v4060 = vld [vmem:[%s369 + $0x39] sm:$0xff]
      %v4061 = vld [vmem:[%s369 + $0x49] sm:$0xff]
      %v4062 = vld [vmem:[%s369 + $0x51] sm:$0xff]
      %v4063 = vld [vmem:[%s369 + $0x61] sm:$0xff]
      %v4064 = vld [vmem:[%s369 + $0x69] sm:$0xff]
      %v4065 = vld [vmem:[%s369 + $0x79] sm:$0xff]
      %v4066 = vld [vmem:[%s369 + $0x81] sm:$0xff]
      %v4067 = vld [vmem:[%s369 + $0x91] sm:$0xff]
      %v4068 = vld [vmem:[%s369 + $0x99] sm:$0xff]
      %v4069 = vld [vmem:[%s369 + $0xa9] sm:$0xff]
      %v4070 = vld [vmem:[%s369 + $0xb1] sm:$0xff]
      %v4071 = vld [vmem:[%s369 + $0xc1] sm:$0xff]
      %v4072 = vld [vmem:[%s369 + $0xc9] sm:$0xff]
      %v4073 = vld [vmem:[%s369 + $0xd9] sm:$0xff]
      %v4074 = vld [vmem:[%s369 + $0xe1] sm:$0xff]
      %v4075 = vld [vmem:[%s369 + $0xf1] sm:$0xff]
      %v4076 = vld [vmem:[%s369 + $0xf9] sm:$0xff]
      %v4077 = vld [vmem:[%s369 + $0x109] sm:$0xff]
      %v4078 = vld [vmem:[%s369 + $0x111] sm:$0xff]
      %v4079 = vld [vmem:[%s369 + $0x121] sm:$0xff]
      %v4080 = vld [vmem:[%s369 + $0x129] sm:$0xff]
      %v4081 = vld [vmem:[%s369 + $0x139] sm:$0xff]
      %v4082 = vld [vmem:[%s369 + $0x141] sm:$0xff]
      %v4083 = vld [vmem:[%s369 + $0x151] sm:$0xff]
      %v4084 = vld [vmem:[%s369 + $0x159] sm:$0xff]
      %v4085 = vld [vmem:[%s369 + $0x169] sm:$0xff]
      %v4086 = vld [vmem:[%s369 + $0x171] sm:$0xff]
      %4119 = vrot.lane.b32.xlu0 %v4055, 72
      %v4120 = vpop.permute.xlu0 %4119
      %4121 = vrot.lane.b32.xlu0 %v4056, 72
      %v4122 = vpop.permute.xlu0 %4121
      %4123 = vrot.lane.b32.xlu0 %v4057, 72
      %v4124 = vpop.permute.xlu0 %4123
      %4125 = vrot.lane.b32.xlu0 %v4058, 72
      %v4126 = vpop.permute.xlu0 %4125
      %4127 = vrot.lane.b32.xlu0 %v4059, 72
      %v4128 = vpop.permute.xlu0 %4127
      %4129 = vrot.lane.b32.xlu0 %v4060, 72
      %v4130 = vpop.permute.xlu0 %4129
      %4131 = vrot.lane.b32.xlu0 %v4061, 72
      %v4132 = vpop.permute.xlu0 %4131
      %4133 = vrot.lane.b32.xlu0 %v4062, 72
      %v4134 = vpop.permute.xlu0 %4133
      %4135 = vrot.lane.b32.xlu0 %v4063, 72
      %v4136 = vpop.permute.xlu0 %4135
      %4137 = vrot.lane.b32.xlu0 %v4064, 72
      %v4138 = vpop.permute.xlu0 %4137
      %4139 = vrot.lane.b32.xlu0 %v4065, 72
      %v4140 = vpop.permute.xlu0 %4139
      %4141 = vrot.lane.b32.xlu0 %v4066, 72
      %v4142 = vpop.permute.xlu0 %4141
      %4143 = vrot.lane.b32.xlu0 %v4067, 72
      %v4144 = vpop.permute.xlu0 %4143
      %4145 = vrot.lane.b32.xlu0 %v4068, 72
      %v4146 = vpop.permute.xlu0 %4145
      %4147 = vrot.lane.b32.xlu0 %v4069, 72
      %v4148 = vpop.permute.xlu0 %4147
      %4149 = vrot.lane.b32.xlu0 %v4070, 72
      %v4150 = vpop.permute.xlu0 %4149
      %4151 = vrot.lane.b32.xlu0 %v4071, 72
      %v4152 = vpop.permute.xlu0 %4151
      %4153 = vrot.lane.b32.xlu0 %v4072, 72
      %v4154 = vpop.permute.xlu0 %4153
      %4155 = vrot.lane.b32.xlu0 %v4073, 72
      %v4156 = vpop.permute.xlu0 %4155
      %4157 = vrot.lane.b32.xlu0 %v4074, 72
      %v4158 = vpop.permute.xlu0 %4157
      %4159 = vrot.lane.b32.xlu0 %v4075, 72
      %v4160 = vpop.permute.xlu0 %4159
      %4161 = vrot.lane.b32.xlu0 %v4076, 72
      %v4162 = vpop.permute.xlu0 %4161
      %4163 = vrot.lane.b32.xlu0 %v4077, 72
      %v4164 = vpop.permute.xlu0 %4163
      %4165 = vrot.lane.b32.xlu0 %v4078, 72
      %v4166 = vpop.permute.xlu0 %4165
      %4167 = vrot.lane.b32.xlu0 %v4079, 72
      %v4168 = vpop.permute.xlu0 %4167
      %4169 = vrot.lane.b32.xlu0 %v4080, 72
      %v4170 = vpop.permute.xlu0 %4169
      %4171 = vrot.lane.b32.xlu0 %v4081, 72
      %v4172 = vpop.permute.xlu0 %4171
      %4173 = vrot.lane.b32.xlu0 %v4082, 72
      %v4174 = vpop.permute.xlu0 %4173
      %4175 = vrot.lane.b32.xlu0 %v4083, 72
      %v4176 = vpop.permute.xlu0 %4175
      %4177 = vrot.lane.b32.xlu0 %v4084, 72
      %v4178 = vpop.permute.xlu0 %4177
      %4179 = vrot.lane.b32.xlu0 %v4085, 72
      %v4180 = vpop.permute.xlu0 %4179
      %4181 = vrot.lane.b32.xlu0 %v4086, 72
      %v4182 = vpop.permute.xlu0 %4181
      %vm4215 = vcmask 622144
      %4216 = vst.msk [vmem:[#allocation5] sm:$0xff] %vm4215, %v4120
      %4217 = vst.msk [vmem:[#allocation5 + $0x8] sm:$0xff] %vm4215, %v4122
      %4218 = vst.msk [vmem:[#allocation5 + $0x10] sm:$0xff] %vm4215, %v4124
      %4219 = vst.msk [vmem:[#allocation5 + $0x18] sm:$0xff] %vm4215, %v4126
      %4220 = vst.msk [vmem:[#allocation5 + $0x20] sm:$0xff] %vm4215, %v4128
      %4221 = vst.msk [vmem:[#allocation5 + $0x28] sm:$0xff] %vm4215, %v4130
      %4222 = vst.msk [vmem:[#allocation5 + $0x30] sm:$0xff] %vm4215, %v4132
      %4223 = vst.msk [vmem:[#allocation5 + $0x38] sm:$0xff] %vm4215, %v4134
      %4224 = vst.msk [vmem:[#allocation5 + $0x40] sm:$0xff] %vm4215, %v4136
      %4225 = vst.msk [vmem:[#allocation5 + $0x48] sm:$0xff] %vm4215, %v4138
      %4226 = vst.msk [vmem:[#allocation5 + $0x50] sm:$0xff] %vm4215, %v4140
      %4227 = vst.msk [vmem:[#allocation5 + $0x58] sm:$0xff] %vm4215, %v4142
      %4228 = vst.msk [vmem:[#allocation5 + $0x60] sm:$0xff] %vm4215, %v4144
      %4229 = vst.msk [vmem:[#allocation5 + $0x68] sm:$0xff] %vm4215, %v4146
      %4230 = vst.msk [vmem:[#allocation5 + $0x70] sm:$0xff] %vm4215, %v4148
      %4231 = vst.msk [vmem:[#allocation5 + $0x78] sm:$0xff] %vm4215, %v4150
      %4232 = vst.msk [vmem:[#allocation5 + $0x80] sm:$0xff] %vm4215, %v4152
      %4233 = vst.msk [vmem:[#allocation5 + $0x88] sm:$0xff] %vm4215, %v4154
      %4234 = vst.msk [vmem:[#allocation5 + $0x90] sm:$0xff] %vm4215, %v4156
      %4235 = vst.msk [vmem:[#allocation5 + $0x98] sm:$0xff] %vm4215, %v4158
      %4236 = vst.msk [vmem:[#allocation5 + $0xa0] sm:$0xff] %vm4215, %v4160
      %4237 = vst.msk [vmem:[#allocation5 + $0xa8] sm:$0xff] %vm4215, %v4162
      %4238 = vst.msk [vmem:[#allocation5 + $0xb0] sm:$0xff] %vm4215, %v4164
      %4239 = vst.msk [vmem:[#allocation5 + $0xb8] sm:$0xff] %vm4215, %v4166
      %4240 = vst.msk [vmem:[#allocation5 + $0xc0] sm:$0xff] %vm4215, %v4168
      %4241 = vst.msk [vmem:[#allocation5 + $0xc8] sm:$0xff] %vm4215, %v4170
      %4242 = vst.msk [vmem:[#allocation5 + $0xd0] sm:$0xff] %vm4215, %v4172
      %4243 = vst.msk [vmem:[#allocation5 + $0xd8] sm:$0xff] %vm4215, %v4174
      %4244 = vst.msk [vmem:[#allocation5 + $0xe0] sm:$0xff] %vm4215, %v4176
      %4245 = vst.msk [vmem:[#allocation5 + $0xe8] sm:$0xff] %vm4215, %v4178
      %4246 = vst.msk [vmem:[#allocation5 + $0xf0] sm:$0xff] %vm4215, %v4180
      %4247 = vst.msk [vmem:[#allocation5 + $0xf8] sm:$0xff] %vm4215, %v4182
      %v4248 = vld [vmem:[#allocation5] sm:$0xff]
      %v4249 = vld [vmem:[#allocation5 + $0x8] sm:$0xff]
      %v4250 = vld [vmem:[#allocation5 + $0x10] sm:$0xff]
      %v4251 = vld [vmem:[#allocation5 + $0x18] sm:$0xff]
      %v4252 = vld [vmem:[#allocation5 + $0x20] sm:$0xff]
      %v4253 = vld [vmem:[#allocation5 + $0x28] sm:$0xff]
      %v4254 = vld [vmem:[#allocation5 + $0x30] sm:$0xff]
      %v4255 = vld [vmem:[#allocation5 + $0x38] sm:$0xff]
      %v4256 = vld [vmem:[#allocation5 + $0x40] sm:$0xff]
      %v4257 = vld [vmem:[#allocation5 + $0x48] sm:$0xff]
      %v4258 = vld [vmem:[#allocation5 + $0x50] sm:$0xff]
      %v4259 = vld [vmem:[#allocation5 + $0x58] sm:$0xff]
      %v4260 = vld [vmem:[#allocation5 + $0x60] sm:$0xff]
      %v4261 = vld [vmem:[#allocation5 + $0x68] sm:$0xff]
      %v4262 = vld [vmem:[#allocation5 + $0x70] sm:$0xff]
      %v4263 = vld [vmem:[#allocation5 + $0x78] sm:$0xff]
      %v4264 = vld [vmem:[#allocation5 + $0x80] sm:$0xff]
      %v4265 = vld [vmem:[#allocation5 + $0x88] sm:$0xff]
      %v4266 = vld [vmem:[#allocation5 + $0x90] sm:$0xff]
      %v4267 = vld [vmem:[#allocation5 + $0x98] sm:$0xff]
      %v4268 = vld [vmem:[#allocation5 + $0xa0] sm:$0xff]
      %v4269 = vld [vmem:[#allocation5 + $0xa8] sm:$0xff]
      %v4270 = vld [vmem:[#allocation5 + $0xb0] sm:$0xff]
      %v4271 = vld [vmem:[#allocation5 + $0xb8] sm:$0xff]
      %v4272 = vld [vmem:[#allocation5 + $0xc0] sm:$0xff]
      %v4273 = vld [vmem:[#allocation5 + $0xc8] sm:$0xff]
      %v4274 = vld [vmem:[#allocation5 + $0xd0] sm:$0xff]
      %v4275 = vld [vmem:[#allocation5 + $0xd8] sm:$0xff]
      %v4276 = vld [vmem:[#allocation5 + $0xe0] sm:$0xff]
      %v4277 = vld [vmem:[#allocation5 + $0xe8] sm:$0xff]
      %v4278 = vld [vmem:[#allocation5 + $0xf0] sm:$0xff]
      %v4279 = vld [vmem:[#allocation5 + $0xf8] sm:$0xff]
      %v4280 = vld [vmem:[%s3] sm:$0xff]
      %v4281 = vld [vmem:[%s3 + $0x8] sm:$0xff]
      %v4282 = vld [vmem:[%s3 + $0x10] sm:$0xff]
      %v4283 = vld [vmem:[%s3 + $0x18] sm:$0xff]
      %v4284 = vld [vmem:[%s3 + $0x20] sm:$0xff]
      %v4285 = vld [vmem:[%s3 + $0x28] sm:$0xff]
      %v4286 = vld [vmem:[%s3 + $0x30] sm:$0xff]
      %v4287 = vld [vmem:[%s3 + $0x38] sm:$0xff]
      %v4288 = vld [vmem:[%s3 + $0x40] sm:$0xff]
      %v4289 = vld [vmem:[%s3 + $0x48] sm:$0xf]
      %v4290 = vld [vmem:[%s4] sm:$0x1]
      %v4292 = vlaneseq
      %v4293 = vshrl.u32 %v4292, 7
      %v4294 = vsub.s32 0, %v4293
      %v4295 = vrot.slane %v4290, %v4294
      %vm4297 = vcmask 621568
      %v4299 = vsel %vm4297, %v4248, 0
      %v4302 = vsel %vm4297, %v4249, 0
      %v4305 = vsel %vm4297, %v4250, 0
      %v4308 = vsel %vm4297, %v4251, 0
      %v4311 = vsel %vm4297, %v4252, 0
      %v4314 = vsel %vm4297, %v4253, 0
      %v4317 = vsel %vm4297, %v4254, 0
      %v4320 = vsel %vm4297, %v4255, 0
      %v4323 = vsel %vm4297, %v4256, 0
      %v4326 = vsel %vm4297, %v4257, 0
      %v4329 = vsel %vm4297, %v4258, 0
      %v4332 = vsel %vm4297, %v4259, 0
      %v4335 = vsel %vm4297, %v4260, 0
      %v4338 = vsel %vm4297, %v4261, 0
      %v4341 = vsel %vm4297, %v4262, 0
      %v4344 = vsel %vm4297, %v4263, 0
      %v4347 = vsel %vm4297, %v4264, 0
      %v4350 = vsel %vm4297, %v4265, 0
      %v4353 = vsel %vm4297, %v4266, 0
      %v4356 = vsel %vm4297, %v4267, 0
      %v4359 = vsel %vm4297, %v4268, 0
      %v4362 = vsel %vm4297, %v4269, 0
      %v4365 = vsel %vm4297, %v4270, 0
      %v4368 = vsel %vm4297, %v4271, 0
      %v4371 = vsel %vm4297, %v4272, 0
      %v4374 = vsel %vm4297, %v4273, 0
      %v4377 = vsel %vm4297, %v4274, 0
      %v4380 = vsel %vm4297, %v4275, 0
      %v4383 = vsel %vm4297, %v4276, 0
      %v4386 = vsel %vm4297, %v4277, 0
      %v4389 = vsel %vm4297, %v4278, 0
      %v4392 = vsel %vm4297, %v4279, 0
      %v4395 = vsel %vm2152, %v4289, 0
      %4397 = vmatprep.subr.mxu0 0.0
      %4398 = vmatpush1.msra.mxu0 0.0
      %4399 = vmatprep.subr.mxu0 0.0
      %4400 = vmatpush1.msra.mxu0 0.0
      %4401 = vmatprep.subr.mxu0 0.0
      %4402 = vmatpush1.msra.mxu0 0.0
      %4403 = vmatprep.subr.mxu0 0.0
      %4404 = vmatpush1.msra.mxu0 0.0
      %4405 = vmatprep.subr.mxu0 0.0
      %4406 = vmatpush1.msra.mxu0 0.0
      %4407 = vmatprep.subr.mxu0 0.0
      %4408 = vmatpush1.msra.mxu0 0.0
      %4409 = vmatprep.subr.mxu0 0.0
      %4410 = vmatpush1.msra.mxu0 %v4395
      %4411 = vmatprep.subr.mxu0 0.0
      %4412 = vmatpush1.msra.mxu0 %v4288
      %4413 = vmatprep.subr.mxu0 0.0
      %4414 = vmatpush1.msra.mxu0 %v4287
      %4415 = vmatprep.subr.mxu0 0.0
      %4416 = vmatpush1.msra.mxu0 %v4286
      %4417 = vmatprep.subr.mxu0 0.0
      %4418 = vmatpush1.msra.mxu0 %v4285
      %4419 = vmatprep.subr.mxu0 0.0
      %4420 = vmatpush1.msra.mxu0 %v4284
      %4421 = vmatprep.subr.mxu0 0.0
      %4422 = vmatpush1.msra.mxu0 %v4283
      %4423 = vmatprep.subr.mxu0 0.0
      %4424 = vmatpush1.msra.mxu0 %v4282
      %4425 = vmatprep.subr.mxu0 0.0
      %4426 = vmatpush1.msra.mxu0 %v4281
      %4427 = vmatprep.subr.mxu0 0.0
      %4428 = vmatpush1.msra.mxu0 %v4280
      %4429 = vmatprep.subr.mxu0 0.0
      %4430 = vmatpush2.msra.mxu0 0.0
      %4431 = vmatprep.subr.mxu0 0.0
      %4432 = vmatpush2.msra.mxu0 0.0
      %4433 = vmatprep.subr.mxu0 0.0
      %4434 = vmatpush2.msra.mxu0 0.0
      %4435 = vmatprep.subr.mxu0 0.0
      %4436 = vmatpush2.msra.mxu0 0.0
      %4437 = vmatprep.subr.mxu0 0.0
      %4438 = vmatpush2.msra.mxu0 0.0
      %4439 = vmatprep.subr.mxu0 0.0
      %4440 = vmatpush2.msra.mxu0 0.0
      %4441 = vmatprep.subr.mxu0 0.0
      %4442 = vmatpush2.msra.mxu0 0.0
      %4443 = vmatprep.subr.mxu0 0.0
      %4444 = vmatpush2.msra.mxu0 0.0
      %4445 = vmatprep.subr.mxu0 0.0
      %4446 = vmatpush2.msra.mxu0 0.0
      %4447 = vmatprep.subr.mxu0 0.0
      %4448 = vmatpush2.msra.mxu0 0.0
      %4449 = vmatprep.subr.mxu0 0.0
      %4450 = vmatpush2.msra.mxu0 0.0
      %4451 = vmatprep.subr.mxu0 0.0
      %4452 = vmatpush2.msra.mxu0 0.0
      %4453 = vmatprep.subr.mxu0 0.0
      %4454 = vmatpush2.msra.mxu0 0.0
      %4455 = vmatprep.subr.mxu0 0.0
      %4456 = vmatpush2.msra.mxu0 0.0
      %4457 = vmatprep.subr.mxu0 0.0
      %4458 = vmatpush2.msra.mxu0 0.0
      %4459 = vmatprep.subr.mxu0 0.0
      %4460 = vmatpush2.msra.mxu0 0.0
      %4461 = vmatprep.mubr.f32.mxu0 0.0
      %4462 = vmatmul.mubr.f32.gmra.mxu0 %v4299
      %v4463 = vpop.f32.mrf.mxu0
      %v4464 = vadd.f32 %v4295, %v4463
      %v4465 = vpop.f32.mrf.mxu0
      %4466 = vmatprep.mubr.f32.mxu0 0.0
      %4467 = vmatmul.mubr.f32.gmra.mxu0 %v4302
      %v4468 = vpop.f32.mrf.mxu0
      %v4469 = vadd.f32 %v4295, %v4468
      %v4470 = vpop.f32.mrf.mxu0
      %4471 = vmatprep.mubr.f32.mxu0 0.0
      %4472 = vmatmul.mubr.f32.gmra.mxu0 %v4305
      %v4473 = vpop.f32.mrf.mxu0
      %v4474 = vadd.f32 %v4295, %v4473
      %v4475 = vpop.f32.mrf.mxu0
      %4476 = vmatprep.mubr.f32.mxu0 0.0
      %4477 = vmatmul.mubr.f32.gmra.mxu0 %v4308
      %v4478 = vpop.f32.mrf.mxu0
      %v4479 = vadd.f32 %v4295, %v4478
      %v4480 = vpop.f32.mrf.mxu0
      %4481 = vmatprep.mubr.f32.mxu0 0.0
      %4482 = vmatmul.mubr.f32.gmra.mxu0 %v4311
      %v4483 = vpop.f32.mrf.mxu0
      %v4484 = vadd.f32 %v4295, %v4483
      %v4485 = vpop.f32.mrf.mxu0
      %4486 = vmatprep.mubr.f32.mxu0 0.0
      %4487 = vmatmul.mubr.f32.gmra.mxu0 %v4314
      %v4488 = vpop.f32.mrf.mxu0
      %v4489 = vadd.f32 %v4295, %v4488
      %v4490 = vpop.f32.mrf.mxu0
      %4491 = vmatprep.mubr.f32.mxu0 0.0
      %4492 = vmatmul.mubr.f32.gmra.mxu0 %v4317
      %v4493 = vpop.f32.mrf.mxu0
      %v4494 = vadd.f32 %v4295, %v4493
      %v4495 = vpop.f32.mrf.mxu0
      %4496 = vmatprep.mubr.f32.mxu0 0.0
      %4497 = vmatmul.mubr.f32.gmra.mxu0 %v4320
      %v4498 = vpop.f32.mrf.mxu0
      %v4499 = vadd.f32 %v4295, %v4498
      %v4500 = vpop.f32.mrf.mxu0
      %4501 = vmatprep.mubr.f32.mxu0 0.0
      %4502 = vmatmul.mubr.f32.gmra.mxu0 %v4323
      %v4503 = vpop.f32.mrf.mxu0
      %v4504 = vadd.f32 %v4295, %v4503
      %v4505 = vpop.f32.mrf.mxu0
      %4506 = vmatprep.mubr.f32.mxu0 0.0
      %4507 = vmatmul.mubr.f32.gmra.mxu0 %v4326
      %v4508 = vpop.f32.mrf.mxu0
      %v4509 = vadd.f32 %v4295, %v4508
      %v4510 = vpop.f32.mrf.mxu0
      %4511 = vmatprep.mubr.f32.mxu0 0.0
      %4512 = vmatmul.mubr.f32.gmra.mxu0 %v4329
      %v4513 = vpop.f32.mrf.mxu0
      %v4514 = vadd.f32 %v4295, %v4513
      %v4515 = vpop.f32.mrf.mxu0
      %4516 = vmatprep.mubr.f32.mxu0 0.0
      %4517 = vmatmul.mubr.f32.gmra.mxu0 %v4332
      %v4518 = vpop.f32.mrf.mxu0
      %v4519 = vadd.f32 %v4295, %v4518
      %v4520 = vpop.f32.mrf.mxu0
      %4521 = vmatprep.mubr.f32.mxu0 0.0
      %4522 = vmatmul.mubr.f32.gmra.mxu0 %v4335
      %v4523 = vpop.f32.mrf.mxu0
      %v4524 = vadd.f32 %v4295, %v4523
      %v4525 = vpop.f32.mrf.mxu0
      %4526 = vmatprep.mubr.f32.mxu0 0.0
      %4527 = vmatmul.mubr.f32.gmra.mxu0 %v4338
      %v4528 = vpop.f32.mrf.mxu0
      %v4529 = vadd.f32 %v4295, %v4528
      %v4530 = vpop.f32.mrf.mxu0
      %4531 = vmatprep.mubr.f32.mxu0 0.0
      %4532 = vmatmul.mubr.f32.gmra.mxu0 %v4341
      %v4533 = vpop.f32.mrf.mxu0
      %v4534 = vadd.f32 %v4295, %v4533
      %v4535 = vpop.f32.mrf.mxu0
      %4536 = vmatprep.mubr.f32.mxu0 0.0
      %4537 = vmatmul.mubr.f32.gmra.mxu0 %v4344
      %v4538 = vpop.f32.mrf.mxu0
      %v4539 = vadd.f32 %v4295, %v4538
      %v4540 = vpop.f32.mrf.mxu0
      %4541 = vmatprep.mubr.f32.mxu0 0.0
      %4542 = vmatmul.mubr.f32.gmra.mxu0 %v4347
      %v4543 = vpop.f32.mrf.mxu0
      %v4544 = vadd.f32 %v4295, %v4543
      %v4545 = vpop.f32.mrf.mxu0
      %4546 = vmatprep.mubr.f32.mxu0 0.0
      %4547 = vmatmul.mubr.f32.gmra.mxu0 %v4350
      %v4548 = vpop.f32.mrf.mxu0
      %v4549 = vadd.f32 %v4295, %v4548
      %v4550 = vpop.f32.mrf.mxu0
      %4551 = vmatprep.mubr.f32.mxu0 0.0
      %4552 = vmatmul.mubr.f32.gmra.mxu0 %v4353
      %v4553 = vpop.f32.mrf.mxu0
      %v4554 = vadd.f32 %v4295, %v4553
      %v4555 = vpop.f32.mrf.mxu0
      %4556 = vmatprep.mubr.f32.mxu0 0.0
      %4557 = vmatmul.mubr.f32.gmra.mxu0 %v4356
      %v4558 = vpop.f32.mrf.mxu0
      %v4559 = vadd.f32 %v4295, %v4558
      %v4560 = vpop.f32.mrf.mxu0
      %4561 = vmatprep.mubr.f32.mxu0 0.0
      %4562 = vmatmul.mubr.f32.gmra.mxu0 %v4359
      %v4563 = vpop.f32.mrf.mxu0
      %v4564 = vadd.f32 %v4295, %v4563
      %v4565 = vpop.f32.mrf.mxu0
      %4566 = vmatprep.mubr.f32.mxu0 0.0
      %4567 = vmatmul.mubr.f32.gmra.mxu0 %v4362
      %v4568 = vpop.f32.mrf.mxu0
      %v4569 = vadd.f32 %v4295, %v4568
      %v4570 = vpop.f32.mrf.mxu0
      %4571 = vmatprep.mubr.f32.mxu0 0.0
      %4572 = vmatmul.mubr.f32.gmra.mxu0 %v4365
      %v4573 = vpop.f32.mrf.mxu0
      %v4574 = vadd.f32 %v4295, %v4573
      %v4575 = vpop.f32.mrf.mxu0
      %4576 = vmatprep.mubr.f32.mxu0 0.0
      %4577 = vmatmul.mubr.f32.gmra.mxu0 %v4368
      %v4578 = vpop.f32.mrf.mxu0
      %v4579 = vadd.f32 %v4295, %v4578
      %v4580 = vpop.f32.mrf.mxu0
      %4581 = vmatprep.mubr.f32.mxu0 0.0
      %4582 = vmatmul.mubr.f32.gmra.mxu0 %v4371
      %v4583 = vpop.f32.mrf.mxu0
      %v4584 = vadd.f32 %v4295, %v4583
      %v4585 = vpop.f32.mrf.mxu0
      %4586 = vmatprep.mubr.f32.mxu0 0.0
      %4587 = vmatmul.mubr.f32.gmra.mxu0 %v4374
      %v4588 = vpop.f32.mrf.mxu0
      %v4589 = vadd.f32 %v4295, %v4588
      %v4590 = vpop.f32.mrf.mxu0
      %4591 = vmatprep.mubr.f32.mxu0 0.0
      %4592 = vmatmul.mubr.f32.gmra.mxu0 %v4377
      %v4593 = vpop.f32.mrf.mxu0
      %v4594 = vadd.f32 %v4295, %v4593
      %v4595 = vpop.f32.mrf.mxu0
      %4596 = vmatprep.mubr.f32.mxu0 0.0
      %4597 = vmatmul.mubr.f32.gmra.mxu0 %v4380
      %v4598 = vpop.f32.mrf.mxu0
      %v4599 = vadd.f32 %v4295, %v4598
      %v4600 = vpop.f32.mrf.mxu0
      %4601 = vmatprep.mubr.f32.mxu0 0.0
      %4602 = vmatmul.mubr.f32.gmra.mxu0 %v4383
      %v4603 = vpop.f32.mrf.mxu0
      %v4604 = vadd.f32 %v4295, %v4603
      %v4605 = vpop.f32.mrf.mxu0
      %4606 = vmatprep.mubr.f32.mxu0 0.0
      %4607 = vmatmul.mubr.f32.gmra.mxu0 %v4386
      %v4608 = vpop.f32.mrf.mxu0
      %v4609 = vadd.f32 %v4295, %v4608
      %v4610 = vpop.f32.mrf.mxu0
      %4611 = vmatprep.mubr.f32.mxu0 0.0
      %4612 = vmatmul.mubr.f32.gmra.mxu0 %v4389
      %v4613 = vpop.f32.mrf.mxu0
      %v4614 = vadd.f32 %v4295, %v4613
      %v4615 = vpop.f32.mrf.mxu0
      %4616 = vmatprep.mubr.f32.mxu0 0.0
      %4617 = vmatmul.mubr.f32.gmra.mxu0 %v4392
      %v4618 = vpop.f32.mrf.mxu0
      %v4619 = vadd.f32 %v4295, %v4618
      %v4620 = vpop.f32.mrf.mxu0
      %4621 = vdwg.mxu0
      %v4622 = vmax.f32 %v4464, 0.0
      %v4623 = vmax.f32 %v4469, 0.0
      %v4624 = vmax.f32 %v4474, 0.0
      %v4625 = vmax.f32 %v4479, 0.0
      %v4626 = vmax.f32 %v4484, 0.0
      %v4627 = vmax.f32 %v4489, 0.0
      %v4628 = vmax.f32 %v4494, 0.0
      %v4629 = vmax.f32 %v4499, 0.0
      %v4630 = vmax.f32 %v4504, 0.0
      %v4631 = vmax.f32 %v4509, 0.0
      %v4632 = vmax.f32 %v4514, 0.0
      %v4633 = vmax.f32 %v4519, 0.0
      %v4634 = vmax.f32 %v4524, 0.0
      %v4635 = vmax.f32 %v4529, 0.0
      %v4636 = vmax.f32 %v4534, 0.0
      %v4637 = vmax.f32 %v4539, 0.0
      %v4638 = vmax.f32 %v4544, 0.0
      %v4639 = vmax.f32 %v4549, 0.0
      %v4640 = vmax.f32 %v4554, 0.0
      %v4641 = vmax.f32 %v4559, 0.0
      %v4642 = vmax.f32 %v4564, 0.0
      %v4643 = vmax.f32 %v4569, 0.0
      %v4644 = vmax.f32 %v4574, 0.0
      %v4645 = vmax.f32 %v4579, 0.0
      %v4646 = vmax.f32 %v4584, 0.0
      %v4647 = vmax.f32 %v4589, 0.0
      %v4648 = vmax.f32 %v4594, 0.0
      %v4649 = vmax.f32 %v4599, 0.0
      %v4650 = vmax.f32 %v4604, 0.0
      %v4651 = vmax.f32 %v4609, 0.0
      %v4652 = vmax.f32 %v4614, 0.0
      %v4653 = vmax.f32 %v4619, 0.0
      %4654 = vst.msk [vmem:[%s224] sm:$0xff] %vm281, %v4622
      %4655 = vst.msk [vmem:[%s224 + $0x8] sm:$0xff] %vm281, %v4623
      %4656 = vst.msk [vmem:[%s224 + $0x10] sm:$0xff] %vm281, %v4624
      %4657 = vst.msk [vmem:[%s224 + $0x18] sm:$0xff] %vm281, %v4625
      %4658 = vst.msk [vmem:[%s224 + $0x20] sm:$0xff] %vm281, %v4626
      %4659 = vst.msk [vmem:[%s224 + $0x28] sm:$0xff] %vm281, %v4627
      %4660 = vst.msk [vmem:[%s224 + $0x30] sm:$0xff] %vm281, %v4628
      %4661 = vst.msk [vmem:[%s224 + $0x38] sm:$0xff] %vm281, %v4629
      %4662 = vst.msk [vmem:[%s224 + $0x40] sm:$0xff] %vm281, %v4630
      %4663 = vst.msk [vmem:[%s224 + $0x48] sm:$0xff] %vm281, %v4631
      %4664 = vst.msk [vmem:[%s224 + $0x50] sm:$0xff] %vm281, %v4632
      %4665 = vst.msk [vmem:[%s224 + $0x58] sm:$0xff] %vm281, %v4633
      %4666 = vst.msk [vmem:[%s224 + $0x60] sm:$0xff] %vm281, %v4634
      %4667 = vst.msk [vmem:[%s224 + $0x68] sm:$0xff] %vm281, %v4635
      %4668 = vst.msk [vmem:[%s224 + $0x70] sm:$0xff] %vm281, %v4636
      %4669 = vst.msk [vmem:[%s224 + $0x78] sm:$0xff] %vm281, %v4637
      %4670 = vst.msk [vmem:[%s224 + $0x80] sm:$0xff] %vm281, %v4638
      %4671 = vst.msk [vmem:[%s224 + $0x88] sm:$0xff] %vm281, %v4639
      %4672 = vst.msk [vmem:[%s224 + $0x90] sm:$0xff] %vm281, %v4640
      %4673 = vst.msk [vmem:[%s224 + $0x98] sm:$0xff] %vm281, %v4641
      %4674 = vst.msk [vmem:[%s224 + $0xa0] sm:$0xff] %vm281, %v4642
      %4675 = vst.msk [vmem:[%s224 + $0xa8] sm:$0xff] %vm281, %v4643
      %4676 = vst.msk [vmem:[%s224 + $0xb0] sm:$0xff] %vm281, %v4644
      %4677 = vst.msk [vmem:[%s224 + $0xb8] sm:$0xff] %vm281, %v4645
      %4678 = vst.msk [vmem:[%s224 + $0xc0] sm:$0xff] %vm281, %v4646
      %4679 = vst.msk [vmem:[%s224 + $0xc8] sm:$0xff] %vm281, %v4647
      %4680 = vst.msk [vmem:[%s224 + $0xd0] sm:$0xff] %vm281, %v4648
      %4681 = vst.msk [vmem:[%s224 + $0xd8] sm:$0xff] %vm281, %v4649
      %4682 = vst.msk [vmem:[%s224 + $0xe0] sm:$0xff] %vm281, %v4650
      %4683 = vst.msk [vmem:[%s224 + $0xe8] sm:$0xff] %vm281, %v4651
      %4684 = vst.msk [vmem:[%s224 + $0xf0] sm:$0xff] %vm281, %v4652
      %4685 = vst.msk [vmem:[%s224 + $0xf8] sm:$0xff] %vm281, %v4653
      %p4686 = scmp.lt.s32.totalorder %s16, 1
      %s4687 = scalar_select %p4686, %s16, 1
      %s4688 = smul.addr %s4687, 32
      %s4689 = smul.addr %s4688, 8
      %s4690 = scalar_lea.vmem %s5, %s4689
      // Predicated region
      $region41: #{tpu_custom_call.1} parent=39 // pred_check
        %p4691 = pneg %p144
      $region42: #{tpu_custom_call.1} parent=39 // pred_check_branch
        %4693 = sbr.rel (%p4691) target = $region44
      $region43: #{tpu_custom_call.1} parent=39 // pred_region
        _
      $region44: #{tpu_custom_call.1} parent=39 // pred_fallthru
        _
    $region40: #{tpu_custom_call.1} parent=5 // pred_fallthru
      _
    %p4694 = scmp.le.s32.totalorder 2, %s11
    // Predicated region
    $region45: #{tpu_custom_call.1} parent=5 // pred_check
      %p4695 = pneg %p4694
    $region46: #{tpu_custom_call.1} parent=5 // pred_check_branch
      %4697 = sbr.rel (%p4695) target = $region48
    $region47: #{tpu_custom_call.1} parent=5 // pred_region
      %s4698 = ssub.s32 %s11, 2
      // Predicated region
      $region49: #{tpu_custom_call.1} parent=47 // pred_check
        %p4699 = pneg %p150
      $region50: #{tpu_custom_call.1} parent=47 // pred_check_branch
        %4701 = sbr.rel (%p4699) target = $region52
      $region51: #{tpu_custom_call.1} parent=47 // pred_region
        %p4702 = scmp.lt.s32.totalorder %s17, 1
        %s4703 = scalar_select %p4702, %s17, 1
        %s4704 = smul.addr %s4703, 32
        %s4705 = smul.addr %s4704, 8
        %s4706 = scalar_lea.vmem %s5, %s4705
      $region52: #{tpu_custom_call.1} parent=47 // pred_fallthru
        _
    $region48: #{tpu_custom_call.1} parent=5 // pred_fallthru
      _
  $region6: #{tpu_custom_call.1} parent=0 // loop_footer
    %s15 = sadd.s32 1, %s11
  $region7: #{tpu_custom_call.1} parent=0 // loop_footer_branch
    %10 = sbr.rel target = $region3
  $region8: #{tpu_custom_call.1} parent=0 // loop_exit
    _

</llo_original>
